<compile_context>
chip_gen: v7x
topology: tpu7x:2x2x1
jax: 0.10.0
libtpu: 0.0.40
codegen_flags: <defaults>
</compile_context>

<pallas_src>
import jax
import jax.numpy as jnp
from jax.experimental import pallas as pl
from jax.experimental.pallas import tpu as pltpu

NEG_SLOPE = 0.01      # torch.nn.LeakyReLU default negative_slope
PF = 8                # padded feature width (sublane aligned); true widths are 5 (in) / 3 (hidden, out)
J_IN = 5              # true input width -> number of Jacobian columns carried
N_LAYERS = 10         # Linear(5,3) + 8x Linear(3,3) + Linear(3,3); LeakyReLU after the first 9
LANE_TILE = 512       # lanes per grid step (multiple of 128)


def _mlp_jac_kernel(x_ref, w0_ref, ws_ref, bs_ref, rate_ref, jac_ref, a_ref):
    """Fused MLP forward + forward-mode Jacobian, one lane-tile of the batch per grid step.

    Layout: padded features on sublanes, a tile of the flattened batch (BT = E*T) on lanes.
      x_ref    : (PF, TILE)           rows 0..4 = [y0, y1, y2, erate, T]
      w0_ref   : (PF, PF)             padded W0 (first layer, 5->3)
      ws_ref   : (9, PF, PF)          padded W1..W9
      bs_ref   : (PF, N_LAYERS)       padded biases, column l = b_l
      rate_ref : (PF, TILE)           network output (rows 0..2 valid)
      jac_ref  : (J_IN, PF, TILE)     jac_ref[j, a, b] = d out[a, b] / d x[j, b]
      a_ref    : (PF, (1+J_IN)*TILE)  scratch slab A = [ h | dh/dx0 | ... | dh/dx4 ]
    Each layer issues ONE MXU matmul W @ A that updates the activation and all Jacobian
    columns together; the LeakyReLU' mask is applied per lane-block (no replicated copies).
    """
    tile = x_ref.shape[1]

    # ---- layer 0: Linear(5,3) + LeakyReLU; seed the Jacobian columns ----------
    W0 = w0_ref[...]
    pre = jnp.dot(W0, x_ref[...], preferred_element_type=jnp.float32) + bs_ref[:, 0:1]
    s = jnp.where(pre > 0, 1.0, NEG_SLOPE)                  # LeakyReLU'
    a_ref[:, :tile] = pre * s                                # h1
    for j in range(J_IN):                                    # dh1/dx_j = s * W0[:, j]
        a_ref[:, (1 + j) * tile:(2 + j) * tile] = s * W0[:, j:j + 1]

    # ---- layers 1..8: Linear(3,3) + LeakyReLU (statically unrolled) -----------
    for l in range(8):
        W = ws_ref[l]                                        # (PF, PF), static index
        A = jnp.dot(W, a_ref[...], preferred_element_type=jnp.float32)  # one fused matmul
        pre = A[:, :tile] + bs_ref[:, l + 1:l + 2]
        s = jnp.where(pre > 0, 1.0, NEG_SLOPE)
        a_ref[:, :tile] = pre * s
        for j in range(J_IN):                                # per-block mask multiply
            blk = slice((1 + j) * tile, (2 + j) * tile)
            a_ref[:, blk] = A[:, blk] * s

    # ---- layer 9: final Linear(3,3), no activation -----------------------------
    W9 = ws_ref[8]
    A = jnp.dot(W9, a_ref[...], preferred_element_type=jnp.float32)
    rate_ref[...] = A[:, :tile] + bs_ref[:, 9:10]
    for j in range(J_IN):
        jac_ref[j, :, :] = A[:, (1 + j) * tile:(2 + j) * tile]


def _round_up(n, m):
    return ((n + m - 1) // m) * m


def network_forward(params, t, y, erate, T):
    """Pallas implementation of Network.forward.

    params : list of 10 (W, b) pairs in torch Linear layout (W: (out, in), b: (out,))
    t      : (T, 1)    -- not read by the torch forward's math; kept for signature parity
    y      : (3, E, T)
    erate  : (E, T)
    T      : (E, T)
    returns (rate (E, T, 3), jac (E, T, 3, T, 5)) matching (network(x), vmap(jacrev(network))(x))
    """
    del t  # the reference forward never uses t
    f32 = jnp.float32
    E, TN = erate.shape
    BT = E * TN

    tile = min(LANE_TILE, _round_up(BT, 128))
    bt_pad = _round_up(BT, tile)
    grid = (bt_pad // tile,)

    # Build x directly in feature-major layout (y is already feature-major; no transposes).
    x_feat = jnp.concatenate(
        [y.reshape(3, BT).astype(f32),
         erate.reshape(1, BT).astype(f32),
         T.reshape(1, BT).astype(f32)], axis=0)                          # (5, BT)
    x_pad = jnp.zeros((PF, bt_pad), f32).at[:J_IN, :BT].set(x_feat)

    W0_p = jnp.zeros((PF, PF), f32).at[:3, :J_IN].set(params[0][0].astype(f32))
    Ws_p = jnp.zeros((9, PF, PF), f32).at[:, :3, :3].set(
        jnp.stack([W for W, _ in params[1:]]).astype(f32))
    Bs_p = jnp.zeros((PF, N_LAYERS), f32).at[:3, :].set(
        jnp.stack([b for _, b in params], axis=1).astype(f32))

    rate_flat, jac_flat = pl.pallas_call(
        _mlp_jac_kernel,
        out_shape=(
            jax.ShapeDtypeStruct((PF, bt_pad), f32),          # rate, lane-dense
            jax.ShapeDtypeStruct((J_IN, PF, bt_pad), f32),    # per-point Jacobian, lane-dense
        ),
        grid=grid,
        in_specs=[
            pl.BlockSpec((PF, tile), lambda i: (0, i)),              # x tile
            pl.BlockSpec((PF, PF), lambda i: (0, 0)),                # W0 (grid-invariant)
            pl.BlockSpec((9, PF, PF), lambda i: (0, 0, 0)),          # W1..W9 (grid-invariant)
            pl.BlockSpec((PF, N_LAYERS), lambda i: (0, 0)),          # biases (grid-invariant)
        ],
        out_specs=(
            pl.BlockSpec((PF, tile), lambda i: (0, i)),
            pl.BlockSpec((J_IN, PF, tile), lambda i: (0, 0, i)),
        ),
        scratch_shapes=[pltpu.VMEM((PF, (1 + J_IN) * tile), f32)],
        compiler_params=pltpu.CompilerParams(dimension_semantics=("parallel",)),
    )(x_pad, W0_p, Ws_p, Bs_p)

    rate = rate_flat[:3, :BT].T.reshape(E, TN, 3)

    # Compact per-point Jacobian d out[a]/d x[c] at every (e, t): (E, T, 3, 5)
    j_pp = jac_flat[:, :3, :BT].reshape(J_IN, 3, E, TN).transpose(2, 3, 1, 0)

    # vmap(jacrev) over the experiment axis is block-diagonal over time; embed via scatter
    # (no dense eye(T) multiply).
    # TODO(synk): return j_pp directly if the consumer accepts the compact (E,T,3,5) Jacobian;
    # the dense (E,T,3,T,5) embedding is O(T^2) in memory and dominates for large T.
    idx = jnp.arange(TN)
    jac = jnp.zeros((E, TN, 3, TN, J_IN), f32).at[:, idx, :, idx, :].set(
        jnp.transpose(j_pp, (1, 0, 2, 3)))
    return rate, jac


if __name__ == "__main__":
    key = jax.random.PRNGKey(0)
    E, TN = 4, 32          # small: 4 "experiments", 32 time points -> 128 lanes per kernel tile
    dims = [(5, 3)] + [(3, 3)] * 9

    keys = jax.random.split(key, 2 * len(dims) + 3)
    params = []
    for li, (fin, fout) in enumerate(dims):
        W = 0.8 * jax.random.normal(keys[2 * li], (fout, fin), dtype=jnp.float32)
        b = 0.2 * jax.random.normal(keys[2 * li + 1], (fout,), dtype=jnp.float32)
        params.append((W, b))

    t = jnp.linspace(0.0, 1.0, TN, dtype=jnp.float32).reshape(TN, 1)   # unused by forward math
    y = jax.random.normal(keys[-3], (3, E, TN), dtype=jnp.float32)
    erate = jax.random.normal(keys[-2], (E, TN), dtype=jnp.float32)
    temp = jax.random.normal(keys[-1], (E, TN), dtype=jnp.float32)

    rate, jac = network_forward(params, t, y, erate, temp)
    jax.block_until_ready((rate, jac))

    # ---- pure-JAX reference (exactly the torch module semantics) --------------
    def net_apply(x):
        h = x
        for i, (W, b) in enumerate(params):
            h = h @ W.T + b
            if i < len(params) - 1:                     # LeakyReLU after the first 9 Linears
                h = jnp.where(h > 0, h, NEG_SLOPE * h)
        return h

    y_perm = jnp.transpose(y, (1, 2, 0))
    x_full = jnp.concatenate([y_perm, erate[..., None], temp[..., None]], axis=-1)
    rate_ref = net_apply(x_full)                        # (E, T, 3)
    jac_ref = jax.vmap(jax.jacrev(net_apply))(x_full)   # (E, T, 3, T, 5)

    assert rate.shape == (E, TN, 3) and jac.shape == (E, TN, 3, TN, 5)
    assert jnp.allclose(rate, rate_ref, rtol=1e-4, atol=1e-5), "rate mismatch"
    assert jnp.allclose(jac, jac_ref, rtol=1e-4, atol=1e-5), "jacobian mismatch"

    print("KERNEL_OK")
</pallas_src>

<mosaic_0001>
module attributes {stable_mosaic.version = 11 : i64} {
  func.func @_mlp_jac_kernel(%arg0: i32, %arg1: memref<8x128xf32, #tpu.memory_space<vmem>>, %arg2: memref<8x8xf32, #tpu.memory_space<vmem>>, %arg3: memref<9x8x8xf32, #tpu.memory_space<vmem>>, %arg4: memref<8x10xf32, #tpu.memory_space<vmem>>, %arg5: memref<8x128xf32, #tpu.memory_space<vmem>>, %arg6: memref<5x8x128xf32, #tpu.memory_space<vmem>>, %arg7: memref<8x768xf32, #tpu.memory_space<vmem>>) attributes {dimension_semantics = [#tpu.dimension_semantics<parallel>], iteration_bounds = array<i64: 1>, scalar_prefetch = 0 : i64, scratch_operands = 1 : i64, tpu.core_type = #tpu.core_type<tc>, window_params = [{transform_indices = @transform_0, window_bounds = array<i64: 8, 128>}, {pipeline_mode = #tpu.pipeline_mode<synchronous>, transform_indices = @transform_1, window_bounds = array<i64: 8, 8>}, {pipeline_mode = #tpu.pipeline_mode<synchronous>, transform_indices = @transform_2, window_bounds = array<i64: 9, 8, 8>}, {pipeline_mode = #tpu.pipeline_mode<synchronous>, transform_indices = @transform_3, window_bounds = array<i64: 8, 10>}, {transform_indices = @transform_4, window_bounds = array<i64: 8, 128>}, {transform_indices = @transform_5, window_bounds = array<i64: 5, 8, 128>}]} {
    %c0 = arith.constant 0 : index
    %c0_0 = arith.constant 0 : index
    %0 = vector.load %arg2[%c0, %c0_0] : memref<8x8xf32, #tpu.memory_space<vmem>>, vector<8x8xf32>
    %c0_1 = arith.constant 0 : index
    %c0_2 = arith.constant 0 : index
    %1 = vector.load %arg1[%c0_1, %c0_2] : memref<8x128xf32, #tpu.memory_space<vmem>>, vector<8x128xf32>
    %cst = arith.constant dense<0.000000e+00> : vector<8x128xf32>
    %2 = tpu.matmul %0, %1, %cst {dimension_numbers = #tpu.dot_dimension_numbers<[1], [0], [0], [1], [0, 0, 1, 1], [], []>} : vector<8x8xf32>, vector<8x128xf32>, vector<8x128xf32> -> vector<8x128xf32>
    %c0_3 = arith.constant 0 : index
    %c0_4 = arith.constant 0 : index
    %3 = vector.load %arg4[%c0_3, %c0_4] : memref<8x10xf32, #tpu.memory_space<vmem>>, vector<8x1xf32>
    %4 = vector.broadcast %3 : vector<8x1xf32> to vector<8x128xf32>
    %5 = arith.addf %2, %4 : vector<8x128xf32>
    %cst_5 = arith.constant 0.000000e+00 : f32
    %6 = vector.broadcast %cst_5 : f32 to vector<8x128xf32>
    %7 = arith.cmpf ogt, %5, %6 : vector<8x128xf32>
    %cst_6 = arith.constant 1.000000e+00 : f32
    %cst_7 = arith.constant 0.00999999977 : f32
    %8 = vector.broadcast %cst_6 : f32 to vector<8x128xf32>
    %9 = vector.broadcast %cst_7 : f32 to vector<8x128xf32>
    %10 = arith.select %7, %8, %9 : vector<8x128xi1>, vector<8x128xf32>
    %11 = arith.mulf %5, %10 : vector<8x128xf32>
    %c0_8 = arith.constant 0 : index
    %c0_9 = arith.constant 0 : index
    %12 = vector.load %arg7[%c0_8, %c0_9] : memref<8x768xf32, #tpu.memory_space<vmem>>, vector<8x128xf32>
    tpu.vector_store %arg7[%c0_8, %c0_9], %11 {strides = array<i32>} : memref<8x768xf32, #tpu.memory_space<vmem>>, vector<8x128xf32>,
    %13 = vector.extract_strided_slice %0 {offsets = [0, 0], sizes = [8, 1], strides = [1, 1]} : vector<8x8xf32> to vector<8x1xf32>
    %14 = vector.broadcast %13 : vector<8x1xf32> to vector<8x128xf32>
    %15 = arith.mulf %10, %14 : vector<8x128xf32>
    %c0_10 = arith.constant 0 : index
    %c128 = arith.constant 128 : index
    %16 = vector.load %arg7[%c0_10, %c128] : memref<8x768xf32, #tpu.memory_space<vmem>>, vector<8x128xf32>
    tpu.vector_store %arg7[%c0_10, %c128], %15 {strides = array<i32>} : memref<8x768xf32, #tpu.memory_space<vmem>>, vector<8x128xf32>,
    %17 = vector.extract_strided_slice %0 {offsets = [0, 1], sizes = [8, 1], strides = [1, 1]} : vector<8x8xf32> to vector<8x1xf32>
    %18 = vector.broadcast %17 : vector<8x1xf32> to vector<8x128xf32>
    %19 = arith.mulf %10, %18 : vector<8x128xf32>
    %c0_11 = arith.constant 0 : index
    %c256 = arith.constant 256 : index
    %20 = vector.load %arg7[%c0_11, %c256] : memref<8x768xf32, #tpu.memory_space<vmem>>, vector<8x128xf32>
    tpu.vector_store %arg7[%c0_11, %c256], %19 {strides = array<i32>} : memref<8x768xf32, #tpu.memory_space<vmem>>, vector<8x128xf32>,
    %21 = vector.extract_strided_slice %0 {offsets = [0, 2], sizes = [8, 1], strides = [1, 1]} : vector<8x8xf32> to vector<8x1xf32>
    %22 = vector.broadcast %21 : vector<8x1xf32> to vector<8x128xf32>
    %23 = arith.mulf %10, %22 : vector<8x128xf32>
    %c0_12 = arith.constant 0 : index
    %c384 = arith.constant 384 : index
    %24 = vector.load %arg7[%c0_12, %c384] : memref<8x768xf32, #tpu.memory_space<vmem>>, vector<8x128xf32>
    tpu.vector_store %arg7[%c0_12, %c384], %23 {strides = array<i32>} : memref<8x768xf32, #tpu.memory_space<vmem>>, vector<8x128xf32>,
    %25 = vector.extract_strided_slice %0 {offsets = [0, 3], sizes = [8, 1], strides = [1, 1]} : vector<8x8xf32> to vector<8x1xf32>
    %26 = vector.broadcast %25 : vector<8x1xf32> to vector<8x128xf32>
    %27 = arith.mulf %10, %26 : vector<8x128xf32>
    %c0_13 = arith.constant 0 : index
    %c512 = arith.constant 512 : index
    %28 = vector.load %arg7[%c0_13, %c512] : memref<8x768xf32, #tpu.memory_space<vmem>>, vector<8x128xf32>
    tpu.vector_store %arg7[%c0_13, %c512], %27 {strides = array<i32>} : memref<8x768xf32, #tpu.memory_space<vmem>>, vector<8x128xf32>,
    %29 = vector.extract_strided_slice %0 {offsets = [0, 4], sizes = [8, 1], strides = [1, 1]} : vector<8x8xf32> to vector<8x1xf32>
    %30 = vector.broadcast %29 : vector<8x1xf32> to vector<8x128xf32>
    %31 = arith.mulf %10, %30 : vector<8x128xf32>
    %c0_14 = arith.constant 0 : index
    %c640 = arith.constant 640 : index
    %32 = vector.load %arg7[%c0_14, %c640] : memref<8x768xf32, #tpu.memory_space<vmem>>, vector<8x128xf32>
    tpu.vector_store %arg7[%c0_14, %c640], %31 {strides = array<i32>} : memref<8x768xf32, #tpu.memory_space<vmem>>, vector<8x128xf32>,
    %c0_15 = arith.constant 0 : index
    %c0_16 = arith.constant 0 : index
    %c0_17 = arith.constant 0 : index
    %33 = vector.load %arg3[%c0_15, %c0_16, %c0_17] : memref<9x8x8xf32, #tpu.memory_space<vmem>>, vector<1x8x8xf32>
    %34 = vector.shape_cast %33 : vector<1x8x8xf32> to vector<8x8xf32>
    %c0_18 = arith.constant 0 : index
    %c0_19 = arith.constant 0 : index
    %35 = vector.load %arg7[%c0_18, %c0_19] : memref<8x768xf32, #tpu.memory_space<vmem>>, vector<8x768xf32>
    %cst_20 = arith.constant dense<0.000000e+00> : vector<8x768xf32>
    %36 = tpu.matmul %34, %35, %cst_20 {dimension_numbers = #tpu.dot_dimension_numbers<[1], [0], [0], [1], [0, 0, 1, 1], [], []>} : vector<8x8xf32>, vector<8x768xf32>, vector<8x768xf32> -> vector<8x768xf32>
    %37 = vector.extract_strided_slice %36 {offsets = [0, 0], sizes = [8, 128], strides = [1, 1]} : vector<8x768xf32> to vector<8x128xf32>
    %c0_21 = arith.constant 0 : index
    %c1 = arith.constant 1 : index
    %38 = vector.load %arg4[%c0_21, %c1] : memref<8x10xf32, #tpu.memory_space<vmem>>, vector<8x1xf32>
    %39 = vector.broadcast %38 : vector<8x1xf32> to vector<8x128xf32>
    %40 = arith.addf %37, %39 : vector<8x128xf32>
    %cst_22 = arith.constant 0.000000e+00 : f32
    %41 = vector.broadcast %cst_22 : f32 to vector<8x128xf32>
    %42 = arith.cmpf ogt, %40, %41 : vector<8x128xf32>
    %cst_23 = arith.constant 1.000000e+00 : f32
    %cst_24 = arith.constant 0.00999999977 : f32
    %43 = vector.broadcast %cst_23 : f32 to vector<8x128xf32>
    %44 = vector.broadcast %cst_24 : f32 to vector<8x128xf32>
    %45 = arith.select %42, %43, %44 : vector<8x128xi1>, vector<8x128xf32>
    %46 = arith.mulf %40, %45 : vector<8x128xf32>
    %c0_25 = arith.constant 0 : index
    %c0_26 = arith.constant 0 : index
    %47 = vector.load %arg7[%c0_25, %c0_26] : memref<8x768xf32, #tpu.memory_space<vmem>>, vector<8x128xf32>
    tpu.vector_store %arg7[%c0_25, %c0_26], %46 {strides = array<i32>} : memref<8x768xf32, #tpu.memory_space<vmem>>, vector<8x128xf32>,
    %48 = vector.extract_strided_slice %36 {offsets = [0, 128], sizes = [8, 128], strides = [1, 1]} : vector<8x768xf32> to vector<8x128xf32>
    %49 = arith.mulf %48, %45 : vector<8x128xf32>
    %c0_27 = arith.constant 0 : index
    %c128_28 = arith.constant 128 : index
    %50 = vector.load %arg7[%c0_27, %c128_28] : memref<8x768xf32, #tpu.memory_space<vmem>>, vector<8x128xf32>
    tpu.vector_store %arg7[%c0_27, %c128_28], %49 {strides = array<i32>} : memref<8x768xf32, #tpu.memory_space<vmem>>, vector<8x128xf32>,
    %51 = vector.extract_strided_slice %36 {offsets = [0, 256], sizes = [8, 128], strides = [1, 1]} : vector<8x768xf32> to vector<8x128xf32>
    %52 = arith.mulf %51, %45 : vector<8x128xf32>
    %c0_29 = arith.constant 0 : index
    %c256_30 = arith.constant 256 : index
    %53 = vector.load %arg7[%c0_29, %c256_30] : memref<8x768xf32, #tpu.memory_space<vmem>>, vector<8x128xf32>
    tpu.vector_store %arg7[%c0_29, %c256_30], %52 {strides = array<i32>} : memref<8x768xf32, #tpu.memory_space<vmem>>, vector<8x128xf32>,
    %54 = vector.extract_strided_slice %36 {offsets = [0, 384], sizes = [8, 128], strides = [1, 1]} : vector<8x768xf32> to vector<8x128xf32>
    %55 = arith.mulf %54, %45 : vector<8x128xf32>
    %c0_31 = arith.constant 0 : index
    %c384_32 = arith.constant 384 : index
    %56 = vector.load %arg7[%c0_31, %c384_32] : memref<8x768xf32, #tpu.memory_space<vmem>>, vector<8x128xf32>
    tpu.vector_store %arg7[%c0_31, %c384_32], %55 {strides = array<i32>} : memref<8x768xf32, #tpu.memory_space<vmem>>, vector<8x128xf32>,
    %57 = vector.extract_strided_slice %36 {offsets = [0, 512], sizes = [8, 128], strides = [1, 1]} : vector<8x768xf32> to vector<8x128xf32>
    %58 = arith.mulf %57, %45 : vector<8x128xf32>
    %c0_33 = arith.constant 0 : index
    %c512_34 = arith.constant 512 : index
    %59 = vector.load %arg7[%c0_33, %c512_34] : memref<8x768xf32, #tpu.memory_space<vmem>>, vector<8x128xf32>
    tpu.vector_store %arg7[%c0_33, %c512_34], %58 {strides = array<i32>} : memref<8x768xf32, #tpu.memory_space<vmem>>, vector<8x128xf32>,
    %60 = vector.extract_strided_slice %36 {offsets = [0, 640], sizes = [8, 128], strides = [1, 1]} : vector<8x768xf32> to vector<8x128xf32>
    %61 = arith.mulf %60, %45 : vector<8x128xf32>
    %c0_35 = arith.constant 0 : index
    %c640_36 = arith.constant 640 : index
    %62 = vector.load %arg7[%c0_35, %c640_36] : memref<8x768xf32, #tpu.memory_space<vmem>>, vector<8x128xf32>
    tpu.vector_store %arg7[%c0_35, %c640_36], %61 {strides = array<i32>} : memref<8x768xf32, #tpu.memory_space<vmem>>, vector<8x128xf32>,
    %c1_37 = arith.constant 1 : index
    %c0_38 = arith.constant 0 : index
    %c0_39 = arith.constant 0 : index
    %63 = vector.load %arg3[%c1_37, %c0_38, %c0_39] : memref<9x8x8xf32, #tpu.memory_space<vmem>>, vector<1x8x8xf32>
    %64 = vector.shape_cast %63 : vector<1x8x8xf32> to vector<8x8xf32>
    %c0_40 = arith.constant 0 : index
    %c0_41 = arith.constant 0 : index
    %65 = vector.load %arg7[%c0_40, %c0_41] : memref<8x768xf32, #tpu.memory_space<vmem>>, vector<8x768xf32>
    %cst_42 = arith.constant dense<0.000000e+00> : vector<8x768xf32>
    %66 = tpu.matmul %64, %65, %cst_42 {dimension_numbers = #tpu.dot_dimension_numbers<[1], [0], [0], [1], [0, 0, 1, 1], [], []>} : vector<8x8xf32>, vector<8x768xf32>, vector<8x768xf32> -> vector<8x768xf32>
    %67 = vector.extract_strided_slice %66 {offsets = [0, 0], sizes = [8, 128], strides = [1, 1]} : vector<8x768xf32> to vector<8x128xf32>
    %c0_43 = arith.constant 0 : index
    %c2 = arith.constant 2 : index
    %68 = vector.load %arg4[%c0_43, %c2] : memref<8x10xf32, #tpu.memory_space<vmem>>, vector<8x1xf32>
    %69 = vector.broadcast %68 : vector<8x1xf32> to vector<8x128xf32>
    %70 = arith.addf %67, %69 : vector<8x128xf32>
    %cst_44 = arith.constant 0.000000e+00 : f32
    %71 = vector.broadcast %cst_44 : f32 to vector<8x128xf32>
    %72 = arith.cmpf ogt, %70, %71 : vector<8x128xf32>
    %cst_45 = arith.constant 1.000000e+00 : f32
    %cst_46 = arith.constant 0.00999999977 : f32
    %73 = vector.broadcast %cst_45 : f32 to vector<8x128xf32>
    %74 = vector.broadcast %cst_46 : f32 to vector<8x128xf32>
    %75 = arith.select %72, %73, %74 : vector<8x128xi1>, vector<8x128xf32>
    %76 = arith.mulf %70, %75 : vector<8x128xf32>
    %c0_47 = arith.constant 0 : index
    %c0_48 = arith.constant 0 : index
    %77 = vector.load %arg7[%c0_47, %c0_48] : memref<8x768xf32, #tpu.memory_space<vmem>>, vector<8x128xf32>
    tpu.vector_store %arg7[%c0_47, %c0_48], %76 {strides = array<i32>} : memref<8x768xf32, #tpu.memory_space<vmem>>, vector<8x128xf32>,
    %78 = vector.extract_strided_slice %66 {offsets = [0, 128], sizes = [8, 128], strides = [1, 1]} : vector<8x768xf32> to vector<8x128xf32>
    %79 = arith.mulf %78, %75 : vector<8x128xf32>
    %c0_49 = arith.constant 0 : index
    %c128_50 = arith.constant 128 : index
    %80 = vector.load %arg7[%c0_49, %c128_50] : memref<8x768xf32, #tpu.memory_space<vmem>>, vector<8x128xf32>
    tpu.vector_store %arg7[%c0_49, %c128_50], %79 {strides = array<i32>} : memref<8x768xf32, #tpu.memory_space<vmem>>, vector<8x128xf32>,
    %81 = vector.extract_strided_slice %66 {offsets = [0, 256], sizes = [8, 128], strides = [1, 1]} : vector<8x768xf32> to vector<8x128xf32>
    %82 = arith.mulf %81, %75 : vector<8x128xf32>
    %c0_51 = arith.constant 0 : index
    %c256_52 = arith.constant 256 : index
    %83 = vector.load %arg7[%c0_51, %c256_52] : memref<8x768xf32, #tpu.memory_space<vmem>>, vector<8x128xf32>
    tpu.vector_store %arg7[%c0_51, %c256_52], %82 {strides = array<i32>} : memref<8x768xf32, #tpu.memory_space<vmem>>, vector<8x128xf32>,
    %84 = vector.extract_strided_slice %66 {offsets = [0, 384], sizes = [8, 128], strides = [1, 1]} : vector<8x768xf32> to vector<8x128xf32>
    %85 = arith.mulf %84, %75 : vector<8x128xf32>
    %c0_53 = arith.constant 0 : index
    %c384_54 = arith.constant 384 : index
    %86 = vector.load %arg7[%c0_53, %c384_54] : memref<8x768xf32, #tpu.memory_space<vmem>>, vector<8x128xf32>
    tpu.vector_store %arg7[%c0_53, %c384_54], %85 {strides = array<i32>} : memref<8x768xf32, #tpu.memory_space<vmem>>, vector<8x128xf32>,
    %87 = vector.extract_strided_slice %66 {offsets = [0, 512], sizes = [8, 128], strides = [1, 1]} : vector<8x768xf32> to vector<8x128xf32>
    %88 = arith.mulf %87, %75 : vector<8x128xf32>
    %c0_55 = arith.constant 0 : index
    %c512_56 = arith.constant 512 : index
    %89 = vector.load %arg7[%c0_55, %c512_56] : memref<8x768xf32, #tpu.memory_space<vmem>>, vector<8x128xf32>
    tpu.vector_store %arg7[%c0_55, %c512_56], %88 {strides = array<i32>} : memref<8x768xf32, #tpu.memory_space<vmem>>, vector<8x128xf32>,
    %90 = vector.extract_strided_slice %66 {offsets = [0, 640], sizes = [8, 128], strides = [1, 1]} : vector<8x768xf32> to vector<8x128xf32>
    %91 = arith.mulf %90, %75 : vector<8x128xf32>
    %c0_57 = arith.constant 0 : index
    %c640_58 = arith.constant 640 : index
    %92 = vector.load %arg7[%c0_57, %c640_58] : memref<8x768xf32, #tpu.memory_space<vmem>>, vector<8x128xf32>
    tpu.vector_store %arg7[%c0_57, %c640_58], %91 {strides = array<i32>} : memref<8x768xf32, #tpu.memory_space<vmem>>, vector<8x128xf32>,
    %c2_59 = arith.constant 2 : index
    %c0_60 = arith.constant 0 : index
    %c0_61 = arith.constant 0 : index
    %93 = vector.load %arg3[%c2_59, %c0_60, %c0_61] : memref<9x8x8xf32, #tpu.memory_space<vmem>>, vector<1x8x8xf32>
    %94 = vector.shape_cast %93 : vector<1x8x8xf32> to vector<8x8xf32>
    %c0_62 = arith.constant 0 : index
    %c0_63 = arith.constant 0 : index
    %95 = vector.load %arg7[%c0_62, %c0_63] : memref<8x768xf32, #tpu.memory_space<vmem>>, vector<8x768xf32>
    %cst_64 = arith.constant dense<0.000000e+00> : vector<8x768xf32>
    %96 = tpu.matmul %94, %95, %cst_64 {dimension_numbers = #tpu.dot_dimension_numbers<[1], [0], [0], [1], [0, 0, 1, 1], [], []>} : vector<8x8xf32>, vector<8x768xf32>, vector<8x768xf32> -> vector<8x768xf32>
    %97 = vector.extract_strided_slice %96 {offsets = [0, 0], sizes = [8, 128], strides = [1, 1]} : vector<8x768xf32> to vector<8x128xf32>
    %c0_65 = arith.constant 0 : index
    %c3 = arith.constant 3 : index
    %98 = vector.load %arg4[%c0_65, %c3] : memref<8x10xf32, #tpu.memory_space<vmem>>, vector<8x1xf32>
    %99 = vector.broadcast %98 : vector<8x1xf32> to vector<8x128xf32>
    %100 = arith.addf %97, %99 : vector<8x128xf32>
    %cst_66 = arith.constant 0.000000e+00 : f32
    %101 = vector.broadcast %cst_66 : f32 to vector<8x128xf32>
    %102 = arith.cmpf ogt, %100, %101 : vector<8x128xf32>
    %cst_67 = arith.constant 1.000000e+00 : f32
    %cst_68 = arith.constant 0.00999999977 : f32
    %103 = vector.broadcast %cst_67 : f32 to vector<8x128xf32>
    %104 = vector.broadcast %cst_68 : f32 to vector<8x128xf32>
    %105 = arith.select %102, %103, %104 : vector<8x128xi1>, vector<8x128xf32>
    %106 = arith.mulf %100, %105 : vector<8x128xf32>
    %c0_69 = arith.constant 0 : index
    %c0_70 = arith.constant 0 : index
    %107 = vector.load %arg7[%c0_69, %c0_70] : memref<8x768xf32, #tpu.memory_space<vmem>>, vector<8x128xf32>
    tpu.vector_store %arg7[%c0_69, %c0_70], %106 {strides = array<i32>} : memref<8x768xf32, #tpu.memory_space<vmem>>, vector<8x128xf32>,
    %108 = vector.extract_strided_slice %96 {offsets = [0, 128], sizes = [8, 128], strides = [1, 1]} : vector<8x768xf32> to vector<8x128xf32>
    %109 = arith.mulf %108, %105 : vector<8x128xf32>
    %c0_71 = arith.constant 0 : index
    %c128_72 = arith.constant 128 : index
    %110 = vector.load %arg7[%c0_71, %c128_72] : memref<8x768xf32, #tpu.memory_space<vmem>>, vector<8x128xf32>
    tpu.vector_store %arg7[%c0_71, %c128_72], %109 {strides = array<i32>} : memref<8x768xf32, #tpu.memory_space<vmem>>, vector<8x128xf32>,
    %111 = vector.extract_strided_slice %96 {offsets = [0, 256], sizes = [8, 128], strides = [1, 1]} : vector<8x768xf32> to vector<8x128xf32>
    %112 = arith.mulf %111, %105 : vector<8x128xf32>
    %c0_73 = arith.constant 0 : index
    %c256_74 = arith.constant 256 : index
    %113 = vector.load %arg7[%c0_73, %c256_74] : memref<8x768xf32, #tpu.memory_space<vmem>>, vector<8x128xf32>
    tpu.vector_store %arg7[%c0_73, %c256_74], %112 {strides = array<i32>} : memref<8x768xf32, #tpu.memory_space<vmem>>, vector<8x128xf32>,
    %114 = vector.extract_strided_slice %96 {offsets = [0, 384], sizes = [8, 128], strides = [1, 1]} : vector<8x768xf32> to vector<8x128xf32>
    %115 = arith.mulf %114, %105 : vector<8x128xf32>
    %c0_75 = arith.constant 0 : index
    %c384_76 = arith.constant 384 : index
    %116 = vector.load %arg7[%c0_75, %c384_76] : memref<8x768xf32, #tpu.memory_space<vmem>>, vector<8x128xf32>
    tpu.vector_store %arg7[%c0_75, %c384_76], %115 {strides = array<i32>} : memref<8x768xf32, #tpu.memory_space<vmem>>, vector<8x128xf32>,
    %117 = vector.extract_strided_slice %96 {offsets = [0, 512], sizes = [8, 128], strides = [1, 1]} : vector<8x768xf32> to vector<8x128xf32>
    %118 = arith.mulf %117, %105 : vector<8x128xf32>
    %c0_77 = arith.constant 0 : index
    %c512_78 = arith.constant 512 : index
    %119 = vector.load %arg7[%c0_77, %c512_78] : memref<8x768xf32, #tpu.memory_space<vmem>>, vector<8x128xf32>
    tpu.vector_store %arg7[%c0_77, %c512_78], %118 {strides = array<i32>} : memref<8x768xf32, #tpu.memory_space<vmem>>, vector<8x128xf32>,
    %120 = vector.extract_strided_slice %96 {offsets = [0, 640], sizes = [8, 128], strides = [1, 1]} : vector<8x768xf32> to vector<8x128xf32>
    %121 = arith.mulf %120, %105 : vector<8x128xf32>
    %c0_79 = arith.constant 0 : index
    %c640_80 = arith.constant 640 : index
    %122 = vector.load %arg7[%c0_79, %c640_80] : memref<8x768xf32, #tpu.memory_space<vmem>>, vector<8x128xf32>
    tpu.vector_store %arg7[%c0_79, %c640_80], %121 {strides = array<i32>} : memref<8x768xf32, #tpu.memory_space<vmem>>, vector<8x128xf32>,
    %c3_81 = arith.constant 3 : index
    %c0_82 = arith.constant 0 : index
    %c0_83 = arith.constant 0 : index
    %123 = vector.load %arg3[%c3_81, %c0_82, %c0_83] : memref<9x8x8xf32, #tpu.memory_space<vmem>>, vector<1x8x8xf32>
    %124 = vector.shape_cast %123 : vector<1x8x8xf32> to vector<8x8xf32>
    %c0_84 = arith.constant 0 : index
    %c0_85 = arith.constant 0 : index
    %125 = vector.load %arg7[%c0_84, %c0_85] : memref<8x768xf32, #tpu.memory_space<vmem>>, vector<8x768xf32>
    %cst_86 = arith.constant dense<0.000000e+00> : vector<8x768xf32>
    %126 = tpu.matmul %124, %125, %cst_86 {dimension_numbers = #tpu.dot_dimension_numbers<[1], [0], [0], [1], [0, 0, 1, 1], [], []>} : vector<8x8xf32>, vector<8x768xf32>, vector<8x768xf32> -> vector<8x768xf32>
    %127 = vector.extract_strided_slice %126 {offsets = [0, 0], sizes = [8, 128], strides = [1, 1]} : vector<8x768xf32> to vector<8x128xf32>
    %c0_87 = arith.constant 0 : index
    %c4 = arith.constant 4 : index
    %128 = vector.load %arg4[%c0_87, %c4] : memref<8x10xf32, #tpu.memory_space<vmem>>, vector<8x1xf32>
    %129 = vector.broadcast %128 : vector<8x1xf32> to vector<8x128xf32>
    %130 = arith.addf %127, %129 : vector<8x128xf32>
    %cst_88 = arith.constant 0.000000e+00 : f32
    %131 = vector.broadcast %cst_88 : f32 to vector<8x128xf32>
    %132 = arith.cmpf ogt, %130, %131 : vector<8x128xf32>
    %cst_89 = arith.constant 1.000000e+00 : f32
    %cst_90 = arith.constant 0.00999999977 : f32
    %133 = vector.broadcast %cst_89 : f32 to vector<8x128xf32>
    %134 = vector.broadcast %cst_90 : f32 to vector<8x128xf32>
    %135 = arith.select %132, %133, %134 : vector<8x128xi1>, vector<8x128xf32>
    %136 = arith.mulf %130, %135 : vector<8x128xf32>
    %c0_91 = arith.constant 0 : index
    %c0_92 = arith.constant 0 : index
    %137 = vector.load %arg7[%c0_91, %c0_92] : memref<8x768xf32, #tpu.memory_space<vmem>>, vector<8x128xf32>
    tpu.vector_store %arg7[%c0_91, %c0_92], %136 {strides = array<i32>} : memref<8x768xf32, #tpu.memory_space<vmem>>, vector<8x128xf32>,
    %138 = vector.extract_strided_slice %126 {offsets = [0, 128], sizes = [8, 128], strides = [1, 1]} : vector<8x768xf32> to vector<8x128xf32>
    %139 = arith.mulf %138, %135 : vector<8x128xf32>
    %c0_93 = arith.constant 0 : index
    %c128_94 = arith.constant 128 : index
    %140 = vector.load %arg7[%c0_93, %c128_94] : memref<8x768xf32, #tpu.memory_space<vmem>>, vector<8x128xf32>
    tpu.vector_store %arg7[%c0_93, %c128_94], %139 {strides = array<i32>} : memref<8x768xf32, #tpu.memory_space<vmem>>, vector<8x128xf32>,
    %141 = vector.extract_strided_slice %126 {offsets = [0, 256], sizes = [8, 128], strides = [1, 1]} : vector<8x768xf32> to vector<8x128xf32>
    %142 = arith.mulf %141, %135 : vector<8x128xf32>
    %c0_95 = arith.constant 0 : index
    %c256_96 = arith.constant 256 : index
    %143 = vector.load %arg7[%c0_95, %c256_96] : memref<8x768xf32, #tpu.memory_space<vmem>>, vector<8x128xf32>
    tpu.vector_store %arg7[%c0_95, %c256_96], %142 {strides = array<i32>} : memref<8x768xf32, #tpu.memory_space<vmem>>, vector<8x128xf32>,
    %144 = vector.extract_strided_slice %126 {offsets = [0, 384], sizes = [8, 128], strides = [1, 1]} : vector<8x768xf32> to vector<8x128xf32>
    %145 = arith.mulf %144, %135 : vector<8x128xf32>
    %c0_97 = arith.constant 0 : index
    %c384_98 = arith.constant 384 : index
    %146 = vector.load %arg7[%c0_97, %c384_98] : memref<8x768xf32, #tpu.memory_space<vmem>>, vector<8x128xf32>
    tpu.vector_store %arg7[%c0_97, %c384_98], %145 {strides = array<i32>} : memref<8x768xf32, #tpu.memory_space<vmem>>, vector<8x128xf32>,
    %147 = vector.extract_strided_slice %126 {offsets = [0, 512], sizes = [8, 128], strides = [1, 1]} : vector<8x768xf32> to vector<8x128xf32>
    %148 = arith.mulf %147, %135 : vector<8x128xf32>
    %c0_99 = arith.constant 0 : index
    %c512_100 = arith.constant 512 : index
    %149 = vector.load %arg7[%c0_99, %c512_100] : memref<8x768xf32, #tpu.memory_space<vmem>>, vector<8x128xf32>
    tpu.vector_store %arg7[%c0_99, %c512_100], %148 {strides = array<i32>} : memref<8x768xf32, #tpu.memory_space<vmem>>, vector<8x128xf32>,
    %150 = vector.extract_strided_slice %126 {offsets = [0, 640], sizes = [8, 128], strides = [1, 1]} : vector<8x768xf32> to vector<8x128xf32>
    %151 = arith.mulf %150, %135 : vector<8x128xf32>
    %c0_101 = arith.constant 0 : index
    %c640_102 = arith.constant 640 : index
    %152 = vector.load %arg7[%c0_101, %c640_102] : memref<8x768xf32, #tpu.memory_space<vmem>>, vector<8x128xf32>
    tpu.vector_store %arg7[%c0_101, %c640_102], %151 {strides = array<i32>} : memref<8x768xf32, #tpu.memory_space<vmem>>, vector<8x128xf32>,
    %c4_103 = arith.constant 4 : index
    %c0_104 = arith.constant 0 : index
    %c0_105 = arith.constant 0 : index
    %153 = vector.load %arg3[%c4_103, %c0_104, %c0_105] : memref<9x8x8xf32, #tpu.memory_space<vmem>>, vector<1x8x8xf32>
    %154 = vector.shape_cast %153 : vector<1x8x8xf32> to vector<8x8xf32>
    %c0_106 = arith.constant 0 : index
    %c0_107 = arith.constant 0 : index
    %155 = vector.load %arg7[%c0_106, %c0_107] : memref<8x768xf32, #tpu.memory_space<vmem>>, vector<8x768xf32>
    %cst_108 = arith.constant dense<0.000000e+00> : vector<8x768xf32>
    %156 = tpu.matmul %154, %155, %cst_108 {dimension_numbers = #tpu.dot_dimension_numbers<[1], [0], [0], [1], [0, 0, 1, 1], [], []>} : vector<8x8xf32>, vector<8x768xf32>, vector<8x768xf32> -> vector<8x768xf32>
    %157 = vector.extract_strided_slice %156 {offsets = [0, 0], sizes = [8, 128], strides = [1, 1]} : vector<8x768xf32> to vector<8x128xf32>
    %c0_109 = arith.constant 0 : index
    %c5 = arith.constant 5 : index
    %158 = vector.load %arg4[%c0_109, %c5] : memref<8x10xf32, #tpu.memory_space<vmem>>, vector<8x1xf32>
    %159 = vector.broadcast %158 : vector<8x1xf32> to vector<8x128xf32>
    %160 = arith.addf %157, %159 : vector<8x128xf32>
    %cst_110 = arith.constant 0.000000e+00 : f32
    %161 = vector.broadcast %cst_110 : f32 to vector<8x128xf32>
    %162 = arith.cmpf ogt, %160, %161 : vector<8x128xf32>
    %cst_111 = arith.constant 1.000000e+00 : f32
    %cst_112 = arith.constant 0.00999999977 : f32
    %163 = vector.broadcast %cst_111 : f32 to vector<8x128xf32>
    %164 = vector.broadcast %cst_112 : f32 to vector<8x128xf32>
    %165 = arith.select %162, %163, %164 : vector<8x128xi1>, vector<8x128xf32>
    %166 = arith.mulf %160, %165 : vector<8x128xf32>
    %c0_113 = arith.constant 0 : index
    %c0_114 = arith.constant 0 : index
    %167 = vector.load %arg7[%c0_113, %c0_114] : memref<8x768xf32, #tpu.memory_space<vmem>>, vector<8x128xf32>
    tpu.vector_store %arg7[%c0_113, %c0_114], %166 {strides = array<i32>} : memref<8x768xf32, #tpu.memory_space<vmem>>, vector<8x128xf32>,
    %168 = vector.extract_strided_slice %156 {offsets = [0, 128], sizes = [8, 128], strides = [1, 1]} : vector<8x768xf32> to vector<8x128xf32>
    %169 = arith.mulf %168, %165 : vector<8x128xf32>
    %c0_115 = arith.constant 0 : index
    %c128_116 = arith.constant 128 : index
    %170 = vector.load %arg7[%c0_115, %c128_116] : memref<8x768xf32, #tpu.memory_space<vmem>>, vector<8x128xf32>
    tpu.vector_store %arg7[%c0_115, %c128_116], %169 {strides = array<i32>} : memref<8x768xf32, #tpu.memory_space<vmem>>, vector<8x128xf32>,
    %171 = vector.extract_strided_slice %156 {offsets = [0, 256], sizes = [8, 128], strides = [1, 1]} : vector<8x768xf32> to vector<8x128xf32>
    %172 = arith.mulf %171, %165 : vector<8x128xf32>
    %c0_117 = arith.constant 0 : index
    %c256_118 = arith.constant 256 : index
    %173 = vector.load %arg7[%c0_117, %c256_118] : memref<8x768xf32, #tpu.memory_space<vmem>>, vector<8x128xf32>
    tpu.vector_store %arg7[%c0_117, %c256_118], %172 {strides = array<i32>} : memref<8x768xf32, #tpu.memory_space<vmem>>, vector<8x128xf32>,
    %174 = vector.extract_strided_slice %156 {offsets = [0, 384], sizes = [8, 128], strides = [1, 1]} : vector<8x768xf32> to vector<8x128xf32>
    %175 = arith.mulf %174, %165 : vector<8x128xf32>
    %c0_119 = arith.constant 0 : index
    %c384_120 = arith.constant 384 : index
    %176 = vector.load %arg7[%c0_119, %c384_120] : memref<8x768xf32, #tpu.memory_space<vmem>>, vector<8x128xf32>
    tpu.vector_store %arg7[%c0_119, %c384_120], %175 {strides = array<i32>} : memref<8x768xf32, #tpu.memory_space<vmem>>, vector<8x128xf32>,
    %177 = vector.extract_strided_slice %156 {offsets = [0, 512], sizes = [8, 128], strides = [1, 1]} : vector<8x768xf32> to vector<8x128xf32>
    %178 = arith.mulf %177, %165 : vector<8x128xf32>
    %c0_121 = arith.constant 0 : index
    %c512_122 = arith.constant 512 : index
    %179 = vector.load %arg7[%c0_121, %c512_122] : memref<8x768xf32, #tpu.memory_space<vmem>>, vector<8x128xf32>
    tpu.vector_store %arg7[%c0_121, %c512_122], %178 {strides = array<i32>} : memref<8x768xf32, #tpu.memory_space<vmem>>, vector<8x128xf32>,
    %180 = vector.extract_strided_slice %156 {offsets = [0, 640], sizes = [8, 128], strides = [1, 1]} : vector<8x768xf32> to vector<8x128xf32>
    %181 = arith.mulf %180, %165 : vector<8x128xf32>
    %c0_123 = arith.constant 0 : index
    %c640_124 = arith.constant 640 : index
    %182 = vector.load %arg7[%c0_123, %c640_124] : memref<8x768xf32, #tpu.memory_space<vmem>>, vector<8x128xf32>
    tpu.vector_store %arg7[%c0_123, %c640_124], %181 {strides = array<i32>} : memref<8x768xf32, #tpu.memory_space<vmem>>, vector<8x128xf32>,
    %c5_125 = arith.constant 5 : index
    %c0_126 = arith.constant 0 : index
    %c0_127 = arith.constant 0 : index
    %183 = vector.load %arg3[%c5_125, %c0_126, %c0_127] : memref<9x8x8xf32, #tpu.memory_space<vmem>>, vector<1x8x8xf32>
    %184 = vector.shape_cast %183 : vector<1x8x8xf32> to vector<8x8xf32>
    %c0_128 = arith.constant 0 : index
    %c0_129 = arith.constant 0 : index
    %185 = vector.load %arg7[%c0_128, %c0_129] : memref<8x768xf32, #tpu.memory_space<vmem>>, vector<8x768xf32>
    %cst_130 = arith.constant dense<0.000000e+00> : vector<8x768xf32>
    %186 = tpu.matmul %184, %185, %cst_130 {dimension_numbers = #tpu.dot_dimension_numbers<[1], [0], [0], [1], [0, 0, 1, 1], [], []>} : vector<8x8xf32>, vector<8x768xf32>, vector<8x768xf32> -> vector<8x768xf32>
    %187 = vector.extract_strided_slice %186 {offsets = [0, 0], sizes = [8, 128], strides = [1, 1]} : vector<8x768xf32> to vector<8x128xf32>
    %c0_131 = arith.constant 0 : index
    %c6 = arith.constant 6 : index
    %188 = vector.load %arg4[%c0_131, %c6] : memref<8x10xf32, #tpu.memory_space<vmem>>, vector<8x1xf32>
    %189 = vector.broadcast %188 : vector<8x1xf32> to vector<8x128xf32>
    %190 = arith.addf %187, %189 : vector<8x128xf32>
    %cst_132 = arith.constant 0.000000e+00 : f32
    %191 = vector.broadcast %cst_132 : f32 to vector<8x128xf32>
    %192 = arith.cmpf ogt, %190, %191 : vector<8x128xf32>
    %cst_133 = arith.constant 1.000000e+00 : f32
    %cst_134 = arith.constant 0.00999999977 : f32
    %193 = vector.broadcast %cst_133 : f32 to vector<8x128xf32>
    %194 = vector.broadcast %cst_134 : f32 to vector<8x128xf32>
    %195 = arith.select %192, %193, %194 : vector<8x128xi1>, vector<8x128xf32>
    %196 = arith.mulf %190, %195 : vector<8x128xf32>
    %c0_135 = arith.constant 0 : index
    %c0_136 = arith.constant 0 : index
    %197 = vector.load %arg7[%c0_135, %c0_136] : memref<8x768xf32, #tpu.memory_space<vmem>>, vector<8x128xf32>
    tpu.vector_store %arg7[%c0_135, %c0_136], %196 {strides = array<i32>} : memref<8x768xf32, #tpu.memory_space<vmem>>, vector<8x128xf32>,
    %198 = vector.extract_strided_slice %186 {offsets = [0, 128], sizes = [8, 128], strides = [1, 1]} : vector<8x768xf32> to vector<8x128xf32>
    %199 = arith.mulf %198, %195 : vector<8x128xf32>
    %c0_137 = arith.constant 0 : index
    %c128_138 = arith.constant 128 : index
    %200 = vector.load %arg7[%c0_137, %c128_138] : memref<8x768xf32, #tpu.memory_space<vmem>>, vector<8x128xf32>
    tpu.vector_store %arg7[%c0_137, %c128_138], %199 {strides = array<i32>} : memref<8x768xf32, #tpu.memory_space<vmem>>, vector<8x128xf32>,
    %201 = vector.extract_strided_slice %186 {offsets = [0, 256], sizes = [8, 128], strides = [1, 1]} : vector<8x768xf32> to vector<8x128xf32>
    %202 = arith.mulf %201, %195 : vector<8x128xf32>
    %c0_139 = arith.constant 0 : index
    %c256_140 = arith.constant 256 : index
    %203 = vector.load %arg7[%c0_139, %c256_140] : memref<8x768xf32, #tpu.memory_space<vmem>>, vector<8x128xf32>
    tpu.vector_store %arg7[%c0_139, %c256_140], %202 {strides = array<i32>} : memref<8x768xf32, #tpu.memory_space<vmem>>, vector<8x128xf32>,
    %204 = vector.extract_strided_slice %186 {offsets = [0, 384], sizes = [8, 128], strides = [1, 1]} : vector<8x768xf32> to vector<8x128xf32>
    %205 = arith.mulf %204, %195 : vector<8x128xf32>
    %c0_141 = arith.constant 0 : index
    %c384_142 = arith.constant 384 : index
    %206 = vector.load %arg7[%c0_141, %c384_142] : memref<8x768xf32, #tpu.memory_space<vmem>>, vector<8x128xf32>
    tpu.vector_store %arg7[%c0_141, %c384_142], %205 {strides = array<i32>} : memref<8x768xf32, #tpu.memory_space<vmem>>, vector<8x128xf32>,
    %207 = vector.extract_strided_slice %186 {offsets = [0, 512], sizes = [8, 128], strides = [1, 1]} : vector<8x768xf32> to vector<8x128xf32>
    %208 = arith.mulf %207, %195 : vector<8x128xf32>
    %c0_143 = arith.constant 0 : index
    %c512_144 = arith.constant 512 : index
    %209 = vector.load %arg7[%c0_143, %c512_144] : memref<8x768xf32, #tpu.memory_space<vmem>>, vector<8x128xf32>
    tpu.vector_store %arg7[%c0_143, %c512_144], %208 {strides = array<i32>} : memref<8x768xf32, #tpu.memory_space<vmem>>, vector<8x128xf32>,
    %210 = vector.extract_strided_slice %186 {offsets = [0, 640], sizes = [8, 128], strides = [1, 1]} : vector<8x768xf32> to vector<8x128xf32>
    %211 = arith.mulf %210, %195 : vector<8x128xf32>
    %c0_145 = arith.constant 0 : index
    %c640_146 = arith.constant 640 : index
    %212 = vector.load %arg7[%c0_145, %c640_146] : memref<8x768xf32, #tpu.memory_space<vmem>>, vector<8x128xf32>
    tpu.vector_store %arg7[%c0_145, %c640_146], %211 {strides = array<i32>} : memref<8x768xf32, #tpu.memory_space<vmem>>, vector<8x128xf32>,
    %c6_147 = arith.constant 6 : index
    %c0_148 = arith.constant 0 : index
    %c0_149 = arith.constant 0 : index
    %213 = vector.load %arg3[%c6_147, %c0_148, %c0_149] : memref<9x8x8xf32, #tpu.memory_space<vmem>>, vector<1x8x8xf32>
    %214 = vector.shape_cast %213 : vector<1x8x8xf32> to vector<8x8xf32>
    %c0_150 = arith.constant 0 : index
    %c0_151 = arith.constant 0 : index
    %215 = vector.load %arg7[%c0_150, %c0_151] : memref<8x768xf32, #tpu.memory_space<vmem>>, vector<8x768xf32>
    %cst_152 = arith.constant dense<0.000000e+00> : vector<8x768xf32>
    %216 = tpu.matmul %214, %215, %cst_152 {dimension_numbers = #tpu.dot_dimension_numbers<[1], [0], [0], [1], [0, 0, 1, 1], [], []>} : vector<8x8xf32>, vector<8x768xf32>, vector<8x768xf32> -> vector<8x768xf32>
    %217 = vector.extract_strided_slice %216 {offsets = [0, 0], sizes = [8, 128], strides = [1, 1]} : vector<8x768xf32> to vector<8x128xf32>
    %c0_153 = arith.constant 0 : index
    %c7 = arith.constant 7 : index
    %218 = vector.load %arg4[%c0_153, %c7] : memref<8x10xf32, #tpu.memory_space<vmem>>, vector<8x1xf32>
    %219 = vector.broadcast %218 : vector<8x1xf32> to vector<8x128xf32>
    %220 = arith.addf %217, %219 : vector<8x128xf32>
    %cst_154 = arith.constant 0.000000e+00 : f32
    %221 = vector.broadcast %cst_154 : f32 to vector<8x128xf32>
    %222 = arith.cmpf ogt, %220, %221 : vector<8x128xf32>
    %cst_155 = arith.constant 1.000000e+00 : f32
    %cst_156 = arith.constant 0.00999999977 : f32
    %223 = vector.broadcast %cst_155 : f32 to vector<8x128xf32>
    %224 = vector.broadcast %cst_156 : f32 to vector<8x128xf32>
    %225 = arith.select %222, %223, %224 : vector<8x128xi1>, vector<8x128xf32>
    %226 = arith.mulf %220, %225 : vector<8x128xf32>
    %c0_157 = arith.constant 0 : index
    %c0_158 = arith.constant 0 : index
    %227 = vector.load %arg7[%c0_157, %c0_158] : memref<8x768xf32, #tpu.memory_space<vmem>>, vector<8x128xf32>
    tpu.vector_store %arg7[%c0_157, %c0_158], %226 {strides = array<i32>} : memref<8x768xf32, #tpu.memory_space<vmem>>, vector<8x128xf32>,
    %228 = vector.extract_strided_slice %216 {offsets = [0, 128], sizes = [8, 128], strides = [1, 1]} : vector<8x768xf32> to vector<8x128xf32>
    %229 = arith.mulf %228, %225 : vector<8x128xf32>
    %c0_159 = arith.constant 0 : index
    %c128_160 = arith.constant 128 : index
    %230 = vector.load %arg7[%c0_159, %c128_160] : memref<8x768xf32, #tpu.memory_space<vmem>>, vector<8x128xf32>
    tpu.vector_store %arg7[%c0_159, %c128_160], %229 {strides = array<i32>} : memref<8x768xf32, #tpu.memory_space<vmem>>, vector<8x128xf32>,
    %231 = vector.extract_strided_slice %216 {offsets = [0, 256], sizes = [8, 128], strides = [1, 1]} : vector<8x768xf32> to vector<8x128xf32>
    %232 = arith.mulf %231, %225 : vector<8x128xf32>
    %c0_161 = arith.constant 0 : index
    %c256_162 = arith.constant 256 : index
    %233 = vector.load %arg7[%c0_161, %c256_162] : memref<8x768xf32, #tpu.memory_space<vmem>>, vector<8x128xf32>
    tpu.vector_store %arg7[%c0_161, %c256_162], %232 {strides = array<i32>} : memref<8x768xf32, #tpu.memory_space<vmem>>, vector<8x128xf32>,
    %234 = vector.extract_strided_slice %216 {offsets = [0, 384], sizes = [8, 128], strides = [1, 1]} : vector<8x768xf32> to vector<8x128xf32>
    %235 = arith.mulf %234, %225 : vector<8x128xf32>
    %c0_163 = arith.constant 0 : index
    %c384_164 = arith.constant 384 : index
    %236 = vector.load %arg7[%c0_163, %c384_164] : memref<8x768xf32, #tpu.memory_space<vmem>>, vector<8x128xf32>
    tpu.vector_store %arg7[%c0_163, %c384_164], %235 {strides = array<i32>} : memref<8x768xf32, #tpu.memory_space<vmem>>, vector<8x128xf32>,
    %237 = vector.extract_strided_slice %216 {offsets = [0, 512], sizes = [8, 128], strides = [1, 1]} : vector<8x768xf32> to vector<8x128xf32>
    %238 = arith.mulf %237, %225 : vector<8x128xf32>
    %c0_165 = arith.constant 0 : index
    %c512_166 = arith.constant 512 : index
    %239 = vector.load %arg7[%c0_165, %c512_166] : memref<8x768xf32, #tpu.memory_space<vmem>>, vector<8x128xf32>
    tpu.vector_store %arg7[%c0_165, %c512_166], %238 {strides = array<i32>} : memref<8x768xf32, #tpu.memory_space<vmem>>, vector<8x128xf32>,
    %240 = vector.extract_strided_slice %216 {offsets = [0, 640], sizes = [8, 128], strides = [1, 1]} : vector<8x768xf32> to vector<8x128xf32>
    %241 = arith.mulf %240, %225 : vector<8x128xf32>
    %c0_167 = arith.constant 0 : index
    %c640_168 = arith.constant 640 : index
    %242 = vector.load %arg7[%c0_167, %c640_168] : memref<8x768xf32, #tpu.memory_space<vmem>>, vector<8x128xf32>
    tpu.vector_store %arg7[%c0_167, %c640_168], %241 {strides = array<i32>} : memref<8x768xf32, #tpu.memory_space<vmem>>, vector<8x128xf32>,
    %c7_169 = arith.constant 7 : index
    %c0_170 = arith.constant 0 : index
    %c0_171 = arith.constant 0 : index
    %243 = vector.load %arg3[%c7_169, %c0_170, %c0_171] : memref<9x8x8xf32, #tpu.memory_space<vmem>>, vector<1x8x8xf32>
    %244 = vector.shape_cast %243 : vector<1x8x8xf32> to vector<8x8xf32>
    %c0_172 = arith.constant 0 : index
    %c0_173 = arith.constant 0 : index
    %245 = vector.load %arg7[%c0_172, %c0_173] : memref<8x768xf32, #tpu.memory_space<vmem>>, vector<8x768xf32>
    %cst_174 = arith.constant dense<0.000000e+00> : vector<8x768xf32>
    %246 = tpu.matmul %244, %245, %cst_174 {dimension_numbers = #tpu.dot_dimension_numbers<[1], [0], [0], [1], [0, 0, 1, 1], [], []>} : vector<8x8xf32>, vector<8x768xf32>, vector<8x768xf32> -> vector<8x768xf32>
    %247 = vector.extract_strided_slice %246 {offsets = [0, 0], sizes = [8, 128], strides = [1, 1]} : vector<8x768xf32> to vector<8x128xf32>
    %c0_175 = arith.constant 0 : index
    %c8 = arith.constant 8 : index
    %248 = vector.load %arg4[%c0_175, %c8] : memref<8x10xf32, #tpu.memory_space<vmem>>, vector<8x1xf32>
    %249 = vector.broadcast %248 : vector<8x1xf32> to vector<8x128xf32>
    %250 = arith.addf %247, %249 : vector<8x128xf32>
    %cst_176 = arith.constant 0.000000e+00 : f32
    %251 = vector.broadcast %cst_176 : f32 to vector<8x128xf32>
    %252 = arith.cmpf ogt, %250, %251 : vector<8x128xf32>
    %cst_177 = arith.constant 1.000000e+00 : f32
    %cst_178 = arith.constant 0.00999999977 : f32
    %253 = vector.broadcast %cst_177 : f32 to vector<8x128xf32>
    %254 = vector.broadcast %cst_178 : f32 to vector<8x128xf32>
    %255 = arith.select %252, %253, %254 : vector<8x128xi1>, vector<8x128xf32>
    %256 = arith.mulf %250, %255 : vector<8x128xf32>
    %c0_179 = arith.constant 0 : index
    %c0_180 = arith.constant 0 : index
    %257 = vector.load %arg7[%c0_179, %c0_180] : memref<8x768xf32, #tpu.memory_space<vmem>>, vector<8x128xf32>
    tpu.vector_store %arg7[%c0_179, %c0_180], %256 {strides = array<i32>} : memref<8x768xf32, #tpu.memory_space<vmem>>, vector<8x128xf32>,
    %258 = vector.extract_strided_slice %246 {offsets = [0, 128], sizes = [8, 128], strides = [1, 1]} : vector<8x768xf32> to vector<8x128xf32>
    %259 = arith.mulf %258, %255 : vector<8x128xf32>
    %c0_181 = arith.constant 0 : index
    %c128_182 = arith.constant 128 : index
    %260 = vector.load %arg7[%c0_181, %c128_182] : memref<8x768xf32, #tpu.memory_space<vmem>>, vector<8x128xf32>
    tpu.vector_store %arg7[%c0_181, %c128_182], %259 {strides = array<i32>} : memref<8x768xf32, #tpu.memory_space<vmem>>, vector<8x128xf32>,
    %261 = vector.extract_strided_slice %246 {offsets = [0, 256], sizes = [8, 128], strides = [1, 1]} : vector<8x768xf32> to vector<8x128xf32>
    %262 = arith.mulf %261, %255 : vector<8x128xf32>
    %c0_183 = arith.constant 0 : index
    %c256_184 = arith.constant 256 : index
    %263 = vector.load %arg7[%c0_183, %c256_184] : memref<8x768xf32, #tpu.memory_space<vmem>>, vector<8x128xf32>
    tpu.vector_store %arg7[%c0_183, %c256_184], %262 {strides = array<i32>} : memref<8x768xf32, #tpu.memory_space<vmem>>, vector<8x128xf32>,
    %264 = vector.extract_strided_slice %246 {offsets = [0, 384], sizes = [8, 128], strides = [1, 1]} : vector<8x768xf32> to vector<8x128xf32>
    %265 = arith.mulf %264, %255 : vector<8x128xf32>
    %c0_185 = arith.constant 0 : index
    %c384_186 = arith.constant 384 : index
    %266 = vector.load %arg7[%c0_185, %c384_186] : memref<8x768xf32, #tpu.memory_space<vmem>>, vector<8x128xf32>
    tpu.vector_store %arg7[%c0_185, %c384_186], %265 {strides = array<i32>} : memref<8x768xf32, #tpu.memory_space<vmem>>, vector<8x128xf32>,
    %267 = vector.extract_strided_slice %246 {offsets = [0, 512], sizes = [8, 128], strides = [1, 1]} : vector<8x768xf32> to vector<8x128xf32>
    %268 = arith.mulf %267, %255 : vector<8x128xf32>
    %c0_187 = arith.constant 0 : index
    %c512_188 = arith.constant 512 : index
    %269 = vector.load %arg7[%c0_187, %c512_188] : memref<8x768xf32, #tpu.memory_space<vmem>>, vector<8x128xf32>
    tpu.vector_store %arg7[%c0_187, %c512_188], %268 {strides = array<i32>} : memref<8x768xf32, #tpu.memory_space<vmem>>, vector<8x128xf32>,
    %270 = vector.extract_strided_slice %246 {offsets = [0, 640], sizes = [8, 128], strides = [1, 1]} : vector<8x768xf32> to vector<8x128xf32>
    %271 = arith.mulf %270, %255 : vector<8x128xf32>
    %c0_189 = arith.constant 0 : index
    %c640_190 = arith.constant 640 : index
    %272 = vector.load %arg7[%c0_189, %c640_190] : memref<8x768xf32, #tpu.memory_space<vmem>>, vector<8x128xf32>
    tpu.vector_store %arg7[%c0_189, %c640_190], %271 {strides = array<i32>} : memref<8x768xf32, #tpu.memory_space<vmem>>, vector<8x128xf32>,
    %c8_191 = arith.constant 8 : index
    %c0_192 = arith.constant 0 : index
    %c0_193 = arith.constant 0 : index
    %273 = vector.load %arg3[%c8_191, %c0_192, %c0_193] : memref<9x8x8xf32, #tpu.memory_space<vmem>>, vector<1x8x8xf32>
    %274 = vector.shape_cast %273 : vector<1x8x8xf32> to vector<8x8xf32>
    %c0_194 = arith.constant 0 : index
    %c0_195 = arith.constant 0 : index
    %275 = vector.load %arg7[%c0_194, %c0_195] : memref<8x768xf32, #tpu.memory_space<vmem>>, vector<8x768xf32>
    %cst_196 = arith.constant dense<0.000000e+00> : vector<8x768xf32>
    %276 = tpu.matmul %274, %275, %cst_196 {dimension_numbers = #tpu.dot_dimension_numbers<[1], [0], [0], [1], [0, 0, 1, 1], [], []>} : vector<8x8xf32>, vector<8x768xf32>, vector<8x768xf32> -> vector<8x768xf32>
    %277 = vector.extract_strided_slice %276 {offsets = [0, 0], sizes = [8, 128], strides = [1, 1]} : vector<8x768xf32> to vector<8x128xf32>
    %c0_197 = arith.constant 0 : index
    %c9 = arith.constant 9 : index
    %278 = vector.load %arg4[%c0_197, %c9] : memref<8x10xf32, #tpu.memory_space<vmem>>, vector<8x1xf32>
    %279 = vector.broadcast %278 : vector<8x1xf32> to vector<8x128xf32>
    %280 = arith.addf %277, %279 : vector<8x128xf32>
    %c0_198 = arith.constant 0 : index
    %c0_199 = arith.constant 0 : index
    %281 = vector.load %arg5[%c0_198, %c0_199] : memref<8x128xf32, #tpu.memory_space<vmem>>, vector<8x128xf32>
    tpu.vector_store %arg5[%c0_198, %c0_199], %280 {strides = array<i32>} : memref<8x128xf32, #tpu.memory_space<vmem>>, vector<8x128xf32>,
    %282 = vector.extract_strided_slice %276 {offsets = [0, 128], sizes = [8, 128], strides = [1, 1]} : vector<8x768xf32> to vector<8x128xf32>
    %c0_200 = arith.constant 0 : index
    %c0_201 = arith.constant 0 : index
    %c0_202 = arith.constant 0 : index
    %283 = vector.load %arg6[%c0_200, %c0_201, %c0_202] : memref<5x8x128xf32, #tpu.memory_space<vmem>>, vector<1x8x128xf32>
    %284 = vector.shape_cast %283 : vector<1x8x128xf32> to vector<8x128xf32>
    %285 = vector.shape_cast %282 : vector<8x128xf32> to vector<1x8x128xf32>
    tpu.vector_store %arg6[%c0_200, %c0_201, %c0_202], %285 {strides = array<i32>} : memref<5x8x128xf32, #tpu.memory_space<vmem>>, vector<1x8x128xf32>,
    %286 = vector.extract_strided_slice %276 {offsets = [0, 256], sizes = [8, 128], strides = [1, 1]} : vector<8x768xf32> to vector<8x128xf32>
    %c1_203 = arith.constant 1 : index
    %c0_204 = arith.constant 0 : index
    %c0_205 = arith.constant 0 : index
    %287 = vector.load %arg6[%c1_203, %c0_204, %c0_205] : memref<5x8x128xf32, #tpu.memory_space<vmem>>, vector<1x8x128xf32>
    %288 = vector.shape_cast %287 : vector<1x8x128xf32> to vector<8x128xf32>
    %289 = vector.shape_cast %286 : vector<8x128xf32> to vector<1x8x128xf32>
    tpu.vector_store %arg6[%c1_203, %c0_204, %c0_205], %289 {strides = array<i32>} : memref<5x8x128xf32, #tpu.memory_space<vmem>>, vector<1x8x128xf32>,
    %290 = vector.extract_strided_slice %276 {offsets = [0, 384], sizes = [8, 128], strides = [1, 1]} : vector<8x768xf32> to vector<8x128xf32>
    %c2_206 = arith.constant 2 : index
    %c0_207 = arith.constant 0 : index
    %c0_208 = arith.constant 0 : index
    %291 = vector.load %arg6[%c2_206, %c0_207, %c0_208] : memref<5x8x128xf32, #tpu.memory_space<vmem>>, vector<1x8x128xf32>
    %292 = vector.shape_cast %291 : vector<1x8x128xf32> to vector<8x128xf32>
    %293 = vector.shape_cast %290 : vector<8x128xf32> to vector<1x8x128xf32>
    tpu.vector_store %arg6[%c2_206, %c0_207, %c0_208], %293 {strides = array<i32>} : memref<5x8x128xf32, #tpu.memory_space<vmem>>, vector<1x8x128xf32>,
    %294 = vector.extract_strided_slice %276 {offsets = [0, 512], sizes = [8, 128], strides = [1, 1]} : vector<8x768xf32> to vector<8x128xf32>
    %c3_209 = arith.constant 3 : index
    %c0_210 = arith.constant 0 : index
    %c0_211 = arith.constant 0 : index
    %295 = vector.load %arg6[%c3_209, %c0_210, %c0_211] : memref<5x8x128xf32, #tpu.memory_space<vmem>>, vector<1x8x128xf32>
    %296 = vector.shape_cast %295 : vector<1x8x128xf32> to vector<8x128xf32>
    %297 = vector.shape_cast %294 : vector<8x128xf32> to vector<1x8x128xf32>
    tpu.vector_store %arg6[%c3_209, %c0_210, %c0_211], %297 {strides = array<i32>} : memref<5x8x128xf32, #tpu.memory_space<vmem>>, vector<1x8x128xf32>,
    %298 = vector.extract_strided_slice %276 {offsets = [0, 640], sizes = [8, 128], strides = [1, 1]} : vector<8x768xf32> to vector<8x128xf32>
    %c4_212 = arith.constant 4 : index
    %c0_213 = arith.constant 0 : index
    %c0_214 = arith.constant 0 : index
    %299 = vector.load %arg6[%c4_212, %c0_213, %c0_214] : memref<5x8x128xf32, #tpu.memory_space<vmem>>, vector<1x8x128xf32>
    %300 = vector.shape_cast %299 : vector<1x8x128xf32> to vector<8x128xf32>
    %301 = vector.shape_cast %298 : vector<8x128xf32> to vector<1x8x128xf32>
    tpu.vector_store %arg6[%c4_212, %c0_213, %c0_214], %301 {strides = array<i32>} : memref<5x8x128xf32, #tpu.memory_space<vmem>>, vector<1x8x128xf32>,
    return
  }
  func.func @transform_0(%arg0: i32) -> (i32, i32) {
    %c0_i32 = arith.constant 0 : i32
    %c0_i32_0 = arith.constant 0 : i32
    return %c0_i32, %arg0 : i32, i32
  }
  func.func @transform_1(%arg0: i32) -> (i32, i32) {
    %c0_i32 = arith.constant 0 : i32
    %c0_i32_0 = arith.constant 0 : i32
    %c0_i32_1 = arith.constant 0 : i32
    return %c0_i32, %c0_i32_0 : i32, i32
  }
  func.func @transform_2(%arg0: i32) -> (i32, i32, i32) {
    %c0_i32 = arith.constant 0 : i32
    %c0_i32_0 = arith.constant 0 : i32
    %c0_i32_1 = arith.constant 0 : i32
    %c0_i32_2 = arith.constant 0 : i32
    return %c0_i32, %c0_i32_0, %c0_i32_1 : i32, i32, i32
  }
  func.func @transform_3(%arg0: i32) -> (i32, i32) {
    %c0_i32 = arith.constant 0 : i32
    %c0_i32_0 = arith.constant 0 : i32
    %c0_i32_1 = arith.constant 0 : i32
    return %c0_i32, %c0_i32_0 : i32, i32
  }
  func.func @transform_4(%arg0: i32) -> (i32, i32) {
    %c0_i32 = arith.constant 0 : i32
    %c0_i32_0 = arith.constant 0 : i32
    return %c0_i32, %arg0 : i32, i32
  }
  func.func @transform_5(%arg0: i32) -> (i32, i32, i32) {
    %c0_i32 = arith.constant 0 : i32
    %c0_i32_0 = arith.constant 0 : i32
    %c0_i32_1 = arith.constant 0 : i32
    return %c0_i32, %c0_i32_0, %arg0 : i32, i32, i32
  }
}

</mosaic_0001>

<llo_original>
// kernel: tpu_custom_call.1
$region0: #{tpu_custom_call.1}
  #allocation0 [shape = 'u32[]', space=smem, size = 0x4, offset = 0x4, fixed_abs, tag = 'smem constant byte address 0x4 - core index']
  #allocation1 [shape = 'u32[144,128]{1,0:T(1,128)}', space=vmem, size = 0x12000, scoped, tag = 'internal scratch']
  #allocation2 [shape = 'f32[8,768]{1,0:T(8,128)}', space=vmem, size = 0x6000, scoped, tag = 'scratch operand']
  %s0 = inlined_call_operand.vmem [shape: f32[8,128], index: 0, kind: input, shape index: {}]
  %s1 = inlined_call_operand.vmem [shape: f32[8,8], index: 1, kind: input, shape index: {}]
  %s2 = inlined_call_operand.vmem [shape: f32[9,8,8], index: 2, kind: input, shape index: {}]
  %s3 = inlined_call_operand.vmem [shape: f32[8,10], index: 3, kind: input, shape index: {}]
  %s4 = inlined_call_operand.hbm [shape: f32[8,128], index: 4, kind: output, shape index: {0}]
  %s5 = inlined_call_operand.hbm [shape: f32[5,8,128], index: 5, kind: output, shape index: {1}]
  %6 = xla_tuple %s4, %s5
  %s7 = sld [smem:[#allocation0]]
  $region34: #{tpu_custom_call.1} parent=0
    _
  %s9 = ssub.s32 1, %s7
  %s10 = scalar_select 0, %s9, %s7
  $region1: #{tpu_custom_call.1} parent=0
    #allocation3 [shape = 'u8[4096]{0}', space=vmem, size = 0x1000, scoped, tag = 'output window, operand 0, single buffered']
    #allocation4 [shape = 's32[1]{0}', space=sflag, size = 0x4, scoped, tag = 'scoped memory for tpu_custom_call.1']
    #allocation5 [shape = 'u8[20480]{0}', space=vmem, size = 0x5000, scoped, tag = 'output window, operand 1, single buffered']
    #allocation6 [shape = 's32[1]{0}', space=sflag, size = 0x4, scoped, tag = 'scoped memory for tpu_custom_call.1']
    %11 = vsyncpa [#allocation4], 0
    %12 = vsyncpa [#allocation6], 0
    // Predicated region
    $region2: #{tpu_custom_call.1} parent=1 // pred_check
      _
    $region3: #{tpu_custom_call.1} parent=1 // pred_check_branch
      %14 = sbr.rel (0) target = $region5
    $region4: #{tpu_custom_call.1} parent=1 // pred_region
      _
    $region5: #{tpu_custom_call.1} parent=1 // pred_fallthru
      _
    // Predicated region
    $region6: #{tpu_custom_call.1} parent=1 // pred_check
      _
    $region7: #{tpu_custom_call.1} parent=1 // pred_check_branch
      %16 = sbr.rel (0) target = $region9
    $region8: #{tpu_custom_call.1} parent=1 // pred_region
      _
    $region9: #{tpu_custom_call.1} parent=1 // pred_fallthru
      _
    // Predicated region
    $region10: #{tpu_custom_call.1} parent=1 // pred_check
      _
    $region11: #{tpu_custom_call.1} parent=1 // pred_check_branch
      %18 = sbr.rel (0) target = $region13
    $region12: #{tpu_custom_call.1} parent=1 // pred_region
      _
    $region13: #{tpu_custom_call.1} parent=1 // pred_fallthru
      _
    // Predicated region
    $region14: #{tpu_custom_call.1} parent=1 // pred_check
      _
    $region15: #{tpu_custom_call.1} parent=1 // pred_check_branch
      %20 = sbr.rel (0) target = $region17
    $region16: #{tpu_custom_call.1} parent=1 // pred_region
      _
    $region17: #{tpu_custom_call.1} parent=1 // pred_fallthru
      _
    %v21 = vld [vmem:[%s1] sm:$0xff]
    %v22 = vld [vmem:[%s0] sm:$0xff]
    %v23 = vld [vmem:[%s3] sm:$0xff]
    %25 = vset.pattern.permute.xlu0 0
    %26 = vperm.xlu0 %25, %v23
    %v27 = vpop.permute.xlu0 %26
    %vm29 = vcmask 64512
    %v31 = vsel %vm29, %v21, 0
    %33 = vmatprep.subr.mxu0 0.0
    %34 = vmatpush1.msra.mxu0 %v22
    %35 = vmatprep.subr.mxu0 0.0
    %36 = vmatpush1.msra.mxu0 0.0
    %37 = vmatprep.subr.mxu0 0.0
    %38 = vmatpush1.msra.mxu0 0.0
    %39 = vmatprep.subr.mxu0 0.0
    %40 = vmatpush1.msra.mxu0 0.0
    %41 = vmatprep.subr.mxu0 0.0
    %42 = vmatpush1.msra.mxu0 0.0
    %43 = vmatprep.subr.mxu0 0.0
    %44 = vmatpush1.msra.mxu0 0.0
    %45 = vmatprep.subr.mxu0 0.0
    %46 = vmatpush1.msra.mxu0 0.0
    %47 = vmatprep.subr.mxu0 0.0
    %48 = vmatpush1.msra.mxu0 0.0
    %49 = vmatprep.subr.mxu0 0.0
    %50 = vmatpush1.msra.mxu0 0.0
    %51 = vmatprep.subr.mxu0 0.0
    %52 = vmatpush1.msra.mxu0 0.0
    %53 = vmatprep.subr.mxu0 0.0
    %54 = vmatpush1.msra.mxu0 0.0
    %55 = vmatprep.subr.mxu0 0.0
    %56 = vmatpush1.msra.mxu0 0.0
    %57 = vmatprep.subr.mxu0 0.0
    %58 = vmatpush1.msra.mxu0 0.0
    %59 = vmatprep.subr.mxu0 0.0
    %60 = vmatpush1.msra.mxu0 0.0
    %61 = vmatprep.subr.mxu0 0.0
    %62 = vmatpush1.msra.mxu0 0.0
    %63 = vmatprep.subr.mxu0 0.0
    %64 = vmatpush1.msra.mxu0 0.0
    %65 = vmatprep.subr.mxu0 0.0
    %66 = vmatpush1.msra.mxu0 0.0
    %67 = vmatprep.subr.mxu0 0.0
    %68 = vmatpush1.msra.mxu0 0.0
    %69 = vmatprep.subr.mxu0 0.0
    %70 = vmatpush1.msra.mxu0 0.0
    %71 = vmatprep.subr.mxu0 0.0
    %72 = vmatpush1.msra.mxu0 0.0
    %73 = vmatprep.subr.mxu0 0.0
    %74 = vmatpush1.msra.mxu0 0.0
    %75 = vmatprep.subr.mxu0 0.0
    %76 = vmatpush1.msra.mxu0 0.0
    %77 = vmatprep.subr.mxu0 0.0
    %78 = vmatpush1.msra.mxu0 0.0
    %79 = vmatprep.subr.mxu0 0.0
    %80 = vmatpush1.msra.mxu0 0.0
    %81 = vmatprep.subr.mxu0 0.0
    %82 = vmatpush1.msra.mxu0 0.0
    %83 = vmatprep.subr.mxu0 0.0
    %84 = vmatpush1.msra.mxu0 0.0
    %85 = vmatprep.subr.mxu0 0.0
    %86 = vmatpush1.msra.mxu0 0.0
    %87 = vmatprep.subr.mxu0 0.0
    %88 = vmatpush1.msra.mxu0 0.0
    %89 = vmatprep.subr.mxu0 0.0
    %90 = vmatpush1.msra.mxu0 0.0
    %91 = vmatprep.subr.mxu0 0.0
    %92 = vmatpush1.msra.mxu0 0.0
    %93 = vmatprep.subr.mxu0 0.0
    %94 = vmatpush1.msra.mxu0 0.0
    %95 = vmatprep.subr.mxu0 0.0
    %96 = vmatpush1.msra.mxu0 0.0
    %97 = vmatprep.mubr.f32.mxu0 0.0
    %98 = vmatmul.mubr.f32.gmra.mrb[0].mxu0 %v31
    %v99 = vpop.f32.mrb[0].mxu0
    %v100 = vadd.f32 %v27, %v99
    %v101 = vpop.f32.mrb[0].mxu0
    %102 = vdwg.mxu0
    %vm103 = vcmp.gt.f32.partialorder %v100, 0.0
    %v104 = vsel %vm103, 1.0, 0.01
    %v105 = vmul.f32 %v100, %v104
    %106 = vst [vmem:[#allocation2] sm:$0xff] %v105
    %107 = vset.pattern.permute.xlu0 0
    %108 = vperm.xlu0 %107, %v21
    %v109 = vpop.permute.xlu0 %108
    %v111 = vmul.f32 %v104, %v109
    %112 = vst [vmem:[#allocation2 + $0x8] sm:$0xff] %v111
    %113 = vset.pattern.permute.xlu0 1
    %114 = vperm.xlu0 %113, %v21
    %v115 = vpop.permute.xlu0 %114
    %v117 = vmul.f32 %v104, %v115
    %118 = vst [vmem:[#allocation2 + $0x10] sm:$0xff] %v117
    %119 = vset.pattern.permute.xlu0 2
    %120 = vperm.xlu0 %119, %v21
    %v121 = vpop.permute.xlu0 %120
    %v123 = vmul.f32 %v104, %v121
    %124 = vst [vmem:[#allocation2 + $0x18] sm:$0xff] %v123
    %125 = vset.pattern.permute.xlu0 3
    %126 = vperm.xlu0 %125, %v21
    %v127 = vpop.permute.xlu0 %126
    %v129 = vmul.f32 %v104, %v127
    %130 = vst [vmem:[#allocation2 + $0x20] sm:$0xff] %v129
    %131 = vset.pattern.permute.xlu0 4
    %132 = vperm.xlu0 %131, %v21
    %v133 = vpop.permute.xlu0 %132
    %v135 = vmul.f32 %v104, %v133
    %136 = vst [vmem:[#allocation2 + $0x28] sm:$0xff] %v135
    %v137 = vld [vmem:[%s2] sm:$0xff]
    %v138 = vld [vmem:[#allocation2] sm:$0xff]
    %v139 = vld [vmem:[#allocation2 + $0x8] sm:$0xff]
    %v140 = vld [vmem:[#allocation2 + $0x10] sm:$0xff]
    %v141 = vld [vmem:[#allocation2 + $0x18] sm:$0xff]
    %v142 = vld [vmem:[#allocation2 + $0x20] sm:$0xff]
    %v143 = vld [vmem:[#allocation2 + $0x28] sm:$0xff]
    %v145 = vsel %vm29, %v137, 0
    %147 = vmatprep.subr.mxu0 %v139
    %148 = vmatpush1.msra.mxu0 %v138
    %149 = vmatprep.subr.mxu0 0.0
    %150 = vmatpush1.msra.mxu0 0.0
    %151 = vmatprep.subr.mxu0 0.0
    %152 = vmatpush1.msra.mxu0 0.0
    %153 = vmatprep.subr.mxu0 0.0
    %154 = vmatpush1.msra.mxu0 0.0
    %155 = vmatprep.subr.mxu0 0.0
    %156 = vmatpush1.msra.mxu0 0.0
    %157 = vmatprep.subr.mxu0 0.0
    %158 = vmatpush1.msra.mxu0 0.0
    %159 = vmatprep.subr.mxu0 0.0
    %160 = vmatpush1.msra.mxu0 0.0
    %161 = vmatprep.subr.mxu0 0.0
    %162 = vmatpush1.msra.mxu0 0.0
    %163 = vmatprep.subr.mxu0 0.0
    %164 = vmatpush1.msra.mxu0 0.0
    %165 = vmatprep.subr.mxu0 0.0
    %166 = vmatpush1.msra.mxu0 0.0
    %167 = vmatprep.subr.mxu0 0.0
    %168 = vmatpush1.msra.mxu0 0.0
    %169 = vmatprep.subr.mxu0 0.0
    %170 = vmatpush1.msra.mxu0 0.0
    %171 = vmatprep.subr.mxu0 0.0
    %172 = vmatpush1.msra.mxu0 0.0
    %173 = vmatprep.subr.mxu0 0.0
    %174 = vmatpush1.msra.mxu0 0.0
    %175 = vmatprep.subr.mxu0 0.0
    %176 = vmatpush1.msra.mxu0 0.0
    %177 = vmatprep.subr.mxu0 0.0
    %178 = vmatpush1.msra.mxu0 0.0
    %179 = vmatprep.subr.mxu0 0.0
    %180 = vmatpush1.msra.mxu0 0.0
    %181 = vmatprep.subr.mxu0 0.0
    %182 = vmatpush1.msra.mxu0 0.0
    %183 = vmatprep.subr.mxu0 0.0
    %184 = vmatpush1.msra.mxu0 0.0
    %185 = vmatprep.subr.mxu0 0.0
    %186 = vmatpush1.msra.mxu0 0.0
    %187 = vmatprep.subr.mxu0 0.0
    %188 = vmatpush1.msra.mxu0 0.0
    %189 = vmatprep.subr.mxu0 0.0
    %190 = vmatpush1.msra.mxu0 0.0
    %191 = vmatprep.subr.mxu0 0.0
    %192 = vmatpush1.msra.mxu0 0.0
    %193 = vmatprep.subr.mxu0 0.0
    %194 = vmatpush1.msra.mxu0 0.0
    %195 = vmatprep.subr.mxu0 0.0
    %196 = vmatpush1.msra.mxu0 0.0
    %197 = vmatprep.subr.mxu0 0.0
    %198 = vmatpush1.msra.mxu0 0.0
    %199 = vmatprep.subr.mxu0 0.0
    %200 = vmatpush1.msra.mxu0 0.0
    %201 = vmatprep.subr.mxu0 0.0
    %202 = vmatpush1.msra.mxu0 0.0
    %203 = vmatprep.subr.mxu0 0.0
    %204 = vmatpush1.msra.mxu0 0.0
    %205 = vmatprep.subr.mxu0 0.0
    %206 = vmatpush1.msra.mxu0 0.0
    %207 = vmatprep.subr.mxu0 0.0
    %208 = vmatpush1.msra.mxu0 0.0
    %209 = vmatprep.subr.mxu0 0.0
    %210 = vmatpush1.msra.mxu0 0.0
    %211 = vmatprep.mubr.f32.mxu0 0.0
    %212 = vmatmul.mubr.f32.gmra.mrb[0].mxu0 %v145
    %v213 = vpop.f32.mrb[0].mxu0
    %v214 = vadd.f32 0.0, %v213
    %v215 = vpop.f32.mrb[0].mxu0
    %v216 = vadd.f32 0.0, %v215
    %217 = vdwg.mxu0
    %218 = vmatprep.subr.mxu0 %v141
    %219 = vmatpush1.msra.mxu0 %v140
    %220 = vmatprep.subr.mxu0 0.0
    %221 = vmatpush1.msra.mxu0 0.0
    %222 = vmatprep.subr.mxu0 0.0
    %223 = vmatpush1.msra.mxu0 0.0
    %224 = vmatprep.subr.mxu0 0.0
    %225 = vmatpush1.msra.mxu0 0.0
    %226 = vmatprep.subr.mxu0 0.0
    %227 = vmatpush1.msra.mxu0 0.0
    %228 = vmatprep.subr.mxu0 0.0
    %229 = vmatpush1.msra.mxu0 0.0
    %230 = vmatprep.subr.mxu0 0.0
    %231 = vmatpush1.msra.mxu0 0.0
    %232 = vmatprep.subr.mxu0 0.0
    %233 = vmatpush1.msra.mxu0 0.0
    %234 = vmatprep.subr.mxu0 0.0
    %235 = vmatpush1.msra.mxu0 0.0
    %236 = vmatprep.subr.mxu0 0.0
    %237 = vmatpush1.msra.mxu0 0.0
    %238 = vmatprep.subr.mxu0 0.0
    %239 = vmatpush1.msra.mxu0 0.0
    %240 = vmatprep.subr.mxu0 0.0
    %241 = vmatpush1.msra.mxu0 0.0
    %242 = vmatprep.subr.mxu0 0.0
    %243 = vmatpush1.msra.mxu0 0.0
    %244 = vmatprep.subr.mxu0 0.0
    %245 = vmatpush1.msra.mxu0 0.0
    %246 = vmatprep.subr.mxu0 0.0
    %247 = vmatpush1.msra.mxu0 0.0
    %248 = vmatprep.subr.mxu0 0.0
    %249 = vmatpush1.msra.mxu0 0.0
    %250 = vmatprep.subr.mxu0 0.0
    %251 = vmatpush1.msra.mxu0 0.0
    %252 = vmatprep.subr.mxu0 0.0
    %253 = vmatpush1.msra.mxu0 0.0
    %254 = vmatprep.subr.mxu0 0.0
    %255 = vmatpush1.msra.mxu0 0.0
    %256 = vmatprep.subr.mxu0 0.0
    %257 = vmatpush1.msra.mxu0 0.0
    %258 = vmatprep.subr.mxu0 0.0
    %259 = vmatpush1.msra.mxu0 0.0
    %260 = vmatprep.subr.mxu0 0.0
    %261 = vmatpush1.msra.mxu0 0.0
    %262 = vmatprep.subr.mxu0 0.0
    %263 = vmatpush1.msra.mxu0 0.0
    %264 = vmatprep.subr.mxu0 0.0
    %265 = vmatpush1.msra.mxu0 0.0
    %266 = vmatprep.subr.mxu0 0.0
    %267 = vmatpush1.msra.mxu0 0.0
    %268 = vmatprep.subr.mxu0 0.0
    %269 = vmatpush1.msra.mxu0 0.0
    %270 = vmatprep.subr.mxu0 0.0
    %271 = vmatpush1.msra.mxu0 0.0
    %272 = vmatprep.subr.mxu0 0.0
    %273 = vmatpush1.msra.mxu0 0.0
    %274 = vmatprep.subr.mxu0 0.0
    %275 = vmatpush1.msra.mxu0 0.0
    %276 = vmatprep.subr.mxu0 0.0
    %277 = vmatpush1.msra.mxu0 0.0
    %278 = vmatprep.subr.mxu0 0.0
    %279 = vmatpush1.msra.mxu0 0.0
    %280 = vmatprep.subr.mxu0 0.0
    %281 = vmatpush1.msra.mxu0 0.0
    %282 = vmatprep.mubr.f32.mxu0 0.0
    %283 = vmatmul.mubr.f32.gmra.mrb[0].mxu0 %v145
    %v284 = vpop.f32.mrb[0].mxu0
    %v285 = vadd.f32 0.0, %v284
    %v286 = vpop.f32.mrb[0].mxu0
    %v287 = vadd.f32 0.0, %v286
    %288 = vdwg.mxu0
    %289 = vmatprep.subr.mxu0 %v143
    %290 = vmatpush1.msra.mxu0 %v142
    %291 = vmatprep.subr.mxu0 0.0
    %292 = vmatpush1.msra.mxu0 0.0
    %293 = vmatprep.subr.mxu0 0.0
    %294 = vmatpush1.msra.mxu0 0.0
    %295 = vmatprep.subr.mxu0 0.0
    %296 = vmatpush1.msra.mxu0 0.0
    %297 = vmatprep.subr.mxu0 0.0
    %298 = vmatpush1.msra.mxu0 0.0
    %299 = vmatprep.subr.mxu0 0.0
    %300 = vmatpush1.msra.mxu0 0.0
    %301 = vmatprep.subr.mxu0 0.0
    %302 = vmatpush1.msra.mxu0 0.0
    %303 = vmatprep.subr.mxu0 0.0
    %304 = vmatpush1.msra.mxu0 0.0
    %305 = vmatprep.subr.mxu0 0.0
    %306 = vmatpush1.msra.mxu0 0.0
    %307 = vmatprep.subr.mxu0 0.0
    %308 = vmatpush1.msra.mxu0 0.0
    %309 = vmatprep.subr.mxu0 0.0
    %310 = vmatpush1.msra.mxu0 0.0
    %311 = vmatprep.subr.mxu0 0.0
    %312 = vmatpush1.msra.mxu0 0.0
    %313 = vmatprep.subr.mxu0 0.0
    %314 = vmatpush1.msra.mxu0 0.0
    %315 = vmatprep.subr.mxu0 0.0
    %316 = vmatpush1.msra.mxu0 0.0
    %317 = vmatprep.subr.mxu0 0.0
    %318 = vmatpush1.msra.mxu0 0.0
    %319 = vmatprep.subr.mxu0 0.0
    %320 = vmatpush1.msra.mxu0 0.0
    %321 = vmatprep.subr.mxu0 0.0
    %322 = vmatpush1.msra.mxu0 0.0
    %323 = vmatprep.subr.mxu0 0.0
    %324 = vmatpush1.msra.mxu0 0.0
    %325 = vmatprep.subr.mxu0 0.0
    %326 = vmatpush1.msra.mxu0 0.0
    %327 = vmatprep.subr.mxu0 0.0
    %328 = vmatpush1.msra.mxu0 0.0
    %329 = vmatprep.subr.mxu0 0.0
    %330 = vmatpush1.msra.mxu0 0.0
    %331 = vmatprep.subr.mxu0 0.0
    %332 = vmatpush1.msra.mxu0 0.0
    %333 = vmatprep.subr.mxu0 0.0
    %334 = vmatpush1.msra.mxu0 0.0
    %335 = vmatprep.subr.mxu0 0.0
    %336 = vmatpush1.msra.mxu0 0.0
    %337 = vmatprep.subr.mxu0 0.0
    %338 = vmatpush1.msra.mxu0 0.0
    %339 = vmatprep.subr.mxu0 0.0
    %340 = vmatpush1.msra.mxu0 0.0
    %341 = vmatprep.subr.mxu0 0.0
    %342 = vmatpush1.msra.mxu0 0.0
    %343 = vmatprep.subr.mxu0 0.0
    %344 = vmatpush1.msra.mxu0 0.0
    %345 = vmatprep.subr.mxu0 0.0
    %346 = vmatpush1.msra.mxu0 0.0
    %347 = vmatprep.subr.mxu0 0.0
    %348 = vmatpush1.msra.mxu0 0.0
    %349 = vmatprep.subr.mxu0 0.0
    %350 = vmatpush1.msra.mxu0 0.0
    %351 = vmatprep.subr.mxu0 0.0
    %352 = vmatpush1.msra.mxu0 0.0
    %353 = vmatprep.mubr.f32.mxu0 0.0
    %354 = vmatmul.mubr.f32.gmra.mrb[0].mxu0 %v145
    %v355 = vpop.f32.mrb[0].mxu0
    %v356 = vadd.f32 0.0, %v355
    %v357 = vpop.f32.mrb[0].mxu0
    %v358 = vadd.f32 0.0, %v357
    %359 = vdwg.mxu0
    %v360 = vld [vmem:[%s3] sm:$0xff]
    %362 = vset.pattern.permute.xlu0 1
    %363 = vperm.xlu0 %362, %v360
    %v364 = vpop.permute.xlu0 %363
    %v366 = vadd.f32 %v214, %v364
    %vm367 = vcmp.gt.f32.partialorder %v366, 0.0
    %v368 = vsel %vm367, 1.0, 0.01
    %v369 = vmul.f32 %v366, %v368
    %370 = vst [vmem:[#allocation2] sm:$0xff] %v369
    %v371 = vmul.f32 %v216, %v368
    %372 = vst [vmem:[#allocation2 + $0x8] sm:$0xff] %v371
    %v373 = vmul.f32 %v285, %v368
    %374 = vst [vmem:[#allocation2 + $0x10] sm:$0xff] %v373
    %v375 = vmul.f32 %v287, %v368
    %376 = vst [vmem:[#allocation2 + $0x18] sm:$0xff] %v375
    %v377 = vmul.f32 %v356, %v368
    %378 = vst [vmem:[#allocation2 + $0x20] sm:$0xff] %v377
    %v379 = vmul.f32 %v358, %v368
    %380 = vst [vmem:[#allocation2 + $0x28] sm:$0xff] %v379
    %s381 = scalar_lea.vmem %s2, 8
    %v382 = vld [vmem:[%s381] sm:$0xff]
    %v383 = vld [vmem:[#allocation2] sm:$0xff]
    %v384 = vld [vmem:[#allocation2 + $0x8] sm:$0xff]
    %v385 = vld [vmem:[#allocation2 + $0x10] sm:$0xff]
    %v386 = vld [vmem:[#allocation2 + $0x18] sm:$0xff]
    %v387 = vld [vmem:[#allocation2 + $0x20] sm:$0xff]
    %v388 = vld [vmem:[#allocation2 + $0x28] sm:$0xff]
    %v390 = vsel %vm29, %v382, 0
    %392 = vmatprep.subr.mxu0 %v384
    %393 = vmatpush1.msra.mxu0 %v383
    %394 = vmatprep.subr.mxu0 0.0
    %395 = vmatpush1.msra.mxu0 0.0
    %396 = vmatprep.subr.mxu0 0.0
    %397 = vmatpush1.msra.mxu0 0.0
    %398 = vmatprep.subr.mxu0 0.0
    %399 = vmatpush1.msra.mxu0 0.0
    %400 = vmatprep.subr.mxu0 0.0
    %401 = vmatpush1.msra.mxu0 0.0
    %402 = vmatprep.subr.mxu0 0.0
    %403 = vmatpush1.msra.mxu0 0.0
    %404 = vmatprep.subr.mxu0 0.0
    %405 = vmatpush1.msra.mxu0 0.0
    %406 = vmatprep.subr.mxu0 0.0
    %407 = vmatpush1.msra.mxu0 0.0
    %408 = vmatprep.subr.mxu0 0.0
    %409 = vmatpush1.msra.mxu0 0.0
    %410 = vmatprep.subr.mxu0 0.0
    %411 = vmatpush1.msra.mxu0 0.0
    %412 = vmatprep.subr.mxu0 0.0
    %413 = vmatpush1.msra.mxu0 0.0
    %414 = vmatprep.subr.mxu0 0.0
    %415 = vmatpush1.msra.mxu0 0.0
    %416 = vmatprep.subr.mxu0 0.0
    %417 = vmatpush1.msra.mxu0 0.0
    %418 = vmatprep.subr.mxu0 0.0
    %419 = vmatpush1.msra.mxu0 0.0
    %420 = vmatprep.subr.mxu0 0.0
    %421 = vmatpush1.msra.mxu0 0.0
    %422 = vmatprep.subr.mxu0 0.0
    %423 = vmatpush1.msra.mxu0 0.0
    %424 = vmatprep.subr.mxu0 0.0
    %425 = vmatpush1.msra.mxu0 0.0
    %426 = vmatprep.subr.mxu0 0.0
    %427 = vmatpush1.msra.mxu0 0.0
    %428 = vmatprep.subr.mxu0 0.0
    %429 = vmatpush1.msra.mxu0 0.0
    %430 = vmatprep.subr.mxu0 0.0
    %431 = vmatpush1.msra.mxu0 0.0
    %432 = vmatprep.subr.mxu0 0.0
    %433 = vmatpush1.msra.mxu0 0.0
    %434 = vmatprep.subr.mxu0 0.0
    %435 = vmatpush1.msra.mxu0 0.0
    %436 = vmatprep.subr.mxu0 0.0
    %437 = vmatpush1.msra.mxu0 0.0
    %438 = vmatprep.subr.mxu0 0.0
    %439 = vmatpush1.msra.mxu0 0.0
    %440 = vmatprep.subr.mxu0 0.0
    %441 = vmatpush1.msra.mxu0 0.0
    %442 = vmatprep.subr.mxu0 0.0
    %443 = vmatpush1.msra.mxu0 0.0
    %444 = vmatprep.subr.mxu0 0.0
    %445 = vmatpush1.msra.mxu0 0.0
    %446 = vmatprep.subr.mxu0 0.0
    %447 = vmatpush1.msra.mxu0 0.0
    %448 = vmatprep.subr.mxu0 0.0
    %449 = vmatpush1.msra.mxu0 0.0
    %450 = vmatprep.subr.mxu0 0.0
    %451 = vmatpush1.msra.mxu0 0.0
    %452 = vmatprep.subr.mxu0 0.0
    %453 = vmatpush1.msra.mxu0 0.0
    %454 = vmatprep.subr.mxu0 0.0
    %455 = vmatpush1.msra.mxu0 0.0
    %456 = vmatprep.mubr.f32.mxu0 0.0
    %457 = vmatmul.mubr.f32.gmra.mrb[0].mxu0 %v390
    %v458 = vpop.f32.mrb[0].mxu0
    %v459 = vadd.f32 0.0, %v458
    %v460 = vpop.f32.mrb[0].mxu0
    %v461 = vadd.f32 0.0, %v460
    %462 = vdwg.mxu0
    %463 = vmatprep.subr.mxu0 %v386
    %464 = vmatpush1.msra.mxu0 %v385
    %465 = vmatprep.subr.mxu0 0.0
    %466 = vmatpush1.msra.mxu0 0.0
    %467 = vmatprep.subr.mxu0 0.0
    %468 = vmatpush1.msra.mxu0 0.0
    %469 = vmatprep.subr.mxu0 0.0
    %470 = vmatpush1.msra.mxu0 0.0
    %471 = vmatprep.subr.mxu0 0.0
    %472 = vmatpush1.msra.mxu0 0.0
    %473 = vmatprep.subr.mxu0 0.0
    %474 = vmatpush1.msra.mxu0 0.0
    %475 = vmatprep.subr.mxu0 0.0
    %476 = vmatpush1.msra.mxu0 0.0
    %477 = vmatprep.subr.mxu0 0.0
    %478 = vmatpush1.msra.mxu0 0.0
    %479 = vmatprep.subr.mxu0 0.0
    %480 = vmatpush1.msra.mxu0 0.0
    %481 = vmatprep.subr.mxu0 0.0
    %482 = vmatpush1.msra.mxu0 0.0
    %483 = vmatprep.subr.mxu0 0.0
    %484 = vmatpush1.msra.mxu0 0.0
    %485 = vmatprep.subr.mxu0 0.0
    %486 = vmatpush1.msra.mxu0 0.0
    %487 = vmatprep.subr.mxu0 0.0
    %488 = vmatpush1.msra.mxu0 0.0
    %489 = vmatprep.subr.mxu0 0.0
    %490 = vmatpush1.msra.mxu0 0.0
    %491 = vmatprep.subr.mxu0 0.0
    %492 = vmatpush1.msra.mxu0 0.0
    %493 = vmatprep.subr.mxu0 0.0
    %494 = vmatpush1.msra.mxu0 0.0
    %495 = vmatprep.subr.mxu0 0.0
    %496 = vmatpush1.msra.mxu0 0.0
    %497 = vmatprep.subr.mxu0 0.0
    %498 = vmatpush1.msra.mxu0 0.0
    %499 = vmatprep.subr.mxu0 0.0
    %500 = vmatpush1.msra.mxu0 0.0
    %501 = vmatprep.subr.mxu0 0.0
    %502 = vmatpush1.msra.mxu0 0.0
    %503 = vmatprep.subr.mxu0 0.0
    %504 = vmatpush1.msra.mxu0 0.0
    %505 = vmatprep.subr.mxu0 0.0
    %506 = vmatpush1.msra.mxu0 0.0
    %507 = vmatprep.subr.mxu0 0.0
    %508 = vmatpush1.msra.mxu0 0.0
    %509 = vmatprep.subr.mxu0 0.0
    %510 = vmatpush1.msra.mxu0 0.0
    %511 = vmatprep.subr.mxu0 0.0
    %512 = vmatpush1.msra.mxu0 0.0
    %513 = vmatprep.subr.mxu0 0.0
    %514 = vmatpush1.msra.mxu0 0.0
    %515 = vmatprep.subr.mxu0 0.0
    %516 = vmatpush1.msra.mxu0 0.0
    %517 = vmatprep.subr.mxu0 0.0
    %518 = vmatpush1.msra.mxu0 0.0
    %519 = vmatprep.subr.mxu0 0.0
    %520 = vmatpush1.msra.mxu0 0.0
    %521 = vmatprep.subr.mxu0 0.0
    %522 = vmatpush1.msra.mxu0 0.0
    %523 = vmatprep.subr.mxu0 0.0
    %524 = vmatpush1.msra.mxu0 0.0
    %525 = vmatprep.subr.mxu0 0.0
    %526 = vmatpush1.msra.mxu0 0.0
    %527 = vmatprep.mubr.f32.mxu0 0.0
    %528 = vmatmul.mubr.f32.gmra.mrb[0].mxu0 %v390
    %v529 = vpop.f32.mrb[0].mxu0
    %v530 = vadd.f32 0.0, %v529
    %v531 = vpop.f32.mrb[0].mxu0
    %v532 = vadd.f32 0.0, %v531
    %533 = vdwg.mxu0
    %534 = vmatprep.subr.mxu0 %v388
    %535 = vmatpush1.msra.mxu0 %v387
    %536 = vmatprep.subr.mxu0 0.0
    %537 = vmatpush1.msra.mxu0 0.0
    %538 = vmatprep.subr.mxu0 0.0
    %539 = vmatpush1.msra.mxu0 0.0
    %540 = vmatprep.subr.mxu0 0.0
    %541 = vmatpush1.msra.mxu0 0.0
    %542 = vmatprep.subr.mxu0 0.0
    %543 = vmatpush1.msra.mxu0 0.0
    %544 = vmatprep.subr.mxu0 0.0
    %545 = vmatpush1.msra.mxu0 0.0
    %546 = vmatprep.subr.mxu0 0.0
    %547 = vmatpush1.msra.mxu0 0.0
    %548 = vmatprep.subr.mxu0 0.0
    %549 = vmatpush1.msra.mxu0 0.0
    %550 = vmatprep.subr.mxu0 0.0
    %551 = vmatpush1.msra.mxu0 0.0
    %552 = vmatprep.subr.mxu0 0.0
    %553 = vmatpush1.msra.mxu0 0.0
    %554 = vmatprep.subr.mxu0 0.0
    %555 = vmatpush1.msra.mxu0 0.0
    %556 = vmatprep.subr.mxu0 0.0
    %557 = vmatpush1.msra.mxu0 0.0
    %558 = vmatprep.subr.mxu0 0.0
    %559 = vmatpush1.msra.mxu0 0.0
    %560 = vmatprep.subr.mxu0 0.0
    %561 = vmatpush1.msra.mxu0 0.0
    %562 = vmatprep.subr.mxu0 0.0
    %563 = vmatpush1.msra.mxu0 0.0
    %564 = vmatprep.subr.mxu0 0.0
    %565 = vmatpush1.msra.mxu0 0.0
    %566 = vmatprep.subr.mxu0 0.0
    %567 = vmatpush1.msra.mxu0 0.0
    %568 = vmatprep.subr.mxu0 0.0
    %569 = vmatpush1.msra.mxu0 0.0
    %570 = vmatprep.subr.mxu0 0.0
    %571 = vmatpush1.msra.mxu0 0.0
    %572 = vmatprep.subr.mxu0 0.0
    %573 = vmatpush1.msra.mxu0 0.0
    %574 = vmatprep.subr.mxu0 0.0
    %575 = vmatpush1.msra.mxu0 0.0
    %576 = vmatprep.subr.mxu0 0.0
    %577 = vmatpush1.msra.mxu0 0.0
    %578 = vmatprep.subr.mxu0 0.0
    %579 = vmatpush1.msra.mxu0 0.0
    %580 = vmatprep.subr.mxu0 0.0
    %581 = vmatpush1.msra.mxu0 0.0
    %582 = vmatprep.subr.mxu0 0.0
    %583 = vmatpush1.msra.mxu0 0.0
    %584 = vmatprep.subr.mxu0 0.0
    %585 = vmatpush1.msra.mxu0 0.0
    %586 = vmatprep.subr.mxu0 0.0
    %587 = vmatpush1.msra.mxu0 0.0
    %588 = vmatprep.subr.mxu0 0.0
    %589 = vmatpush1.msra.mxu0 0.0
    %590 = vmatprep.subr.mxu0 0.0
    %591 = vmatpush1.msra.mxu0 0.0
    %592 = vmatprep.subr.mxu0 0.0
    %593 = vmatpush1.msra.mxu0 0.0
    %594 = vmatprep.subr.mxu0 0.0
    %595 = vmatpush1.msra.mxu0 0.0
    %596 = vmatprep.subr.mxu0 0.0
    %597 = vmatpush1.msra.mxu0 0.0
    %598 = vmatprep.mubr.f32.mxu0 0.0
    %599 = vmatmul.mubr.f32.gmra.mrb[0].mxu0 %v390
    %v600 = vpop.f32.mrb[0].mxu0
    %v601 = vadd.f32 0.0, %v600
    %v602 = vpop.f32.mrb[0].mxu0
    %v603 = vadd.f32 0.0, %v602
    %604 = vdwg.mxu0
    %v605 = vld [vmem:[%s3] sm:$0xff]
    %607 = vset.pattern.permute.xlu0 2
    %608 = vperm.xlu0 %607, %v605
    %v609 = vpop.permute.xlu0 %608
    %v611 = vadd.f32 %v459, %v609
    %vm612 = vcmp.gt.f32.partialorder %v611, 0.0
    %v613 = vsel %vm612, 1.0, 0.01
    %v614 = vmul.f32 %v611, %v613
    %615 = vst [vmem:[#allocation2] sm:$0xff] %v614
    %v616 = vmul.f32 %v461, %v613
    %617 = vst [vmem:[#allocation2 + $0x8] sm:$0xff] %v616
    %v618 = vmul.f32 %v530, %v613
    %619 = vst [vmem:[#allocation2 + $0x10] sm:$0xff] %v618
    %v620 = vmul.f32 %v532, %v613
    %621 = vst [vmem:[#allocation2 + $0x18] sm:$0xff] %v620
    %v622 = vmul.f32 %v601, %v613
    %623 = vst [vmem:[#allocation2 + $0x20] sm:$0xff] %v622
    %v624 = vmul.f32 %v603, %v613
    %625 = vst [vmem:[#allocation2 + $0x28] sm:$0xff] %v624
    %s626 = scalar_lea.vmem %s2, 16
    %v627 = vld [vmem:[%s626] sm:$0xff]
    %v628 = vld [vmem:[#allocation2] sm:$0xff]
    %v629 = vld [vmem:[#allocation2 + $0x8] sm:$0xff]
    %v630 = vld [vmem:[#allocation2 + $0x10] sm:$0xff]
    %v631 = vld [vmem:[#allocation2 + $0x18] sm:$0xff]
    %v632 = vld [vmem:[#allocation2 + $0x20] sm:$0xff]
    %v633 = vld [vmem:[#allocation2 + $0x28] sm:$0xff]
    %v635 = vsel %vm29, %v627, 0
    %637 = vmatprep.subr.mxu0 %v629
    %638 = vmatpush1.msra.mxu0 %v628
    %639 = vmatprep.subr.mxu0 0.0
    %640 = vmatpush1.msra.mxu0 0.0
    %641 = vmatprep.subr.mxu0 0.0
    %642 = vmatpush1.msra.mxu0 0.0
    %643 = vmatprep.subr.mxu0 0.0
    %644 = vmatpush1.msra.mxu0 0.0
    %645 = vmatprep.subr.mxu0 0.0
    %646 = vmatpush1.msra.mxu0 0.0
    %647 = vmatprep.subr.mxu0 0.0
    %648 = vmatpush1.msra.mxu0 0.0
    %649 = vmatprep.subr.mxu0 0.0
    %650 = vmatpush1.msra.mxu0 0.0
    %651 = vmatprep.subr.mxu0 0.0
    %652 = vmatpush1.msra.mxu0 0.0
    %653 = vmatprep.subr.mxu0 0.0
    %654 = vmatpush1.msra.mxu0 0.0
    %655 = vmatprep.subr.mxu0 0.0
    %656 = vmatpush1.msra.mxu0 0.0
    %657 = vmatprep.subr.mxu0 0.0
    %658 = vmatpush1.msra.mxu0 0.0
    %659 = vmatprep.subr.mxu0 0.0
    %660 = vmatpush1.msra.mxu0 0.0
    %661 = vmatprep.subr.mxu0 0.0
    %662 = vmatpush1.msra.mxu0 0.0
    %663 = vmatprep.subr.mxu0 0.0
    %664 = vmatpush1.msra.mxu0 0.0
    %665 = vmatprep.subr.mxu0 0.0
    %666 = vmatpush1.msra.mxu0 0.0
    %667 = vmatprep.subr.mxu0 0.0
    %668 = vmatpush1.msra.mxu0 0.0
    %669 = vmatprep.subr.mxu0 0.0
    %670 = vmatpush1.msra.mxu0 0.0
    %671 = vmatprep.subr.mxu0 0.0
    %672 = vmatpush1.msra.mxu0 0.0
    %673 = vmatprep.subr.mxu0 0.0
    %674 = vmatpush1.msra.mxu0 0.0
    %675 = vmatprep.subr.mxu0 0.0
    %676 = vmatpush1.msra.mxu0 0.0
    %677 = vmatprep.subr.mxu0 0.0
    %678 = vmatpush1.msra.mxu0 0.0
    %679 = vmatprep.subr.mxu0 0.0
    %680 = vmatpush1.msra.mxu0 0.0
    %681 = vmatprep.subr.mxu0 0.0
    %682 = vmatpush1.msra.mxu0 0.0
    %683 = vmatprep.subr.mxu0 0.0
    %684 = vmatpush1.msra.mxu0 0.0
    %685 = vmatprep.subr.mxu0 0.0
    %686 = vmatpush1.msra.mxu0 0.0
    %687 = vmatprep.subr.mxu0 0.0
    %688 = vmatpush1.msra.mxu0 0.0
    %689 = vmatprep.subr.mxu0 0.0
    %690 = vmatpush1.msra.mxu0 0.0
    %691 = vmatprep.subr.mxu0 0.0
    %692 = vmatpush1.msra.mxu0 0.0
    %693 = vmatprep.subr.mxu0 0.0
    %694 = vmatpush1.msra.mxu0 0.0
    %695 = vmatprep.subr.mxu0 0.0
    %696 = vmatpush1.msra.mxu0 0.0
    %697 = vmatprep.subr.mxu0 0.0
    %698 = vmatpush1.msra.mxu0 0.0
    %699 = vmatprep.subr.mxu0 0.0
    %700 = vmatpush1.msra.mxu0 0.0
    %701 = vmatprep.mubr.f32.mxu0 0.0
    %702 = vmatmul.mubr.f32.gmra.mrb[0].mxu0 %v635
    %v703 = vpop.f32.mrb[0].mxu0
    %v704 = vadd.f32 0.0, %v703
    %v705 = vpop.f32.mrb[0].mxu0
    %v706 = vadd.f32 0.0, %v705
    %707 = vdwg.mxu0
    %708 = vmatprep.subr.mxu0 %v631
    %709 = vmatpush1.msra.mxu0 %v630
    %710 = vmatprep.subr.mxu0 0.0
    %711 = vmatpush1.msra.mxu0 0.0
    %712 = vmatprep.subr.mxu0 0.0
    %713 = vmatpush1.msra.mxu0 0.0
    %714 = vmatprep.subr.mxu0 0.0
    %715 = vmatpush1.msra.mxu0 0.0
    %716 = vmatprep.subr.mxu0 0.0
    %717 = vmatpush1.msra.mxu0 0.0
    %718 = vmatprep.subr.mxu0 0.0
    %719 = vmatpush1.msra.mxu0 0.0
    %720 = vmatprep.subr.mxu0 0.0
    %721 = vmatpush1.msra.mxu0 0.0
    %722 = vmatprep.subr.mxu0 0.0
    %723 = vmatpush1.msra.mxu0 0.0
    %724 = vmatprep.subr.mxu0 0.0
    %725 = vmatpush1.msra.mxu0 0.0
    %726 = vmatprep.subr.mxu0 0.0
    %727 = vmatpush1.msra.mxu0 0.0
    %728 = vmatprep.subr.mxu0 0.0
    %729 = vmatpush1.msra.mxu0 0.0
    %730 = vmatprep.subr.mxu0 0.0
    %731 = vmatpush1.msra.mxu0 0.0
    %732 = vmatprep.subr.mxu0 0.0
    %733 = vmatpush1.msra.mxu0 0.0
    %734 = vmatprep.subr.mxu0 0.0
    %735 = vmatpush1.msra.mxu0 0.0
    %736 = vmatprep.subr.mxu0 0.0
    %737 = vmatpush1.msra.mxu0 0.0
    %738 = vmatprep.subr.mxu0 0.0
    %739 = vmatpush1.msra.mxu0 0.0
    %740 = vmatprep.subr.mxu0 0.0
    %741 = vmatpush1.msra.mxu0 0.0
    %742 = vmatprep.subr.mxu0 0.0
    %743 = vmatpush1.msra.mxu0 0.0
    %744 = vmatprep.subr.mxu0 0.0
    %745 = vmatpush1.msra.mxu0 0.0
    %746 = vmatprep.subr.mxu0 0.0
    %747 = vmatpush1.msra.mxu0 0.0
    %748 = vmatprep.subr.mxu0 0.0
    %749 = vmatpush1.msra.mxu0 0.0
    %750 = vmatprep.subr.mxu0 0.0
    %751 = vmatpush1.msra.mxu0 0.0
    %752 = vmatprep.subr.mxu0 0.0
    %753 = vmatpush1.msra.mxu0 0.0
    %754 = vmatprep.subr.mxu0 0.0
    %755 = vmatpush1.msra.mxu0 0.0
    %756 = vmatprep.subr.mxu0 0.0
    %757 = vmatpush1.msra.mxu0 0.0
    %758 = vmatprep.subr.mxu0 0.0
    %759 = vmatpush1.msra.mxu0 0.0
    %760 = vmatprep.subr.mxu0 0.0
    %761 = vmatpush1.msra.mxu0 0.0
    %762 = vmatprep.subr.mxu0 0.0
    %763 = vmatpush1.msra.mxu0 0.0
    %764 = vmatprep.subr.mxu0 0.0
    %765 = vmatpush1.msra.mxu0 0.0
    %766 = vmatprep.subr.mxu0 0.0
    %767 = vmatpush1.msra.mxu0 0.0
    %768 = vmatprep.subr.mxu0 0.0
    %769 = vmatpush1.msra.mxu0 0.0
    %770 = vmatprep.subr.mxu0 0.0
    %771 = vmatpush1.msra.mxu0 0.0
    %772 = vmatprep.mubr.f32.mxu0 0.0
    %773 = vmatmul.mubr.f32.gmra.mrb[0].mxu0 %v635
    %v774 = vpop.f32.mrb[0].mxu0
    %v775 = vadd.f32 0.0, %v774
    %v776 = vpop.f32.mrb[0].mxu0
    %v777 = vadd.f32 0.0, %v776
    %778 = vdwg.mxu0
    %779 = vmatprep.subr.mxu0 %v633
    %780 = vmatpush1.msra.mxu0 %v632
    %781 = vmatprep.subr.mxu0 0.0
    %782 = vmatpush1.msra.mxu0 0.0
    %783 = vmatprep.subr.mxu0 0.0
    %784 = vmatpush1.msra.mxu0 0.0
    %785 = vmatprep.subr.mxu0 0.0
    %786 = vmatpush1.msra.mxu0 0.0
    %787 = vmatprep.subr.mxu0 0.0
    %788 = vmatpush1.msra.mxu0 0.0
    %789 = vmatprep.subr.mxu0 0.0
    %790 = vmatpush1.msra.mxu0 0.0
    %791 = vmatprep.subr.mxu0 0.0
    %792 = vmatpush1.msra.mxu0 0.0
    %793 = vmatprep.subr.mxu0 0.0
    %794 = vmatpush1.msra.mxu0 0.0
    %795 = vmatprep.subr.mxu0 0.0
    %796 = vmatpush1.msra.mxu0 0.0
    %797 = vmatprep.subr.mxu0 0.0
    %798 = vmatpush1.msra.mxu0 0.0
    %799 = vmatprep.subr.mxu0 0.0
    %800 = vmatpush1.msra.mxu0 0.0
    %801 = vmatprep.subr.mxu0 0.0
    %802 = vmatpush1.msra.mxu0 0.0
    %803 = vmatprep.subr.mxu0 0.0
    %804 = vmatpush1.msra.mxu0 0.0
    %805 = vmatprep.subr.mxu0 0.0
    %806 = vmatpush1.msra.mxu0 0.0
    %807 = vmatprep.subr.mxu0 0.0
    %808 = vmatpush1.msra.mxu0 0.0
    %809 = vmatprep.subr.mxu0 0.0
    %810 = vmatpush1.msra.mxu0 0.0
    %811 = vmatprep.subr.mxu0 0.0
    %812 = vmatpush1.msra.mxu0 0.0
    %813 = vmatprep.subr.mxu0 0.0
    %814 = vmatpush1.msra.mxu0 0.0
    %815 = vmatprep.subr.mxu0 0.0
    %816 = vmatpush1.msra.mxu0 0.0
    %817 = vmatprep.subr.mxu0 0.0
    %818 = vmatpush1.msra.mxu0 0.0
    %819 = vmatprep.subr.mxu0 0.0
    %820 = vmatpush1.msra.mxu0 0.0
    %821 = vmatprep.subr.mxu0 0.0
    %822 = vmatpush1.msra.mxu0 0.0
    %823 = vmatprep.subr.mxu0 0.0
    %824 = vmatpush1.msra.mxu0 0.0
    %825 = vmatprep.subr.mxu0 0.0
    %826 = vmatpush1.msra.mxu0 0.0
    %827 = vmatprep.subr.mxu0 0.0
    %828 = vmatpush1.msra.mxu0 0.0
    %829 = vmatprep.subr.mxu0 0.0
    %830 = vmatpush1.msra.mxu0 0.0
    %831 = vmatprep.subr.mxu0 0.0
    %832 = vmatpush1.msra.mxu0 0.0
    %833 = vmatprep.subr.mxu0 0.0
    %834 = vmatpush1.msra.mxu0 0.0
    %835 = vmatprep.subr.mxu0 0.0
    %836 = vmatpush1.msra.mxu0 0.0
    %837 = vmatprep.subr.mxu0 0.0
    %838 = vmatpush1.msra.mxu0 0.0
    %839 = vmatprep.subr.mxu0 0.0
    %840 = vmatpush1.msra.mxu0 0.0
    %841 = vmatprep.subr.mxu0 0.0
    %842 = vmatpush1.msra.mxu0 0.0
    %843 = vmatprep.mubr.f32.mxu0 0.0
    %844 = vmatmul.mubr.f32.gmra.mrb[0].mxu0 %v635
    %v845 = vpop.f32.mrb[0].mxu0
    %v846 = vadd.f32 0.0, %v845
    %v847 = vpop.f32.mrb[0].mxu0
    %v848 = vadd.f32 0.0, %v847
    %849 = vdwg.mxu0
    %v850 = vld [vmem:[%s3] sm:$0xff]
    %852 = vset.pattern.permute.xlu0 3
    %853 = vperm.xlu0 %852, %v850
    %v854 = vpop.permute.xlu0 %853
    %v856 = vadd.f32 %v704, %v854
    %vm857 = vcmp.gt.f32.partialorder %v856, 0.0
    %v858 = vsel %vm857, 1.0, 0.01
    %v859 = vmul.f32 %v856, %v858
    %860 = vst [vmem:[#allocation2] sm:$0xff] %v859
    %v861 = vmul.f32 %v706, %v858
    %862 = vst [vmem:[#allocation2 + $0x8] sm:$0xff] %v861
    %v863 = vmul.f32 %v775, %v858
    %864 = vst [vmem:[#allocation2 + $0x10] sm:$0xff] %v863
    %v865 = vmul.f32 %v777, %v858
    %866 = vst [vmem:[#allocation2 + $0x18] sm:$0xff] %v865
    %v867 = vmul.f32 %v846, %v858
    %868 = vst [vmem:[#allocation2 + $0x20] sm:$0xff] %v867
    %v869 = vmul.f32 %v848, %v858
    %870 = vst [vmem:[#allocation2 + $0x28] sm:$0xff] %v869
    %s871 = scalar_lea.vmem %s2, 24
    %v872 = vld [vmem:[%s871] sm:$0xff]
    %v873 = vld [vmem:[#allocation2] sm:$0xff]
    %v874 = vld [vmem:[#allocation2 + $0x8] sm:$0xff]
    %v875 = vld [vmem:[#allocation2 + $0x10] sm:$0xff]
    %v876 = vld [vmem:[#allocation2 + $0x18] sm:$0xff]
    %v877 = vld [vmem:[#allocation2 + $0x20] sm:$0xff]
    %v878 = vld [vmem:[#allocation2 + $0x28] sm:$0xff]
    %v880 = vsel %vm29, %v872, 0
    %882 = vmatprep.subr.mxu0 %v874
    %883 = vmatpush1.msra.mxu0 %v873
    %884 = vmatprep.subr.mxu0 0.0
    %885 = vmatpush1.msra.mxu0 0.0
    %886 = vmatprep.subr.mxu0 0.0
    %887 = vmatpush1.msra.mxu0 0.0
    %888 = vmatprep.subr.mxu0 0.0
    %889 = vmatpush1.msra.mxu0 0.0
    %890 = vmatprep.subr.mxu0 0.0
    %891 = vmatpush1.msra.mxu0 0.0
    %892 = vmatprep.subr.mxu0 0.0
    %893 = vmatpush1.msra.mxu0 0.0
    %894 = vmatprep.subr.mxu0 0.0
    %895 = vmatpush1.msra.mxu0 0.0
    %896 = vmatprep.subr.mxu0 0.0
    %897 = vmatpush1.msra.mxu0 0.0
    %898 = vmatprep.subr.mxu0 0.0
    %899 = vmatpush1.msra.mxu0 0.0
    %900 = vmatprep.subr.mxu0 0.0
    %901 = vmatpush1.msra.mxu0 0.0
    %902 = vmatprep.subr.mxu0 0.0
    %903 = vmatpush1.msra.mxu0 0.0
    %904 = vmatprep.subr.mxu0 0.0
    %905 = vmatpush1.msra.mxu0 0.0
    %906 = vmatprep.subr.mxu0 0.0
    %907 = vmatpush1.msra.mxu0 0.0
    %908 = vmatprep.subr.mxu0 0.0
    %909 = vmatpush1.msra.mxu0 0.0
    %910 = vmatprep.subr.mxu0 0.0
    %911 = vmatpush1.msra.mxu0 0.0
    %912 = vmatprep.subr.mxu0 0.0
    %913 = vmatpush1.msra.mxu0 0.0
    %914 = vmatprep.subr.mxu0 0.0
    %915 = vmatpush1.msra.mxu0 0.0
    %916 = vmatprep.subr.mxu0 0.0
    %917 = vmatpush1.msra.mxu0 0.0
    %918 = vmatprep.subr.mxu0 0.0
    %919 = vmatpush1.msra.mxu0 0.0
    %920 = vmatprep.subr.mxu0 0.0
    %921 = vmatpush1.msra.mxu0 0.0
    %922 = vmatprep.subr.mxu0 0.0
    %923 = vmatpush1.msra.mxu0 0.0
    %924 = vmatprep.subr.mxu0 0.0
    %925 = vmatpush1.msra.mxu0 0.0
    %926 = vmatprep.subr.mxu0 0.0
    %927 = vmatpush1.msra.mxu0 0.0
    %928 = vmatprep.subr.mxu0 0.0
    %929 = vmatpush1.msra.mxu0 0.0
    %930 = vmatprep.subr.mxu0 0.0
    %931 = vmatpush1.msra.mxu0 0.0
    %932 = vmatprep.subr.mxu0 0.0
    %933 = vmatpush1.msra.mxu0 0.0
    %934 = vmatprep.subr.mxu0 0.0
    %935 = vmatpush1.msra.mxu0 0.0
    %936 = vmatprep.subr.mxu0 0.0
    %937 = vmatpush1.msra.mxu0 0.0
    %938 = vmatprep.subr.mxu0 0.0
    %939 = vmatpush1.msra.mxu0 0.0
    %940 = vmatprep.subr.mxu0 0.0
    %941 = vmatpush1.msra.mxu0 0.0
    %942 = vmatprep.subr.mxu0 0.0
    %943 = vmatpush1.msra.mxu0 0.0
    %944 = vmatprep.subr.mxu0 0.0
    %945 = vmatpush1.msra.mxu0 0.0
    %946 = vmatprep.mubr.f32.mxu0 0.0
    %947 = vmatmul.mubr.f32.gmra.mrb[0].mxu0 %v880
    %v948 = vpop.f32.mrb[0].mxu0
    %v949 = vadd.f32 0.0, %v948
    %v950 = vpop.f32.mrb[0].mxu0
    %v951 = vadd.f32 0.0, %v950
    %952 = vdwg.mxu0
    %953 = vmatprep.subr.mxu0 %v876
    %954 = vmatpush1.msra.mxu0 %v875
    %955 = vmatprep.subr.mxu0 0.0
    %956 = vmatpush1.msra.mxu0 0.0
    %957 = vmatprep.subr.mxu0 0.0
    %958 = vmatpush1.msra.mxu0 0.0
    %959 = vmatprep.subr.mxu0 0.0
    %960 = vmatpush1.msra.mxu0 0.0
    %961 = vmatprep.subr.mxu0 0.0
    %962 = vmatpush1.msra.mxu0 0.0
    %963 = vmatprep.subr.mxu0 0.0
    %964 = vmatpush1.msra.mxu0 0.0
    %965 = vmatprep.subr.mxu0 0.0
    %966 = vmatpush1.msra.mxu0 0.0
    %967 = vmatprep.subr.mxu0 0.0
    %968 = vmatpush1.msra.mxu0 0.0
    %969 = vmatprep.subr.mxu0 0.0
    %970 = vmatpush1.msra.mxu0 0.0
    %971 = vmatprep.subr.mxu0 0.0
    %972 = vmatpush1.msra.mxu0 0.0
    %973 = vmatprep.subr.mxu0 0.0
    %974 = vmatpush1.msra.mxu0 0.0
    %975 = vmatprep.subr.mxu0 0.0
    %976 = vmatpush1.msra.mxu0 0.0
    %977 = vmatprep.subr.mxu0 0.0
    %978 = vmatpush1.msra.mxu0 0.0
    %979 = vmatprep.subr.mxu0 0.0
    %980 = vmatpush1.msra.mxu0 0.0
    %981 = vmatprep.subr.mxu0 0.0
    %982 = vmatpush1.msra.mxu0 0.0
    %983 = vmatprep.subr.mxu0 0.0
    %984 = vmatpush1.msra.mxu0 0.0
    %985 = vmatprep.subr.mxu0 0.0
    %986 = vmatpush1.msra.mxu0 0.0
    %987 = vmatprep.subr.mxu0 0.0
    %988 = vmatpush1.msra.mxu0 0.0
    %989 = vmatprep.subr.mxu0 0.0
    %990 = vmatpush1.msra.mxu0 0.0
    %991 = vmatprep.subr.mxu0 0.0
    %992 = vmatpush1.msra.mxu0 0.0
    %993 = vmatprep.subr.mxu0 0.0
    %994 = vmatpush1.msra.mxu0 0.0
    %995 = vmatprep.subr.mxu0 0.0
    %996 = vmatpush1.msra.mxu0 0.0
    %997 = vmatprep.subr.mxu0 0.0
    %998 = vmatpush1.msra.mxu0 0.0
    %999 = vmatprep.subr.mxu0 0.0
    %1000 = vmatpush1.msra.mxu0 0.0
    %1001 = vmatprep.subr.mxu0 0.0
    %1002 = vmatpush1.msra.mxu0 0.0
    %1003 = vmatprep.subr.mxu0 0.0
    %1004 = vmatpush1.msra.mxu0 0.0
    %1005 = vmatprep.subr.mxu0 0.0
    %1006 = vmatpush1.msra.mxu0 0.0
    %1007 = vmatprep.subr.mxu0 0.0
    %1008 = vmatpush1.msra.mxu0 0.0
    %1009 = vmatprep.subr.mxu0 0.0
    %1010 = vmatpush1.msra.mxu0 0.0
    %1011 = vmatprep.subr.mxu0 0.0
    %1012 = vmatpush1.msra.mxu0 0.0
    %1013 = vmatprep.subr.mxu0 0.0
    %1014 = vmatpush1.msra.mxu0 0.0
    %1015 = vmatprep.subr.mxu0 0.0
    %1016 = vmatpush1.msra.mxu0 0.0
    %1017 = vmatprep.mubr.f32.mxu0 0.0
    %1018 = vmatmul.mubr.f32.gmra.mrb[0].mxu0 %v880
    %v1019 = vpop.f32.mrb[0].mxu0
    %v1020 = vadd.f32 0.0, %v1019
    %v1021 = vpop.f32.mrb[0].mxu0
    %v1022 = vadd.f32 0.0, %v1021
    %1023 = vdwg.mxu0
    %1024 = vmatprep.subr.mxu0 %v878
    %1025 = vmatpush1.msra.mxu0 %v877
    %1026 = vmatprep.subr.mxu0 0.0
    %1027 = vmatpush1.msra.mxu0 0.0
    %1028 = vmatprep.subr.mxu0 0.0
    %1029 = vmatpush1.msra.mxu0 0.0
    %1030 = vmatprep.subr.mxu0 0.0
    %1031 = vmatpush1.msra.mxu0 0.0
    %1032 = vmatprep.subr.mxu0 0.0
    %1033 = vmatpush1.msra.mxu0 0.0
    %1034 = vmatprep.subr.mxu0 0.0
    %1035 = vmatpush1.msra.mxu0 0.0
    %1036 = vmatprep.subr.mxu0 0.0
    %1037 = vmatpush1.msra.mxu0 0.0
    %1038 = vmatprep.subr.mxu0 0.0
    %1039 = vmatpush1.msra.mxu0 0.0
    %1040 = vmatprep.subr.mxu0 0.0
    %1041 = vmatpush1.msra.mxu0 0.0
    %1042 = vmatprep.subr.mxu0 0.0
    %1043 = vmatpush1.msra.mxu0 0.0
    %1044 = vmatprep.subr.mxu0 0.0
    %1045 = vmatpush1.msra.mxu0 0.0
    %1046 = vmatprep.subr.mxu0 0.0
    %1047 = vmatpush1.msra.mxu0 0.0
    %1048 = vmatprep.subr.mxu0 0.0
    %1049 = vmatpush1.msra.mxu0 0.0
    %1050 = vmatprep.subr.mxu0 0.0
    %1051 = vmatpush1.msra.mxu0 0.0
    %1052 = vmatprep.subr.mxu0 0.0
    %1053 = vmatpush1.msra.mxu0 0.0
    %1054 = vmatprep.subr.mxu0 0.0
    %1055 = vmatpush1.msra.mxu0 0.0
    %1056 = vmatprep.subr.mxu0 0.0
    %1057 = vmatpush1.msra.mxu0 0.0
    %1058 = vmatprep.subr.mxu0 0.0
    %1059 = vmatpush1.msra.mxu0 0.0
    %1060 = vmatprep.subr.mxu0 0.0
    %1061 = vmatpush1.msra.mxu0 0.0
    %1062 = vmatprep.subr.mxu0 0.0
    %1063 = vmatpush1.msra.mxu0 0.0
    %1064 = vmatprep.subr.mxu0 0.0
    %1065 = vmatpush1.msra.mxu0 0.0
    %1066 = vmatprep.subr.mxu0 0.0
    %1067 = vmatpush1.msra.mxu0 0.0
    %1068 = vmatprep.subr.mxu0 0.0
    %1069 = vmatpush1.msra.mxu0 0.0
    %1070 = vmatprep.subr.mxu0 0.0
    %1071 = vmatpush1.msra.mxu0 0.0
    %1072 = vmatprep.subr.mxu0 0.0
    %1073 = vmatpush1.msra.mxu0 0.0
    %1074 = vmatprep.subr.mxu0 0.0
    %1075 = vmatpush1.msra.mxu0 0.0
    %1076 = vmatprep.subr.mxu0 0.0
    %1077 = vmatpush1.msra.mxu0 0.0
    %1078 = vmatprep.subr.mxu0 0.0
    %1079 = vmatpush1.msra.mxu0 0.0
    %1080 = vmatprep.subr.mxu0 0.0
    %1081 = vmatpush1.msra.mxu0 0.0
    %1082 = vmatprep.subr.mxu0 0.0
    %1083 = vmatpush1.msra.mxu0 0.0
    %1084 = vmatprep.subr.mxu0 0.0
    %1085 = vmatpush1.msra.mxu0 0.0
    %1086 = vmatprep.subr.mxu0 0.0
    %1087 = vmatpush1.msra.mxu0 0.0
    %1088 = vmatprep.mubr.f32.mxu0 0.0
    %1089 = vmatmul.mubr.f32.gmra.mrb[0].mxu0 %v880
    %v1090 = vpop.f32.mrb[0].mxu0
    %v1091 = vadd.f32 0.0, %v1090
    %v1092 = vpop.f32.mrb[0].mxu0
    %v1093 = vadd.f32 0.0, %v1092
    %1094 = vdwg.mxu0
    %v1095 = vld [vmem:[%s3] sm:$0xff]
    %1097 = vset.pattern.permute.xlu0 4
    %1098 = vperm.xlu0 %1097, %v1095
    %v1099 = vpop.permute.xlu0 %1098
    %v1101 = vadd.f32 %v949, %v1099
    %vm1102 = vcmp.gt.f32.partialorder %v1101, 0.0
    %v1103 = vsel %vm1102, 1.0, 0.01
    %v1104 = vmul.f32 %v1101, %v1103
    %1105 = vst [vmem:[#allocation2] sm:$0xff] %v1104
    %v1106 = vmul.f32 %v951, %v1103
    %1107 = vst [vmem:[#allocation2 + $0x8] sm:$0xff] %v1106
    %v1108 = vmul.f32 %v1020, %v1103
    %1109 = vst [vmem:[#allocation2 + $0x10] sm:$0xff] %v1108
    %v1110 = vmul.f32 %v1022, %v1103
    %1111 = vst [vmem:[#allocation2 + $0x18] sm:$0xff] %v1110
    %v1112 = vmul.f32 %v1091, %v1103
    %1113 = vst [vmem:[#allocation2 + $0x20] sm:$0xff] %v1112
    %v1114 = vmul.f32 %v1093, %v1103
    %1115 = vst [vmem:[#allocation2 + $0x28] sm:$0xff] %v1114
    %s1116 = scalar_lea.vmem %s2, 32
    %v1117 = vld [vmem:[%s1116] sm:$0xff]
    %v1118 = vld [vmem:[#allocation2] sm:$0xff]
    %v1119 = vld [vmem:[#allocation2 + $0x8] sm:$0xff]
    %v1120 = vld [vmem:[#allocation2 + $0x10] sm:$0xff]
    %v1121 = vld [vmem:[#allocation2 + $0x18] sm:$0xff]
    %v1122 = vld [vmem:[#allocation2 + $0x20] sm:$0xff]
    %v1123 = vld [vmem:[#allocation2 + $0x28] sm:$0xff]
    %v1125 = vsel %vm29, %v1117, 0
    %1127 = vmatprep.subr.mxu0 %v1119
    %1128 = vmatpush1.msra.mxu0 %v1118
    %1129 = vmatprep.subr.mxu0 0.0
    %1130 = vmatpush1.msra.mxu0 0.0
    %1131 = vmatprep.subr.mxu0 0.0
    %1132 = vmatpush1.msra.mxu0 0.0
    %1133 = vmatprep.subr.mxu0 0.0
    %1134 = vmatpush1.msra.mxu0 0.0
    %1135 = vmatprep.subr.mxu0 0.0
    %1136 = vmatpush1.msra.mxu0 0.0
    %1137 = vmatprep.subr.mxu0 0.0
    %1138 = vmatpush1.msra.mxu0 0.0
    %1139 = vmatprep.subr.mxu0 0.0
    %1140 = vmatpush1.msra.mxu0 0.0
    %1141 = vmatprep.subr.mxu0 0.0
    %1142 = vmatpush1.msra.mxu0 0.0
    %1143 = vmatprep.subr.mxu0 0.0
    %1144 = vmatpush1.msra.mxu0 0.0
    %1145 = vmatprep.subr.mxu0 0.0
    %1146 = vmatpush1.msra.mxu0 0.0
    %1147 = vmatprep.subr.mxu0 0.0
    %1148 = vmatpush1.msra.mxu0 0.0
    %1149 = vmatprep.subr.mxu0 0.0
    %1150 = vmatpush1.msra.mxu0 0.0
    %1151 = vmatprep.subr.mxu0 0.0
    %1152 = vmatpush1.msra.mxu0 0.0
    %1153 = vmatprep.subr.mxu0 0.0
    %1154 = vmatpush1.msra.mxu0 0.0
    %1155 = vmatprep.subr.mxu0 0.0
    %1156 = vmatpush1.msra.mxu0 0.0
    %1157 = vmatprep.subr.mxu0 0.0
    %1158 = vmatpush1.msra.mxu0 0.0
    %1159 = vmatprep.subr.mxu0 0.0
    %1160 = vmatpush1.msra.mxu0 0.0
    %1161 = vmatprep.subr.mxu0 0.0
    %1162 = vmatpush1.msra.mxu0 0.0
    %1163 = vmatprep.subr.mxu0 0.0
    %1164 = vmatpush1.msra.mxu0 0.0
    %1165 = vmatprep.subr.mxu0 0.0
    %1166 = vmatpush1.msra.mxu0 0.0
    %1167 = vmatprep.subr.mxu0 0.0
    %1168 = vmatpush1.msra.mxu0 0.0
    %1169 = vmatprep.subr.mxu0 0.0
    %1170 = vmatpush1.msra.mxu0 0.0
    %1171 = vmatprep.subr.mxu0 0.0
    %1172 = vmatpush1.msra.mxu0 0.0
    %1173 = vmatprep.subr.mxu0 0.0
    %1174 = vmatpush1.msra.mxu0 0.0
    %1175 = vmatprep.subr.mxu0 0.0
    %1176 = vmatpush1.msra.mxu0 0.0
    %1177 = vmatprep.subr.mxu0 0.0
    %1178 = vmatpush1.msra.mxu0 0.0
    %1179 = vmatprep.subr.mxu0 0.0
    %1180 = vmatpush1.msra.mxu0 0.0
    %1181 = vmatprep.subr.mxu0 0.0
    %1182 = vmatpush1.msra.mxu0 0.0
    %1183 = vmatprep.subr.mxu0 0.0
    %1184 = vmatpush1.msra.mxu0 0.0
    %1185 = vmatprep.subr.mxu0 0.0
    %1186 = vmatpush1.msra.mxu0 0.0
    %1187 = vmatprep.subr.mxu0 0.0
    %1188 = vmatpush1.msra.mxu0 0.0
    %1189 = vmatprep.subr.mxu0 0.0
    %1190 = vmatpush1.msra.mxu0 0.0
    %1191 = vmatprep.mubr.f32.mxu0 0.0
    %1192 = vmatmul.mubr.f32.gmra.mrb[0].mxu0 %v1125
    %v1193 = vpop.f32.mrb[0].mxu0
    %v1194 = vadd.f32 0.0, %v1193
    %v1195 = vpop.f32.mrb[0].mxu0
    %v1196 = vadd.f32 0.0, %v1195
    %1197 = vdwg.mxu0
    %1198 = vmatprep.subr.mxu0 %v1121
    %1199 = vmatpush1.msra.mxu0 %v1120
    %1200 = vmatprep.subr.mxu0 0.0
    %1201 = vmatpush1.msra.mxu0 0.0
    %1202 = vmatprep.subr.mxu0 0.0
    %1203 = vmatpush1.msra.mxu0 0.0
    %1204 = vmatprep.subr.mxu0 0.0
    %1205 = vmatpush1.msra.mxu0 0.0
    %1206 = vmatprep.subr.mxu0 0.0
    %1207 = vmatpush1.msra.mxu0 0.0
    %1208 = vmatprep.subr.mxu0 0.0
    %1209 = vmatpush1.msra.mxu0 0.0
    %1210 = vmatprep.subr.mxu0 0.0
    %1211 = vmatpush1.msra.mxu0 0.0
    %1212 = vmatprep.subr.mxu0 0.0
    %1213 = vmatpush1.msra.mxu0 0.0
    %1214 = vmatprep.subr.mxu0 0.0
    %1215 = vmatpush1.msra.mxu0 0.0
    %1216 = vmatprep.subr.mxu0 0.0
    %1217 = vmatpush1.msra.mxu0 0.0
    %1218 = vmatprep.subr.mxu0 0.0
    %1219 = vmatpush1.msra.mxu0 0.0
    %1220 = vmatprep.subr.mxu0 0.0
    %1221 = vmatpush1.msra.mxu0 0.0
    %1222 = vmatprep.subr.mxu0 0.0
    %1223 = vmatpush1.msra.mxu0 0.0
    %1224 = vmatprep.subr.mxu0 0.0
    %1225 = vmatpush1.msra.mxu0 0.0
    %1226 = vmatprep.subr.mxu0 0.0
    %1227 = vmatpush1.msra.mxu0 0.0
    %1228 = vmatprep.subr.mxu0 0.0
    %1229 = vmatpush1.msra.mxu0 0.0
    %1230 = vmatprep.subr.mxu0 0.0
    %1231 = vmatpush1.msra.mxu0 0.0
    %1232 = vmatprep.subr.mxu0 0.0
    %1233 = vmatpush1.msra.mxu0 0.0
    %1234 = vmatprep.subr.mxu0 0.0
    %1235 = vmatpush1.msra.mxu0 0.0
    %1236 = vmatprep.subr.mxu0 0.0
    %1237 = vmatpush1.msra.mxu0 0.0
    %1238 = vmatprep.subr.mxu0 0.0
    %1239 = vmatpush1.msra.mxu0 0.0
    %1240 = vmatprep.subr.mxu0 0.0
    %1241 = vmatpush1.msra.mxu0 0.0
    %1242 = vmatprep.subr.mxu0 0.0
    %1243 = vmatpush1.msra.mxu0 0.0
    %1244 = vmatprep.subr.mxu0 0.0
    %1245 = vmatpush1.msra.mxu0 0.0
    %1246 = vmatprep.subr.mxu0 0.0
    %1247 = vmatpush1.msra.mxu0 0.0
    %1248 = vmatprep.subr.mxu0 0.0
    %1249 = vmatpush1.msra.mxu0 0.0
    %1250 = vmatprep.subr.mxu0 0.0
    %1251 = vmatpush1.msra.mxu0 0.0
    %1252 = vmatprep.subr.mxu0 0.0
    %1253 = vmatpush1.msra.mxu0 0.0
    %1254 = vmatprep.subr.mxu0 0.0
    %1255 = vmatpush1.msra.mxu0 0.0
    %1256 = vmatprep.subr.mxu0 0.0
    %1257 = vmatpush1.msra.mxu0 0.0
    %1258 = vmatprep.subr.mxu0 0.0
    %1259 = vmatpush1.msra.mxu0 0.0
    %1260 = vmatprep.subr.mxu0 0.0
    %1261 = vmatpush1.msra.mxu0 0.0
    %1262 = vmatprep.mubr.f32.mxu0 0.0
    %1263 = vmatmul.mubr.f32.gmra.mrb[0].mxu0 %v1125
    %v1264 = vpop.f32.mrb[0].mxu0
    %v1265 = vadd.f32 0.0, %v1264
    %v1266 = vpop.f32.mrb[0].mxu0
    %v1267 = vadd.f32 0.0, %v1266
    %1268 = vdwg.mxu0
    %1269 = vmatprep.subr.mxu0 %v1123
    %1270 = vmatpush1.msra.mxu0 %v1122
    %1271 = vmatprep.subr.mxu0 0.0
    %1272 = vmatpush1.msra.mxu0 0.0
    %1273 = vmatprep.subr.mxu0 0.0
    %1274 = vmatpush1.msra.mxu0 0.0
    %1275 = vmatprep.subr.mxu0 0.0
    %1276 = vmatpush1.msra.mxu0 0.0
    %1277 = vmatprep.subr.mxu0 0.0
    %1278 = vmatpush1.msra.mxu0 0.0
    %1279 = vmatprep.subr.mxu0 0.0
    %1280 = vmatpush1.msra.mxu0 0.0
    %1281 = vmatprep.subr.mxu0 0.0
    %1282 = vmatpush1.msra.mxu0 0.0
    %1283 = vmatprep.subr.mxu0 0.0
    %1284 = vmatpush1.msra.mxu0 0.0
    %1285 = vmatprep.subr.mxu0 0.0
    %1286 = vmatpush1.msra.mxu0 0.0
    %1287 = vmatprep.subr.mxu0 0.0
    %1288 = vmatpush1.msra.mxu0 0.0
    %1289 = vmatprep.subr.mxu0 0.0
    %1290 = vmatpush1.msra.mxu0 0.0
    %1291 = vmatprep.subr.mxu0 0.0
    %1292 = vmatpush1.msra.mxu0 0.0
    %1293 = vmatprep.subr.mxu0 0.0
    %1294 = vmatpush1.msra.mxu0 0.0
    %1295 = vmatprep.subr.mxu0 0.0
    %1296 = vmatpush1.msra.mxu0 0.0
    %1297 = vmatprep.subr.mxu0 0.0
    %1298 = vmatpush1.msra.mxu0 0.0
    %1299 = vmatprep.subr.mxu0 0.0
    %1300 = vmatpush1.msra.mxu0 0.0
    %1301 = vmatprep.subr.mxu0 0.0
    %1302 = vmatpush1.msra.mxu0 0.0
    %1303 = vmatprep.subr.mxu0 0.0
    %1304 = vmatpush1.msra.mxu0 0.0
    %1305 = vmatprep.subr.mxu0 0.0
    %1306 = vmatpush1.msra.mxu0 0.0
    %1307 = vmatprep.subr.mxu0 0.0
    %1308 = vmatpush1.msra.mxu0 0.0
    %1309 = vmatprep.subr.mxu0 0.0
    %1310 = vmatpush1.msra.mxu0 0.0
    %1311 = vmatprep.subr.mxu0 0.0
    %1312 = vmatpush1.msra.mxu0 0.0
    %1313 = vmatprep.subr.mxu0 0.0
    %1314 = vmatpush1.msra.mxu0 0.0
    %1315 = vmatprep.subr.mxu0 0.0
    %1316 = vmatpush1.msra.mxu0 0.0
    %1317 = vmatprep.subr.mxu0 0.0
    %1318 = vmatpush1.msra.mxu0 0.0
    %1319 = vmatprep.subr.mxu0 0.0
    %1320 = vmatpush1.msra.mxu0 0.0
    %1321 = vmatprep.subr.mxu0 0.0
    %1322 = vmatpush1.msra.mxu0 0.0
    %1323 = vmatprep.subr.mxu0 0.0
    %1324 = vmatpush1.msra.mxu0 0.0
    %1325 = vmatprep.subr.mxu0 0.0
    %1326 = vmatpush1.msra.mxu0 0.0
    %1327 = vmatprep.subr.mxu0 0.0
    %1328 = vmatpush1.msra.mxu0 0.0
    %1329 = vmatprep.subr.mxu0 0.0
    %1330 = vmatpush1.msra.mxu0 0.0
    %1331 = vmatprep.subr.mxu0 0.0
    %1332 = vmatpush1.msra.mxu0 0.0
    %1333 = vmatprep.mubr.f32.mxu0 0.0
    %1334 = vmatmul.mubr.f32.gmra.mrb[0].mxu0 %v1125
    %v1335 = vpop.f32.mrb[0].mxu0
    %v1336 = vadd.f32 0.0, %v1335
    %v1337 = vpop.f32.mrb[0].mxu0
    %v1338 = vadd.f32 0.0, %v1337
    %1339 = vdwg.mxu0
    %v1340 = vld [vmem:[%s3] sm:$0xff]
    %1342 = vset.pattern.permute.xlu0 5
    %1343 = vperm.xlu0 %1342, %v1340
    %v1344 = vpop.permute.xlu0 %1343
    %v1346 = vadd.f32 %v1194, %v1344
    %vm1347 = vcmp.gt.f32.partialorder %v1346, 0.0
    %v1348 = vsel %vm1347, 1.0, 0.01
    %v1349 = vmul.f32 %v1346, %v1348
    %1350 = vst [vmem:[#allocation2] sm:$0xff] %v1349
    %v1351 = vmul.f32 %v1196, %v1348
    %1352 = vst [vmem:[#allocation2 + $0x8] sm:$0xff] %v1351
    %v1353 = vmul.f32 %v1265, %v1348
    %1354 = vst [vmem:[#allocation2 + $0x10] sm:$0xff] %v1353
    %v1355 = vmul.f32 %v1267, %v1348
    %1356 = vst [vmem:[#allocation2 + $0x18] sm:$0xff] %v1355
    %v1357 = vmul.f32 %v1336, %v1348
    %1358 = vst [vmem:[#allocation2 + $0x20] sm:$0xff] %v1357
    %v1359 = vmul.f32 %v1338, %v1348
    %1360 = vst [vmem:[#allocation2 + $0x28] sm:$0xff] %v1359
    %s1361 = scalar_lea.vmem %s2, 40
    %v1362 = vld [vmem:[%s1361] sm:$0xff]
    %v1363 = vld [vmem:[#allocation2] sm:$0xff]
    %v1364 = vld [vmem:[#allocation2 + $0x8] sm:$0xff]
    %v1365 = vld [vmem:[#allocation2 + $0x10] sm:$0xff]
    %v1366 = vld [vmem:[#allocation2 + $0x18] sm:$0xff]
    %v1367 = vld [vmem:[#allocation2 + $0x20] sm:$0xff]
    %v1368 = vld [vmem:[#allocation2 + $0x28] sm:$0xff]
    %v1370 = vsel %vm29, %v1362, 0
    %1372 = vmatprep.subr.mxu0 %v1364
    %1373 = vmatpush1.msra.mxu0 %v1363
    %1374 = vmatprep.subr.mxu0 0.0
    %1375 = vmatpush1.msra.mxu0 0.0
    %1376 = vmatprep.subr.mxu0 0.0
    %1377 = vmatpush1.msra.mxu0 0.0
    %1378 = vmatprep.subr.mxu0 0.0
    %1379 = vmatpush1.msra.mxu0 0.0
    %1380 = vmatprep.subr.mxu0 0.0
    %1381 = vmatpush1.msra.mxu0 0.0
    %1382 = vmatprep.subr.mxu0 0.0
    %1383 = vmatpush1.msra.mxu0 0.0
    %1384 = vmatprep.subr.mxu0 0.0
    %1385 = vmatpush1.msra.mxu0 0.0
    %1386 = vmatprep.subr.mxu0 0.0
    %1387 = vmatpush1.msra.mxu0 0.0
    %1388 = vmatprep.subr.mxu0 0.0
    %1389 = vmatpush1.msra.mxu0 0.0
    %1390 = vmatprep.subr.mxu0 0.0
    %1391 = vmatpush1.msra.mxu0 0.0
    %1392 = vmatprep.subr.mxu0 0.0
    %1393 = vmatpush1.msra.mxu0 0.0
    %1394 = vmatprep.subr.mxu0 0.0
    %1395 = vmatpush1.msra.mxu0 0.0
    %1396 = vmatprep.subr.mxu0 0.0
    %1397 = vmatpush1.msra.mxu0 0.0
    %1398 = vmatprep.subr.mxu0 0.0
    %1399 = vmatpush1.msra.mxu0 0.0
    %1400 = vmatprep.subr.mxu0 0.0
    %1401 = vmatpush1.msra.mxu0 0.0
    %1402 = vmatprep.subr.mxu0 0.0
    %1403 = vmatpush1.msra.mxu0 0.0
    %1404 = vmatprep.subr.mxu0 0.0
    %1405 = vmatpush1.msra.mxu0 0.0
    %1406 = vmatprep.subr.mxu0 0.0
    %1407 = vmatpush1.msra.mxu0 0.0
    %1408 = vmatprep.subr.mxu0 0.0
    %1409 = vmatpush1.msra.mxu0 0.0
    %1410 = vmatprep.subr.mxu0 0.0
    %1411 = vmatpush1.msra.mxu0 0.0
    %1412 = vmatprep.subr.mxu0 0.0
    %1413 = vmatpush1.msra.mxu0 0.0
    %1414 = vmatprep.subr.mxu0 0.0
    %1415 = vmatpush1.msra.mxu0 0.0
    %1416 = vmatprep.subr.mxu0 0.0
    %1417 = vmatpush1.msra.mxu0 0.0
    %1418 = vmatprep.subr.mxu0 0.0
    %1419 = vmatpush1.msra.mxu0 0.0
    %1420 = vmatprep.subr.mxu0 0.0
    %1421 = vmatpush1.msra.mxu0 0.0
    %1422 = vmatprep.subr.mxu0 0.0
    %1423 = vmatpush1.msra.mxu0 0.0
    %1424 = vmatprep.subr.mxu0 0.0
    %1425 = vmatpush1.msra.mxu0 0.0
    %1426 = vmatprep.subr.mxu0 0.0
    %1427 = vmatpush1.msra.mxu0 0.0
    %1428 = vmatprep.subr.mxu0 0.0
    %1429 = vmatpush1.msra.mxu0 0.0
    %1430 = vmatprep.subr.mxu0 0.0
    %1431 = vmatpush1.msra.mxu0 0.0
    %1432 = vmatprep.subr.mxu0 0.0
    %1433 = vmatpush1.msra.mxu0 0.0
    %1434 = vmatprep.subr.mxu0 0.0
    %1435 = vmatpush1.msra.mxu0 0.0
    %1436 = vmatprep.mubr.f32.mxu0 0.0
    %1437 = vmatmul.mubr.f32.gmra.mrb[0].mxu0 %v1370
    %v1438 = vpop.f32.mrb[0].mxu0
    %v1439 = vadd.f32 0.0, %v1438
    %v1440 = vpop.f32.mrb[0].mxu0
    %v1441 = vadd.f32 0.0, %v1440
    %1442 = vdwg.mxu0
    %1443 = vmatprep.subr.mxu0 %v1366
    %1444 = vmatpush1.msra.mxu0 %v1365
    %1445 = vmatprep.subr.mxu0 0.0
    %1446 = vmatpush1.msra.mxu0 0.0
    %1447 = vmatprep.subr.mxu0 0.0
    %1448 = vmatpush1.msra.mxu0 0.0
    %1449 = vmatprep.subr.mxu0 0.0
    %1450 = vmatpush1.msra.mxu0 0.0
    %1451 = vmatprep.subr.mxu0 0.0
    %1452 = vmatpush1.msra.mxu0 0.0
    %1453 = vmatprep.subr.mxu0 0.0
    %1454 = vmatpush1.msra.mxu0 0.0
    %1455 = vmatprep.subr.mxu0 0.0
    %1456 = vmatpush1.msra.mxu0 0.0
    %1457 = vmatprep.subr.mxu0 0.0
    %1458 = vmatpush1.msra.mxu0 0.0
    %1459 = vmatprep.subr.mxu0 0.0
    %1460 = vmatpush1.msra.mxu0 0.0
    %1461 = vmatprep.subr.mxu0 0.0
    %1462 = vmatpush1.msra.mxu0 0.0
    %1463 = vmatprep.subr.mxu0 0.0
    %1464 = vmatpush1.msra.mxu0 0.0
    %1465 = vmatprep.subr.mxu0 0.0
    %1466 = vmatpush1.msra.mxu0 0.0
    %1467 = vmatprep.subr.mxu0 0.0
    %1468 = vmatpush1.msra.mxu0 0.0
    %1469 = vmatprep.subr.mxu0 0.0
    %1470 = vmatpush1.msra.mxu0 0.0
    %1471 = vmatprep.subr.mxu0 0.0
    %1472 = vmatpush1.msra.mxu0 0.0
    %1473 = vmatprep.subr.mxu0 0.0
    %1474 = vmatpush1.msra.mxu0 0.0
    %1475 = vmatprep.subr.mxu0 0.0
    %1476 = vmatpush1.msra.mxu0 0.0
    %1477 = vmatprep.subr.mxu0 0.0
    %1478 = vmatpush1.msra.mxu0 0.0
    %1479 = vmatprep.subr.mxu0 0.0
    %1480 = vmatpush1.msra.mxu0 0.0
    %1481 = vmatprep.subr.mxu0 0.0
    %1482 = vmatpush1.msra.mxu0 0.0
    %1483 = vmatprep.subr.mxu0 0.0
    %1484 = vmatpush1.msra.mxu0 0.0
    %1485 = vmatprep.subr.mxu0 0.0
    %1486 = vmatpush1.msra.mxu0 0.0
    %1487 = vmatprep.subr.mxu0 0.0
    %1488 = vmatpush1.msra.mxu0 0.0
    %1489 = vmatprep.subr.mxu0 0.0
    %1490 = vmatpush1.msra.mxu0 0.0
    %1491 = vmatprep.subr.mxu0 0.0
    %1492 = vmatpush1.msra.mxu0 0.0
    %1493 = vmatprep.subr.mxu0 0.0
    %1494 = vmatpush1.msra.mxu0 0.0
    %1495 = vmatprep.subr.mxu0 0.0
    %1496 = vmatpush1.msra.mxu0 0.0
    %1497 = vmatprep.subr.mxu0 0.0
    %1498 = vmatpush1.msra.mxu0 0.0
    %1499 = vmatprep.subr.mxu0 0.0
    %1500 = vmatpush1.msra.mxu0 0.0
    %1501 = vmatprep.subr.mxu0 0.0
    %1502 = vmatpush1.msra.mxu0 0.0
    %1503 = vmatprep.subr.mxu0 0.0
    %1504 = vmatpush1.msra.mxu0 0.0
    %1505 = vmatprep.subr.mxu0 0.0
    %1506 = vmatpush1.msra.mxu0 0.0
    %1507 = vmatprep.mubr.f32.mxu0 0.0
    %1508 = vmatmul.mubr.f32.gmra.mrb[0].mxu0 %v1370
    %v1509 = vpop.f32.mrb[0].mxu0
    %v1510 = vadd.f32 0.0, %v1509
    %v1511 = vpop.f32.mrb[0].mxu0
    %v1512 = vadd.f32 0.0, %v1511
    %1513 = vdwg.mxu0
    %1514 = vmatprep.subr.mxu0 %v1368
    %1515 = vmatpush1.msra.mxu0 %v1367
    %1516 = vmatprep.subr.mxu0 0.0
    %1517 = vmatpush1.msra.mxu0 0.0
    %1518 = vmatprep.subr.mxu0 0.0
    %1519 = vmatpush1.msra.mxu0 0.0
    %1520 = vmatprep.subr.mxu0 0.0
    %1521 = vmatpush1.msra.mxu0 0.0
    %1522 = vmatprep.subr.mxu0 0.0
    %1523 = vmatpush1.msra.mxu0 0.0
    %1524 = vmatprep.subr.mxu0 0.0
    %1525 = vmatpush1.msra.mxu0 0.0
    %1526 = vmatprep.subr.mxu0 0.0
    %1527 = vmatpush1.msra.mxu0 0.0
    %1528 = vmatprep.subr.mxu0 0.0
    %1529 = vmatpush1.msra.mxu0 0.0
    %1530 = vmatprep.subr.mxu0 0.0
    %1531 = vmatpush1.msra.mxu0 0.0
    %1532 = vmatprep.subr.mxu0 0.0
    %1533 = vmatpush1.msra.mxu0 0.0
    %1534 = vmatprep.subr.mxu0 0.0
    %1535 = vmatpush1.msra.mxu0 0.0
    %1536 = vmatprep.subr.mxu0 0.0
    %1537 = vmatpush1.msra.mxu0 0.0
    %1538 = vmatprep.subr.mxu0 0.0
    %1539 = vmatpush1.msra.mxu0 0.0
    %1540 = vmatprep.subr.mxu0 0.0
    %1541 = vmatpush1.msra.mxu0 0.0
    %1542 = vmatprep.subr.mxu0 0.0
    %1543 = vmatpush1.msra.mxu0 0.0
    %1544 = vmatprep.subr.mxu0 0.0
    %1545 = vmatpush1.msra.mxu0 0.0
    %1546 = vmatprep.subr.mxu0 0.0
    %1547 = vmatpush1.msra.mxu0 0.0
    %1548 = vmatprep.subr.mxu0 0.0
    %1549 = vmatpush1.msra.mxu0 0.0
    %1550 = vmatprep.subr.mxu0 0.0
    %1551 = vmatpush1.msra.mxu0 0.0
    %1552 = vmatprep.subr.mxu0 0.0
    %1553 = vmatpush1.msra.mxu0 0.0
    %1554 = vmatprep.subr.mxu0 0.0
    %1555 = vmatpush1.msra.mxu0 0.0
    %1556 = vmatprep.subr.mxu0 0.0
    %1557 = vmatpush1.msra.mxu0 0.0
    %1558 = vmatprep.subr.mxu0 0.0
    %1559 = vmatpush1.msra.mxu0 0.0
    %1560 = vmatprep.subr.mxu0 0.0
    %1561 = vmatpush1.msra.mxu0 0.0
    %1562 = vmatprep.subr.mxu0 0.0
    %1563 = vmatpush1.msra.mxu0 0.0
    %1564 = vmatprep.subr.mxu0 0.0
    %1565 = vmatpush1.msra.mxu0 0.0
    %1566 = vmatprep.subr.mxu0 0.0
    %1567 = vmatpush1.msra.mxu0 0.0
    %1568 = vmatprep.subr.mxu0 0.0
    %1569 = vmatpush1.msra.mxu0 0.0
    %1570 = vmatprep.subr.mxu0 0.0
    %1571 = vmatpush1.msra.mxu0 0.0
    %1572 = vmatprep.subr.mxu0 0.0
    %1573 = vmatpush1.msra.mxu0 0.0
    %1574 = vmatprep.subr.mxu0 0.0
    %1575 = vmatpush1.msra.mxu0 0.0
    %1576 = vmatprep.subr.mxu0 0.0
    %1577 = vmatpush1.msra.mxu0 0.0
    %1578 = vmatprep.mubr.f32.mxu0 0.0
    %1579 = vmatmul.mubr.f32.gmra.mrb[0].mxu0 %v1370
    %v1580 = vpop.f32.mrb[0].mxu0
    %v1581 = vadd.f32 0.0, %v1580
    %v1582 = vpop.f32.mrb[0].mxu0
    %v1583 = vadd.f32 0.0, %v1582
    %1584 = vdwg.mxu0
    %v1585 = vld [vmem:[%s3] sm:$0xff]
    %1587 = vset.pattern.permute.xlu0 6
    %1588 = vperm.xlu0 %1587, %v1585
    %v1589 = vpop.permute.xlu0 %1588
    %v1591 = vadd.f32 %v1439, %v1589
    %vm1592 = vcmp.gt.f32.partialorder %v1591, 0.0
    %v1593 = vsel %vm1592, 1.0, 0.01
    %v1594 = vmul.f32 %v1591, %v1593
    %1595 = vst [vmem:[#allocation2] sm:$0xff] %v1594
    %v1596 = vmul.f32 %v1441, %v1593
    %1597 = vst [vmem:[#allocation2 + $0x8] sm:$0xff] %v1596
    %v1598 = vmul.f32 %v1510, %v1593
    %1599 = vst [vmem:[#allocation2 + $0x10] sm:$0xff] %v1598
    %v1600 = vmul.f32 %v1512, %v1593
    %1601 = vst [vmem:[#allocation2 + $0x18] sm:$0xff] %v1600
    %v1602 = vmul.f32 %v1581, %v1593
    %1603 = vst [vmem:[#allocation2 + $0x20] sm:$0xff] %v1602
    %v1604 = vmul.f32 %v1583, %v1593
    %1605 = vst [vmem:[#allocation2 + $0x28] sm:$0xff] %v1604
    %s1606 = scalar_lea.vmem %s2, 48
    %v1607 = vld [vmem:[%s1606] sm:$0xff]
    %v1608 = vld [vmem:[#allocation2] sm:$0xff]
    %v1609 = vld [vmem:[#allocation2 + $0x8] sm:$0xff]
    %v1610 = vld [vmem:[#allocation2 + $0x10] sm:$0xff]
    %v1611 = vld [vmem:[#allocation2 + $0x18] sm:$0xff]
    %v1612 = vld [vmem:[#allocation2 + $0x20] sm:$0xff]
    %v1613 = vld [vmem:[#allocation2 + $0x28] sm:$0xff]
    %v1615 = vsel %vm29, %v1607, 0
    %1617 = vmatprep.subr.mxu0 %v1609
    %1618 = vmatpush1.msra.mxu0 %v1608
    %1619 = vmatprep.subr.mxu0 0.0
    %1620 = vmatpush1.msra.mxu0 0.0
    %1621 = vmatprep.subr.mxu0 0.0
    %1622 = vmatpush1.msra.mxu0 0.0
    %1623 = vmatprep.subr.mxu0 0.0
    %1624 = vmatpush1.msra.mxu0 0.0
    %1625 = vmatprep.subr.mxu0 0.0
    %1626 = vmatpush1.msra.mxu0 0.0
    %1627 = vmatprep.subr.mxu0 0.0
    %1628 = vmatpush1.msra.mxu0 0.0
    %1629 = vmatprep.subr.mxu0 0.0
    %1630 = vmatpush1.msra.mxu0 0.0
    %1631 = vmatprep.subr.mxu0 0.0
    %1632 = vmatpush1.msra.mxu0 0.0
    %1633 = vmatprep.subr.mxu0 0.0
    %1634 = vmatpush1.msra.mxu0 0.0
    %1635 = vmatprep.subr.mxu0 0.0
    %1636 = vmatpush1.msra.mxu0 0.0
    %1637 = vmatprep.subr.mxu0 0.0
    %1638 = vmatpush1.msra.mxu0 0.0
    %1639 = vmatprep.subr.mxu0 0.0
    %1640 = vmatpush1.msra.mxu0 0.0
    %1641 = vmatprep.subr.mxu0 0.0
    %1642 = vmatpush1.msra.mxu0 0.0
    %1643 = vmatprep.subr.mxu0 0.0
    %1644 = vmatpush1.msra.mxu0 0.0
    %1645 = vmatprep.subr.mxu0 0.0
    %1646 = vmatpush1.msra.mxu0 0.0
    %1647 = vmatprep.subr.mxu0 0.0
    %1648 = vmatpush1.msra.mxu0 0.0
    %1649 = vmatprep.subr.mxu0 0.0
    %1650 = vmatpush1.msra.mxu0 0.0
    %1651 = vmatprep.subr.mxu0 0.0
    %1652 = vmatpush1.msra.mxu0 0.0
    %1653 = vmatprep.subr.mxu0 0.0
    %1654 = vmatpush1.msra.mxu0 0.0
    %1655 = vmatprep.subr.mxu0 0.0
    %1656 = vmatpush1.msra.mxu0 0.0
    %1657 = vmatprep.subr.mxu0 0.0
    %1658 = vmatpush1.msra.mxu0 0.0
    %1659 = vmatprep.subr.mxu0 0.0
    %1660 = vmatpush1.msra.mxu0 0.0
    %1661 = vmatprep.subr.mxu0 0.0
    %1662 = vmatpush1.msra.mxu0 0.0
    %1663 = vmatprep.subr.mxu0 0.0
    %1664 = vmatpush1.msra.mxu0 0.0
    %1665 = vmatprep.subr.mxu0 0.0
    %1666 = vmatpush1.msra.mxu0 0.0
    %1667 = vmatprep.subr.mxu0 0.0
    %1668 = vmatpush1.msra.mxu0 0.0
    %1669 = vmatprep.subr.mxu0 0.0
    %1670 = vmatpush1.msra.mxu0 0.0
    %1671 = vmatprep.subr.mxu0 0.0
    %1672 = vmatpush1.msra.mxu0 0.0
    %1673 = vmatprep.subr.mxu0 0.0
    %1674 = vmatpush1.msra.mxu0 0.0
    %1675 = vmatprep.subr.mxu0 0.0
    %1676 = vmatpush1.msra.mxu0 0.0
    %1677 = vmatprep.subr.mxu0 0.0
    %1678 = vmatpush1.msra.mxu0 0.0
    %1679 = vmatprep.subr.mxu0 0.0
    %1680 = vmatpush1.msra.mxu0 0.0
    %1681 = vmatprep.mubr.f32.mxu0 0.0
    %1682 = vmatmul.mubr.f32.gmra.mrb[0].mxu0 %v1615
    %v1683 = vpop.f32.mrb[0].mxu0
    %v1684 = vadd.f32 0.0, %v1683
    %v1685 = vpop.f32.mrb[0].mxu0
    %v1686 = vadd.f32 0.0, %v1685
    %1687 = vdwg.mxu0
    %1688 = vmatprep.subr.mxu0 %v1611
    %1689 = vmatpush1.msra.mxu0 %v1610
    %1690 = vmatprep.subr.mxu0 0.0
    %1691 = vmatpush1.msra.mxu0 0.0
    %1692 = vmatprep.subr.mxu0 0.0
    %1693 = vmatpush1.msra.mxu0 0.0
    %1694 = vmatprep.subr.mxu0 0.0
    %1695 = vmatpush1.msra.mxu0 0.0
    %1696 = vmatprep.subr.mxu0 0.0
    %1697 = vmatpush1.msra.mxu0 0.0
    %1698 = vmatprep.subr.mxu0 0.0
    %1699 = vmatpush1.msra.mxu0 0.0
    %1700 = vmatprep.subr.mxu0 0.0
    %1701 = vmatpush1.msra.mxu0 0.0
    %1702 = vmatprep.subr.mxu0 0.0
    %1703 = vmatpush1.msra.mxu0 0.0
    %1704 = vmatprep.subr.mxu0 0.0
    %1705 = vmatpush1.msra.mxu0 0.0
    %1706 = vmatprep.subr.mxu0 0.0
    %1707 = vmatpush1.msra.mxu0 0.0
    %1708 = vmatprep.subr.mxu0 0.0
    %1709 = vmatpush1.msra.mxu0 0.0
    %1710 = vmatprep.subr.mxu0 0.0
    %1711 = vmatpush1.msra.mxu0 0.0
    %1712 = vmatprep.subr.mxu0 0.0
    %1713 = vmatpush1.msra.mxu0 0.0
    %1714 = vmatprep.subr.mxu0 0.0
    %1715 = vmatpush1.msra.mxu0 0.0
    %1716 = vmatprep.subr.mxu0 0.0
    %1717 = vmatpush1.msra.mxu0 0.0
    %1718 = vmatprep.subr.mxu0 0.0
    %1719 = vmatpush1.msra.mxu0 0.0
    %1720 = vmatprep.subr.mxu0 0.0
    %1721 = vmatpush1.msra.mxu0 0.0
    %1722 = vmatprep.subr.mxu0 0.0
    %1723 = vmatpush1.msra.mxu0 0.0
    %1724 = vmatprep.subr.mxu0 0.0
    %1725 = vmatpush1.msra.mxu0 0.0
    %1726 = vmatprep.subr.mxu0 0.0
    %1727 = vmatpush1.msra.mxu0 0.0
    %1728 = vmatprep.subr.mxu0 0.0
    %1729 = vmatpush1.msra.mxu0 0.0
    %1730 = vmatprep.subr.mxu0 0.0
    %1731 = vmatpush1.msra.mxu0 0.0
    %1732 = vmatprep.subr.mxu0 0.0
    %1733 = vmatpush1.msra.mxu0 0.0
    %1734 = vmatprep.subr.mxu0 0.0
    %1735 = vmatpush1.msra.mxu0 0.0
    %1736 = vmatprep.subr.mxu0 0.0
    %1737 = vmatpush1.msra.mxu0 0.0
    %1738 = vmatprep.subr.mxu0 0.0
    %1739 = vmatpush1.msra.mxu0 0.0
    %1740 = vmatprep.subr.mxu0 0.0
    %1741 = vmatpush1.msra.mxu0 0.0
    %1742 = vmatprep.subr.mxu0 0.0
    %1743 = vmatpush1.msra.mxu0 0.0
    %1744 = vmatprep.subr.mxu0 0.0
    %1745 = vmatpush1.msra.mxu0 0.0
    %1746 = vmatprep.subr.mxu0 0.0
    %1747 = vmatpush1.msra.mxu0 0.0
    %1748 = vmatprep.subr.mxu0 0.0
    %1749 = vmatpush1.msra.mxu0 0.0
    %1750 = vmatprep.subr.mxu0 0.0
    %1751 = vmatpush1.msra.mxu0 0.0
    %1752 = vmatprep.mubr.f32.mxu0 0.0
    %1753 = vmatmul.mubr.f32.gmra.mrb[0].mxu0 %v1615
    %v1754 = vpop.f32.mrb[0].mxu0
    %v1755 = vadd.f32 0.0, %v1754
    %v1756 = vpop.f32.mrb[0].mxu0
    %v1757 = vadd.f32 0.0, %v1756
    %1758 = vdwg.mxu0
    %1759 = vmatprep.subr.mxu0 %v1613
    %1760 = vmatpush1.msra.mxu0 %v1612
    %1761 = vmatprep.subr.mxu0 0.0
    %1762 = vmatpush1.msra.mxu0 0.0
    %1763 = vmatprep.subr.mxu0 0.0
    %1764 = vmatpush1.msra.mxu0 0.0
    %1765 = vmatprep.subr.mxu0 0.0
    %1766 = vmatpush1.msra.mxu0 0.0
    %1767 = vmatprep.subr.mxu0 0.0
    %1768 = vmatpush1.msra.mxu0 0.0
    %1769 = vmatprep.subr.mxu0 0.0
    %1770 = vmatpush1.msra.mxu0 0.0
    %1771 = vmatprep.subr.mxu0 0.0
    %1772 = vmatpush1.msra.mxu0 0.0
    %1773 = vmatprep.subr.mxu0 0.0
    %1774 = vmatpush1.msra.mxu0 0.0
    %1775 = vmatprep.subr.mxu0 0.0
    %1776 = vmatpush1.msra.mxu0 0.0
    %1777 = vmatprep.subr.mxu0 0.0
    %1778 = vmatpush1.msra.mxu0 0.0
    %1779 = vmatprep.subr.mxu0 0.0
    %1780 = vmatpush1.msra.mxu0 0.0
    %1781 = vmatprep.subr.mxu0 0.0
    %1782 = vmatpush1.msra.mxu0 0.0
    %1783 = vmatprep.subr.mxu0 0.0
    %1784 = vmatpush1.msra.mxu0 0.0
    %1785 = vmatprep.subr.mxu0 0.0
    %1786 = vmatpush1.msra.mxu0 0.0
    %1787 = vmatprep.subr.mxu0 0.0
    %1788 = vmatpush1.msra.mxu0 0.0
    %1789 = vmatprep.subr.mxu0 0.0
    %1790 = vmatpush1.msra.mxu0 0.0
    %1791 = vmatprep.subr.mxu0 0.0
    %1792 = vmatpush1.msra.mxu0 0.0
    %1793 = vmatprep.subr.mxu0 0.0
    %1794 = vmatpush1.msra.mxu0 0.0
    %1795 = vmatprep.subr.mxu0 0.0
    %1796 = vmatpush1.msra.mxu0 0.0
    %1797 = vmatprep.subr.mxu0 0.0
    %1798 = vmatpush1.msra.mxu0 0.0
    %1799 = vmatprep.subr.mxu0 0.0
    %1800 = vmatpush1.msra.mxu0 0.0
    %1801 = vmatprep.subr.mxu0 0.0
    %1802 = vmatpush1.msra.mxu0 0.0
    %1803 = vmatprep.subr.mxu0 0.0
    %1804 = vmatpush1.msra.mxu0 0.0
    %1805 = vmatprep.subr.mxu0 0.0
    %1806 = vmatpush1.msra.mxu0 0.0
    %1807 = vmatprep.subr.mxu0 0.0
    %1808 = vmatpush1.msra.mxu0 0.0
    %1809 = vmatprep.subr.mxu0 0.0
    %1810 = vmatpush1.msra.mxu0 0.0
    %1811 = vmatprep.subr.mxu0 0.0
    %1812 = vmatpush1.msra.mxu0 0.0
    %1813 = vmatprep.subr.mxu0 0.0
    %1814 = vmatpush1.msra.mxu0 0.0
    %1815 = vmatprep.subr.mxu0 0.0
    %1816 = vmatpush1.msra.mxu0 0.0
    %1817 = vmatprep.subr.mxu0 0.0
    %1818 = vmatpush1.msra.mxu0 0.0
    %1819 = vmatprep.subr.mxu0 0.0
    %1820 = vmatpush1.msra.mxu0 0.0
    %1821 = vmatprep.subr.mxu0 0.0
    %1822 = vmatpush1.msra.mxu0 0.0
    %1823 = vmatprep.mubr.f32.mxu0 0.0
    %1824 = vmatmul.mubr.f32.gmra.mrb[0].mxu0 %v1615
    %v1825 = vpop.f32.mrb[0].mxu0
    %v1826 = vadd.f32 0.0, %v1825
    %v1827 = vpop.f32.mrb[0].mxu0
    %v1828 = vadd.f32 0.0, %v1827
    %1829 = vdwg.mxu0
    %v1830 = vld [vmem:[%s3] sm:$0xff]
    %1832 = vset.pattern.permute.xlu0 7
    %1833 = vperm.xlu0 %1832, %v1830
    %v1834 = vpop.permute.xlu0 %1833
    %v1836 = vadd.f32 %v1684, %v1834
    %vm1837 = vcmp.gt.f32.partialorder %v1836, 0.0
    %v1838 = vsel %vm1837, 1.0, 0.01
    %v1839 = vmul.f32 %v1836, %v1838
    %1840 = vst [vmem:[#allocation2] sm:$0xff] %v1839
    %v1841 = vmul.f32 %v1686, %v1838
    %1842 = vst [vmem:[#allocation2 + $0x8] sm:$0xff] %v1841
    %v1843 = vmul.f32 %v1755, %v1838
    %1844 = vst [vmem:[#allocation2 + $0x10] sm:$0xff] %v1843
    %v1845 = vmul.f32 %v1757, %v1838
    %1846 = vst [vmem:[#allocation2 + $0x18] sm:$0xff] %v1845
    %v1847 = vmul.f32 %v1826, %v1838
    %1848 = vst [vmem:[#allocation2 + $0x20] sm:$0xff] %v1847
    %v1849 = vmul.f32 %v1828, %v1838
    %1850 = vst [vmem:[#allocation2 + $0x28] sm:$0xff] %v1849
    %s1851 = scalar_lea.vmem %s2, 56
    %v1852 = vld [vmem:[%s1851] sm:$0xff]
    %v1853 = vld [vmem:[#allocation2] sm:$0xff]
    %v1854 = vld [vmem:[#allocation2 + $0x8] sm:$0xff]
    %v1855 = vld [vmem:[#allocation2 + $0x10] sm:$0xff]
    %v1856 = vld [vmem:[#allocation2 + $0x18] sm:$0xff]
    %v1857 = vld [vmem:[#allocation2 + $0x20] sm:$0xff]
    %v1858 = vld [vmem:[#allocation2 + $0x28] sm:$0xff]
    %v1860 = vsel %vm29, %v1852, 0
    %1862 = vmatprep.subr.mxu0 %v1854
    %1863 = vmatpush1.msra.mxu0 %v1853
    %1864 = vmatprep.subr.mxu0 0.0
    %1865 = vmatpush1.msra.mxu0 0.0
    %1866 = vmatprep.subr.mxu0 0.0
    %1867 = vmatpush1.msra.mxu0 0.0
    %1868 = vmatprep.subr.mxu0 0.0
    %1869 = vmatpush1.msra.mxu0 0.0
    %1870 = vmatprep.subr.mxu0 0.0
    %1871 = vmatpush1.msra.mxu0 0.0
    %1872 = vmatprep.subr.mxu0 0.0
    %1873 = vmatpush1.msra.mxu0 0.0
    %1874 = vmatprep.subr.mxu0 0.0
    %1875 = vmatpush1.msra.mxu0 0.0
    %1876 = vmatprep.subr.mxu0 0.0
    %1877 = vmatpush1.msra.mxu0 0.0
    %1878 = vmatprep.subr.mxu0 0.0
    %1879 = vmatpush1.msra.mxu0 0.0
    %1880 = vmatprep.subr.mxu0 0.0
    %1881 = vmatpush1.msra.mxu0 0.0
    %1882 = vmatprep.subr.mxu0 0.0
    %1883 = vmatpush1.msra.mxu0 0.0
    %1884 = vmatprep.subr.mxu0 0.0
    %1885 = vmatpush1.msra.mxu0 0.0
    %1886 = vmatprep.subr.mxu0 0.0
    %1887 = vmatpush1.msra.mxu0 0.0
    %1888 = vmatprep.subr.mxu0 0.0
    %1889 = vmatpush1.msra.mxu0 0.0
    %1890 = vmatprep.subr.mxu0 0.0
    %1891 = vmatpush1.msra.mxu0 0.0
    %1892 = vmatprep.subr.mxu0 0.0
    %1893 = vmatpush1.msra.mxu0 0.0
    %1894 = vmatprep.subr.mxu0 0.0
    %1895 = vmatpush1.msra.mxu0 0.0
    %1896 = vmatprep.subr.mxu0 0.0
    %1897 = vmatpush1.msra.mxu0 0.0
    %1898 = vmatprep.subr.mxu0 0.0
    %1899 = vmatpush1.msra.mxu0 0.0
    %1900 = vmatprep.subr.mxu0 0.0
    %1901 = vmatpush1.msra.mxu0 0.0
    %1902 = vmatprep.subr.mxu0 0.0
    %1903 = vmatpush1.msra.mxu0 0.0
    %1904 = vmatprep.subr.mxu0 0.0
    %1905 = vmatpush1.msra.mxu0 0.0
    %1906 = vmatprep.subr.mxu0 0.0
    %1907 = vmatpush1.msra.mxu0 0.0
    %1908 = vmatprep.subr.mxu0 0.0
    %1909 = vmatpush1.msra.mxu0 0.0
    %1910 = vmatprep.subr.mxu0 0.0
    %1911 = vmatpush1.msra.mxu0 0.0
    %1912 = vmatprep.subr.mxu0 0.0
    %1913 = vmatpush1.msra.mxu0 0.0
    %1914 = vmatprep.subr.mxu0 0.0
    %1915 = vmatpush1.msra.mxu0 0.0
    %1916 = vmatprep.subr.mxu0 0.0
    %1917 = vmatpush1.msra.mxu0 0.0
    %1918 = vmatprep.subr.mxu0 0.0
    %1919 = vmatpush1.msra.mxu0 0.0
    %1920 = vmatprep.subr.mxu0 0.0
    %1921 = vmatpush1.msra.mxu0 0.0
    %1922 = vmatprep.subr.mxu0 0.0
    %1923 = vmatpush1.msra.mxu0 0.0
    %1924 = vmatprep.subr.mxu0 0.0
    %1925 = vmatpush1.msra.mxu0 0.0
    %1926 = vmatprep.mubr.f32.mxu0 0.0
    %1927 = vmatmul.mubr.f32.gmra.mrb[0].mxu0 %v1860
    %v1928 = vpop.f32.mrb[0].mxu0
    %v1929 = vadd.f32 0.0, %v1928
    %v1930 = vpop.f32.mrb[0].mxu0
    %v1931 = vadd.f32 0.0, %v1930
    %1932 = vdwg.mxu0
    %1933 = vmatprep.subr.mxu0 %v1856
    %1934 = vmatpush1.msra.mxu0 %v1855
    %1935 = vmatprep.subr.mxu0 0.0
    %1936 = vmatpush1.msra.mxu0 0.0
    %1937 = vmatprep.subr.mxu0 0.0
    %1938 = vmatpush1.msra.mxu0 0.0
    %1939 = vmatprep.subr.mxu0 0.0
    %1940 = vmatpush1.msra.mxu0 0.0
    %1941 = vmatprep.subr.mxu0 0.0
    %1942 = vmatpush1.msra.mxu0 0.0
    %1943 = vmatprep.subr.mxu0 0.0
    %1944 = vmatpush1.msra.mxu0 0.0
    %1945 = vmatprep.subr.mxu0 0.0
    %1946 = vmatpush1.msra.mxu0 0.0
    %1947 = vmatprep.subr.mxu0 0.0
    %1948 = vmatpush1.msra.mxu0 0.0
    %1949 = vmatprep.subr.mxu0 0.0
    %1950 = vmatpush1.msra.mxu0 0.0
    %1951 = vmatprep.subr.mxu0 0.0
    %1952 = vmatpush1.msra.mxu0 0.0
    %1953 = vmatprep.subr.mxu0 0.0
    %1954 = vmatpush1.msra.mxu0 0.0
    %1955 = vmatprep.subr.mxu0 0.0
    %1956 = vmatpush1.msra.mxu0 0.0
    %1957 = vmatprep.subr.mxu0 0.0
    %1958 = vmatpush1.msra.mxu0 0.0
    %1959 = vmatprep.subr.mxu0 0.0
    %1960 = vmatpush1.msra.mxu0 0.0
    %1961 = vmatprep.subr.mxu0 0.0
    %1962 = vmatpush1.msra.mxu0 0.0
    %1963 = vmatprep.subr.mxu0 0.0
    %1964 = vmatpush1.msra.mxu0 0.0
    %1965 = vmatprep.subr.mxu0 0.0
    %1966 = vmatpush1.msra.mxu0 0.0
    %1967 = vmatprep.subr.mxu0 0.0
    %1968 = vmatpush1.msra.mxu0 0.0
    %1969 = vmatprep.subr.mxu0 0.0
    %1970 = vmatpush1.msra.mxu0 0.0
    %1971 = vmatprep.subr.mxu0 0.0
    %1972 = vmatpush1.msra.mxu0 0.0
    %1973 = vmatprep.subr.mxu0 0.0
    %1974 = vmatpush1.msra.mxu0 0.0
    %1975 = vmatprep.subr.mxu0 0.0
    %1976 = vmatpush1.msra.mxu0 0.0
    %1977 = vmatprep.subr.mxu0 0.0
    %1978 = vmatpush1.msra.mxu0 0.0
    %1979 = vmatprep.subr.mxu0 0.0
    %1980 = vmatpush1.msra.mxu0 0.0
    %1981 = vmatprep.subr.mxu0 0.0
    %1982 = vmatpush1.msra.mxu0 0.0
    %1983 = vmatprep.subr.mxu0 0.0
    %1984 = vmatpush1.msra.mxu0 0.0
    %1985 = vmatprep.subr.mxu0 0.0
    %1986 = vmatpush1.msra.mxu0 0.0
    %1987 = vmatprep.subr.mxu0 0.0
    %1988 = vmatpush1.msra.mxu0 0.0
    %1989 = vmatprep.subr.mxu0 0.0
    %1990 = vmatpush1.msra.mxu0 0.0
    %1991 = vmatprep.subr.mxu0 0.0
    %1992 = vmatpush1.msra.mxu0 0.0
    %1993 = vmatprep.subr.mxu0 0.0
    %1994 = vmatpush1.msra.mxu0 0.0
    %1995 = vmatprep.subr.mxu0 0.0
    %1996 = vmatpush1.msra.mxu0 0.0
    %1997 = vmatprep.mubr.f32.mxu0 0.0
    %1998 = vmatmul.mubr.f32.gmra.mrb[0].mxu0 %v1860
    %v1999 = vpop.f32.mrb[0].mxu0
    %v2000 = vadd.f32 0.0, %v1999
    %v2001 = vpop.f32.mrb[0].mxu0
    %v2002 = vadd.f32 0.0, %v2001
    %2003 = vdwg.mxu0
    %2004 = vmatprep.subr.mxu0 %v1858
    %2005 = vmatpush1.msra.mxu0 %v1857
    %2006 = vmatprep.subr.mxu0 0.0
    %2007 = vmatpush1.msra.mxu0 0.0
    %2008 = vmatprep.subr.mxu0 0.0
    %2009 = vmatpush1.msra.mxu0 0.0
    %2010 = vmatprep.subr.mxu0 0.0
    %2011 = vmatpush1.msra.mxu0 0.0
    %2012 = vmatprep.subr.mxu0 0.0
    %2013 = vmatpush1.msra.mxu0 0.0
    %2014 = vmatprep.subr.mxu0 0.0
    %2015 = vmatpush1.msra.mxu0 0.0
    %2016 = vmatprep.subr.mxu0 0.0
    %2017 = vmatpush1.msra.mxu0 0.0
    %2018 = vmatprep.subr.mxu0 0.0
    %2019 = vmatpush1.msra.mxu0 0.0
    %2020 = vmatprep.subr.mxu0 0.0
    %2021 = vmatpush1.msra.mxu0 0.0
    %2022 = vmatprep.subr.mxu0 0.0
    %2023 = vmatpush1.msra.mxu0 0.0
    %2024 = vmatprep.subr.mxu0 0.0
    %2025 = vmatpush1.msra.mxu0 0.0
    %2026 = vmatprep.subr.mxu0 0.0
    %2027 = vmatpush1.msra.mxu0 0.0
    %2028 = vmatprep.subr.mxu0 0.0
    %2029 = vmatpush1.msra.mxu0 0.0
    %2030 = vmatprep.subr.mxu0 0.0
    %2031 = vmatpush1.msra.mxu0 0.0
    %2032 = vmatprep.subr.mxu0 0.0
    %2033 = vmatpush1.msra.mxu0 0.0
    %2034 = vmatprep.subr.mxu0 0.0
    %2035 = vmatpush1.msra.mxu0 0.0
    %2036 = vmatprep.subr.mxu0 0.0
    %2037 = vmatpush1.msra.mxu0 0.0
    %2038 = vmatprep.subr.mxu0 0.0
    %2039 = vmatpush1.msra.mxu0 0.0
    %2040 = vmatprep.subr.mxu0 0.0
    %2041 = vmatpush1.msra.mxu0 0.0
    %2042 = vmatprep.subr.mxu0 0.0
    %2043 = vmatpush1.msra.mxu0 0.0
    %2044 = vmatprep.subr.mxu0 0.0
    %2045 = vmatpush1.msra.mxu0 0.0
    %2046 = vmatprep.subr.mxu0 0.0
    %2047 = vmatpush1.msra.mxu0 0.0
    %2048 = vmatprep.subr.mxu0 0.0
    %2049 = vmatpush1.msra.mxu0 0.0
    %2050 = vmatprep.subr.mxu0 0.0
    %2051 = vmatpush1.msra.mxu0 0.0
    %2052 = vmatprep.subr.mxu0 0.0
    %2053 = vmatpush1.msra.mxu0 0.0
    %2054 = vmatprep.subr.mxu0 0.0
    %2055 = vmatpush1.msra.mxu0 0.0
    %2056 = vmatprep.subr.mxu0 0.0
    %2057 = vmatpush1.msra.mxu0 0.0
    %2058 = vmatprep.subr.mxu0 0.0
    %2059 = vmatpush1.msra.mxu0 0.0
    %2060 = vmatprep.subr.mxu0 0.0
    %2061 = vmatpush1.msra.mxu0 0.0
    %2062 = vmatprep.subr.mxu0 0.0
    %2063 = vmatpush1.msra.mxu0 0.0
    %2064 = vmatprep.subr.mxu0 0.0
    %2065 = vmatpush1.msra.mxu0 0.0
    %2066 = vmatprep.subr.mxu0 0.0
    %2067 = vmatpush1.msra.mxu0 0.0
    %2068 = vmatprep.mubr.f32.mxu0 0.0
    %2069 = vmatmul.mubr.f32.gmra.mrb[0].mxu0 %v1860
    %v2070 = vpop.f32.mrb[0].mxu0
    %v2071 = vadd.f32 0.0, %v2070
    %v2072 = vpop.f32.mrb[0].mxu0
    %v2073 = vadd.f32 0.0, %v2072
    %2074 = vdwg.mxu0
    %v2075 = vld [vmem:[%s3] sm:$0xff]
    %2077 = vset.pattern.permute.xlu0 8
    %2078 = vperm.xlu0 %2077, %v2075
    %v2079 = vpop.permute.xlu0 %2078
    %v2081 = vadd.f32 %v1929, %v2079
    %vm2082 = vcmp.gt.f32.partialorder %v2081, 0.0
    %v2083 = vsel %vm2082, 1.0, 0.01
    %v2084 = vmul.f32 %v2081, %v2083
    %2085 = vst [vmem:[#allocation2] sm:$0xff] %v2084
    %v2086 = vmul.f32 %v1931, %v2083
    %2087 = vst [vmem:[#allocation2 + $0x8] sm:$0xff] %v2086
    %v2088 = vmul.f32 %v2000, %v2083
    %2089 = vst [vmem:[#allocation2 + $0x10] sm:$0xff] %v2088
    %v2090 = vmul.f32 %v2002, %v2083
    %2091 = vst [vmem:[#allocation2 + $0x18] sm:$0xff] %v2090
    %v2092 = vmul.f32 %v2071, %v2083
    %2093 = vst [vmem:[#allocation2 + $0x20] sm:$0xff] %v2092
    %v2094 = vmul.f32 %v2073, %v2083
    %2095 = vst [vmem:[#allocation2 + $0x28] sm:$0xff] %v2094
    %s2096 = scalar_lea.vmem %s2, 64
    %v2097 = vld [vmem:[%s2096] sm:$0xff]
    %v2098 = vld [vmem:[#allocation2] sm:$0xff]
    %v2099 = vld [vmem:[#allocation2 + $0x8] sm:$0xff]
    %v2100 = vld [vmem:[#allocation2 + $0x10] sm:$0xff]
    %v2101 = vld [vmem:[#allocation2 + $0x18] sm:$0xff]
    %v2102 = vld [vmem:[#allocation2 + $0x20] sm:$0xff]
    %v2103 = vld [vmem:[#allocation2 + $0x28] sm:$0xff]
    %v2105 = vsel %vm29, %v2097, 0
    %2107 = vmatprep.subr.mxu0 %v2099
    %2108 = vmatpush1.msra.mxu0 %v2098
    %2109 = vmatprep.subr.mxu0 0.0
    %2110 = vmatpush1.msra.mxu0 0.0
    %2111 = vmatprep.subr.mxu0 0.0
    %2112 = vmatpush1.msra.mxu0 0.0
    %2113 = vmatprep.subr.mxu0 0.0
    %2114 = vmatpush1.msra.mxu0 0.0
    %2115 = vmatprep.subr.mxu0 0.0
    %2116 = vmatpush1.msra.mxu0 0.0
    %2117 = vmatprep.subr.mxu0 0.0
    %2118 = vmatpush1.msra.mxu0 0.0
    %2119 = vmatprep.subr.mxu0 0.0
    %2120 = vmatpush1.msra.mxu0 0.0
    %2121 = vmatprep.subr.mxu0 0.0
    %2122 = vmatpush1.msra.mxu0 0.0
    %2123 = vmatprep.subr.mxu0 0.0
    %2124 = vmatpush1.msra.mxu0 0.0
    %2125 = vmatprep.subr.mxu0 0.0
    %2126 = vmatpush1.msra.mxu0 0.0
    %2127 = vmatprep.subr.mxu0 0.0
    %2128 = vmatpush1.msra.mxu0 0.0
    %2129 = vmatprep.subr.mxu0 0.0
    %2130 = vmatpush1.msra.mxu0 0.0
    %2131 = vmatprep.subr.mxu0 0.0
    %2132 = vmatpush1.msra.mxu0 0.0
    %2133 = vmatprep.subr.mxu0 0.0
    %2134 = vmatpush1.msra.mxu0 0.0
    %2135 = vmatprep.subr.mxu0 0.0
    %2136 = vmatpush1.msra.mxu0 0.0
    %2137 = vmatprep.subr.mxu0 0.0
    %2138 = vmatpush1.msra.mxu0 0.0
    %2139 = vmatprep.subr.mxu0 0.0
    %2140 = vmatpush1.msra.mxu0 0.0
    %2141 = vmatprep.subr.mxu0 0.0
    %2142 = vmatpush1.msra.mxu0 0.0
    %2143 = vmatprep.subr.mxu0 0.0
    %2144 = vmatpush1.msra.mxu0 0.0
    %2145 = vmatprep.subr.mxu0 0.0
    %2146 = vmatpush1.msra.mxu0 0.0
    %2147 = vmatprep.subr.mxu0 0.0
    %2148 = vmatpush1.msra.mxu0 0.0
    %2149 = vmatprep.subr.mxu0 0.0
    %2150 = vmatpush1.msra.mxu0 0.0
    %2151 = vmatprep.subr.mxu0 0.0
    %2152 = vmatpush1.msra.mxu0 0.0
    %2153 = vmatprep.subr.mxu0 0.0
    %2154 = vmatpush1.msra.mxu0 0.0
    %2155 = vmatprep.subr.mxu0 0.0
    %2156 = vmatpush1.msra.mxu0 0.0
    %2157 = vmatprep.subr.mxu0 0.0
    %2158 = vmatpush1.msra.mxu0 0.0
    %2159 = vmatprep.subr.mxu0 0.0
    %2160 = vmatpush1.msra.mxu0 0.0
    %2161 = vmatprep.subr.mxu0 0.0
    %2162 = vmatpush1.msra.mxu0 0.0
    %2163 = vmatprep.subr.mxu0 0.0
    %2164 = vmatpush1.msra.mxu0 0.0
    %2165 = vmatprep.subr.mxu0 0.0
    %2166 = vmatpush1.msra.mxu0 0.0
    %2167 = vmatprep.subr.mxu0 0.0
    %2168 = vmatpush1.msra.mxu0 0.0
    %2169 = vmatprep.subr.mxu0 0.0
    %2170 = vmatpush1.msra.mxu0 0.0
    %2171 = vmatprep.mubr.f32.mxu0 0.0
    %2172 = vmatmul.mubr.f32.gmra.mrb[0].mxu0 %v2105
    %v2173 = vpop.f32.mrb[0].mxu0
    %v2174 = vadd.f32 0.0, %v2173
    %v2175 = vpop.f32.mrb[0].mxu0
    %v2176 = vadd.f32 0.0, %v2175
    %2177 = vdwg.mxu0
    %2178 = vmatprep.subr.mxu0 %v2101
    %2179 = vmatpush1.msra.mxu0 %v2100
    %2180 = vmatprep.subr.mxu0 0.0
    %2181 = vmatpush1.msra.mxu0 0.0
    %2182 = vmatprep.subr.mxu0 0.0
    %2183 = vmatpush1.msra.mxu0 0.0
    %2184 = vmatprep.subr.mxu0 0.0
    %2185 = vmatpush1.msra.mxu0 0.0
    %2186 = vmatprep.subr.mxu0 0.0
    %2187 = vmatpush1.msra.mxu0 0.0
    %2188 = vmatprep.subr.mxu0 0.0
    %2189 = vmatpush1.msra.mxu0 0.0
    %2190 = vmatprep.subr.mxu0 0.0
    %2191 = vmatpush1.msra.mxu0 0.0
    %2192 = vmatprep.subr.mxu0 0.0
    %2193 = vmatpush1.msra.mxu0 0.0
    %2194 = vmatprep.subr.mxu0 0.0
    %2195 = vmatpush1.msra.mxu0 0.0
    %2196 = vmatprep.subr.mxu0 0.0
    %2197 = vmatpush1.msra.mxu0 0.0
    %2198 = vmatprep.subr.mxu0 0.0
    %2199 = vmatpush1.msra.mxu0 0.0
    %2200 = vmatprep.subr.mxu0 0.0
    %2201 = vmatpush1.msra.mxu0 0.0
    %2202 = vmatprep.subr.mxu0 0.0
    %2203 = vmatpush1.msra.mxu0 0.0
    %2204 = vmatprep.subr.mxu0 0.0
    %2205 = vmatpush1.msra.mxu0 0.0
    %2206 = vmatprep.subr.mxu0 0.0
    %2207 = vmatpush1.msra.mxu0 0.0
    %2208 = vmatprep.subr.mxu0 0.0
    %2209 = vmatpush1.msra.mxu0 0.0
    %2210 = vmatprep.subr.mxu0 0.0
    %2211 = vmatpush1.msra.mxu0 0.0
    %2212 = vmatprep.subr.mxu0 0.0
    %2213 = vmatpush1.msra.mxu0 0.0
    %2214 = vmatprep.subr.mxu0 0.0
    %2215 = vmatpush1.msra.mxu0 0.0
    %2216 = vmatprep.subr.mxu0 0.0
    %2217 = vmatpush1.msra.mxu0 0.0
    %2218 = vmatprep.subr.mxu0 0.0
    %2219 = vmatpush1.msra.mxu0 0.0
    %2220 = vmatprep.subr.mxu0 0.0
    %2221 = vmatpush1.msra.mxu0 0.0
    %2222 = vmatprep.subr.mxu0 0.0
    %2223 = vmatpush1.msra.mxu0 0.0
    %2224 = vmatprep.subr.mxu0 0.0
    %2225 = vmatpush1.msra.mxu0 0.0
    %2226 = vmatprep.subr.mxu0 0.0
    %2227 = vmatpush1.msra.mxu0 0.0
    %2228 = vmatprep.subr.mxu0 0.0
    %2229 = vmatpush1.msra.mxu0 0.0
    %2230 = vmatprep.subr.mxu0 0.0
    %2231 = vmatpush1.msra.mxu0 0.0
    %2232 = vmatprep.subr.mxu0 0.0
    %2233 = vmatpush1.msra.mxu0 0.0
    %2234 = vmatprep.subr.mxu0 0.0
    %2235 = vmatpush1.msra.mxu0 0.0
    %2236 = vmatprep.subr.mxu0 0.0
    %2237 = vmatpush1.msra.mxu0 0.0
    %2238 = vmatprep.subr.mxu0 0.0
    %2239 = vmatpush1.msra.mxu0 0.0
    %2240 = vmatprep.subr.mxu0 0.0
    %2241 = vmatpush1.msra.mxu0 0.0
    %2242 = vmatprep.mubr.f32.mxu0 0.0
    %2243 = vmatmul.mubr.f32.gmra.mrb[0].mxu0 %v2105
    %v2244 = vpop.f32.mrb[0].mxu0
    %v2245 = vadd.f32 0.0, %v2244
    %v2246 = vpop.f32.mrb[0].mxu0
    %v2247 = vadd.f32 0.0, %v2246
    %2248 = vdwg.mxu0
    %2249 = vmatprep.subr.mxu0 %v2103
    %2250 = vmatpush1.msra.mxu0 %v2102
    %2251 = vmatprep.subr.mxu0 0.0
    %2252 = vmatpush1.msra.mxu0 0.0
    %2253 = vmatprep.subr.mxu0 0.0
    %2254 = vmatpush1.msra.mxu0 0.0
    %2255 = vmatprep.subr.mxu0 0.0
    %2256 = vmatpush1.msra.mxu0 0.0
    %2257 = vmatprep.subr.mxu0 0.0
    %2258 = vmatpush1.msra.mxu0 0.0
    %2259 = vmatprep.subr.mxu0 0.0
    %2260 = vmatpush1.msra.mxu0 0.0
    %2261 = vmatprep.subr.mxu0 0.0
    %2262 = vmatpush1.msra.mxu0 0.0
    %2263 = vmatprep.subr.mxu0 0.0
    %2264 = vmatpush1.msra.mxu0 0.0
    %2265 = vmatprep.subr.mxu0 0.0
    %2266 = vmatpush1.msra.mxu0 0.0
    %2267 = vmatprep.subr.mxu0 0.0
    %2268 = vmatpush1.msra.mxu0 0.0
    %2269 = vmatprep.subr.mxu0 0.0
    %2270 = vmatpush1.msra.mxu0 0.0
    %2271 = vmatprep.subr.mxu0 0.0
    %2272 = vmatpush1.msra.mxu0 0.0
    %2273 = vmatprep.subr.mxu0 0.0
    %2274 = vmatpush1.msra.mxu0 0.0
    %2275 = vmatprep.subr.mxu0 0.0
    %2276 = vmatpush1.msra.mxu0 0.0
    %2277 = vmatprep.subr.mxu0 0.0
    %2278 = vmatpush1.msra.mxu0 0.0
    %2279 = vmatprep.subr.mxu0 0.0
    %2280 = vmatpush1.msra.mxu0 0.0
    %2281 = vmatprep.subr.mxu0 0.0
    %2282 = vmatpush1.msra.mxu0 0.0
    %2283 = vmatprep.subr.mxu0 0.0
    %2284 = vmatpush1.msra.mxu0 0.0
    %2285 = vmatprep.subr.mxu0 0.0
    %2286 = vmatpush1.msra.mxu0 0.0
    %2287 = vmatprep.subr.mxu0 0.0
    %2288 = vmatpush1.msra.mxu0 0.0
    %2289 = vmatprep.subr.mxu0 0.0
    %2290 = vmatpush1.msra.mxu0 0.0
    %2291 = vmatprep.subr.mxu0 0.0
    %2292 = vmatpush1.msra.mxu0 0.0
    %2293 = vmatprep.subr.mxu0 0.0
    %2294 = vmatpush1.msra.mxu0 0.0
    %2295 = vmatprep.subr.mxu0 0.0
    %2296 = vmatpush1.msra.mxu0 0.0
    %2297 = vmatprep.subr.mxu0 0.0
    %2298 = vmatpush1.msra.mxu0 0.0
    %2299 = vmatprep.subr.mxu0 0.0
    %2300 = vmatpush1.msra.mxu0 0.0
    %2301 = vmatprep.subr.mxu0 0.0
    %2302 = vmatpush1.msra.mxu0 0.0
    %2303 = vmatprep.subr.mxu0 0.0
    %2304 = vmatpush1.msra.mxu0 0.0
    %2305 = vmatprep.subr.mxu0 0.0
    %2306 = vmatpush1.msra.mxu0 0.0
    %2307 = vmatprep.subr.mxu0 0.0
    %2308 = vmatpush1.msra.mxu0 0.0
    %2309 = vmatprep.subr.mxu0 0.0
    %2310 = vmatpush1.msra.mxu0 0.0
    %2311 = vmatprep.subr.mxu0 0.0
    %2312 = vmatpush1.msra.mxu0 0.0
    %2313 = vmatprep.mubr.f32.mxu0 0.0
    %2314 = vmatmul.mubr.f32.gmra.mrb[0].mxu0 %v2105
    %v2315 = vpop.f32.mrb[0].mxu0
    %v2316 = vadd.f32 0.0, %v2315
    %v2317 = vpop.f32.mrb[0].mxu0
    %v2318 = vadd.f32 0.0, %v2317
    %2319 = vdwg.mxu0
    %v2320 = vld [vmem:[%s3] sm:$0xff]
    %2322 = vset.pattern.permute.xlu0 9
    %2323 = vperm.xlu0 %2322, %v2320
    %v2324 = vpop.permute.xlu0 %2323
    %v2326 = vadd.f32 %v2174, %v2324
    %2327 = vst [vmem:[#allocation3] sm:$0xff] %v2326
    %2328 = vst [vmem:[#allocation5] sm:$0xff] %v2176
    %s2329 = scalar_lea.vmem [#allocation5], 8
    %2330 = vst [vmem:[%s2329] sm:$0xff] %v2245
    %s2331 = scalar_lea.vmem [#allocation5], 16
    %2332 = vst [vmem:[%s2331] sm:$0xff] %v2247
    %s2333 = scalar_lea.vmem [#allocation5], 24
    %2334 = vst [vmem:[%s2333] sm:$0xff] %v2316
    %s2335 = scalar_lea.vmem [#allocation5], 32
    %2336 = vst [vmem:[%s2335] sm:$0xff] %v2318
    // Predicated region
    $region18: #{tpu_custom_call.1} parent=1 // pred_check
      _
    $region19: #{tpu_custom_call.1} parent=1 // pred_check_branch
      %2338 = sbr.rel (0) target = $region21
    $region20: #{tpu_custom_call.1} parent=1 // pred_region
      %s2340 = ssub.s32 128, 128
      %2341 = vsyncadd [#allocation4], %s2340
      %s2343 = sshll.u32 [#allocation3], 4
      %s2344 = int_to_ptr.vmem [resolvable:$true] %s2343
      %2346 = dma.vmem_to_hbm [thread:$0]  %s2344, 128, %s4, [#allocation4]
    $region21: #{tpu_custom_call.1} parent=1 // pred_fallthru
      _
    // Predicated region
    $region22: #{tpu_custom_call.1} parent=1 // pred_check
      _
    $region23: #{tpu_custom_call.1} parent=1 // pred_check_branch
      %2348 = sbr.rel (0) target = $region25
    $region24: #{tpu_custom_call.1} parent=1 // pred_region
      %s2350 = ssub.s32 640, 640
      %2351 = vsyncadd [#allocation6], %s2350
      %s2352 = sshll.u32 [#allocation5], 4
      %s2353 = int_to_ptr.vmem [resolvable:$true] %s2352
      %2358 = dma.vmem_to_hbm [thread:$0]  %s2353, 640, %s5, [#allocation6], 128, 128, 8
    $region25: #{tpu_custom_call.1} parent=1 // pred_fallthru
      _
    // Predicated region
    $region26: #{tpu_custom_call.1} parent=1 // pred_check
      _
    $region27: #{tpu_custom_call.1} parent=1 // pred_check_branch
      %2360 = sbr.rel (0) target = $region29
    $region28: #{tpu_custom_call.1} parent=1 // pred_region
      %2361 = dma.done [#allocation4], 128
    $region29: #{tpu_custom_call.1} parent=1 // pred_fallthru
      _
    // Predicated region
    $region30: #{tpu_custom_call.1} parent=1 // pred_check
      _
    $region31: #{tpu_custom_call.1} parent=1 // pred_check_branch
      %2363 = sbr.rel (0) target = $region33
    $region32: #{tpu_custom_call.1} parent=1 // pred_region
      %2364 = dma.done [#allocation6], 640
    $region33: #{tpu_custom_call.1} parent=1 // pred_fallthru
      _
    %2365 = vsyncpa [#allocation4], 1
    %2366 = vsyncpa [#allocation6], 1

</llo_original>
